<compile_context>
chip_gen: v7x
topology: tpu7x:2x2x1
jax: 0.10.0
libtpu: 0.0.40
codegen_flags: <defaults>
</compile_context>

<pallas_src>
import jax
import jax.numpy as jnp
from jax.experimental import pallas as pl
from jax.experimental.pallas import tpu as pltpu


# ---------------------------------------------------------------------------
# In-kernel helpers (traced inside the Pallas kernel body).
# ---------------------------------------------------------------------------
def _zero_pad1(x, axis):
    """Zero-pad a value by 1 on both sides of `axis` (pure in-VMEM concat)."""
    shp = list(x.shape)
    shp[axis] = 1
    z = jnp.zeros(shp, x.dtype)
    return jnp.concatenate([z, x, z], axis=axis)


def _max_pool_2x2(y):
    """2x2 max-pool, stride 2 (floor mode) on an NHWC value; H, W even."""
    B, H, W, C = y.shape
    yr = y.reshape(B, H // 2, 2, W, C)
    rm = jnp.maximum(yr[:, :, 0, :, :], yr[:, :, 1, :, :])
    yc = rm.reshape(B, H // 2, W // 2, 2, C)
    return jnp.maximum(yc[:, :, :, 0, :], yc[:, :, :, 1, :])


# ---------------------------------------------------------------------------
# Fused kernel: conv1+BN+ReLU+pool -> conv2+BN+ReLU+pool -> flatten -> MLP.
# ---------------------------------------------------------------------------
def pacman_fused_kernel(x_ref, w1_ref, b1_ref, w2_ref, b2_ref,
                        fc1w_ref, fc1b_ref, fc2w_ref, fc2b_ref, out_ref):
    """
    x_ref   : (B, H, W, 1)        NHWC input
    w1_ref  : (9, 16)             conv1 taps (BN folded), row = dy*3 + dx
    b1_ref  : (1, 16)             folded conv1+BN bias
    w2_ref  : (144, 32)           conv2 taps (BN folded), row = (dy*3+dx)*16 + cin
    b2_ref  : (1, 32)             folded conv2+BN bias
    fc1w_ref: (H/4*W/4*32, hid)   fc1 weight with NCHW-flatten permutation folded
    fc1b_ref: (1, hid)
    fc2w_ref: (hid, out)
    fc2b_ref: (1, out)
    out_ref : (B, out)
    """
    B, H, W, _ = x_ref.shape
    C1 = b1_ref.shape[-1]
    C2 = b2_ref.shape[-1]
    H2, W2 = H // 2, W // 2
    H4, W4 = H2 // 2, W2 // 2

    # ---- block 1: conv1 (Cin=1) as 9 VPU broadcast-MACs + bias + ReLU + pool
    xp1 = _zero_pad1(_zero_pad1(x_ref[...], 1), 2)          # (B, H+2, W+2, 1)
    w1 = w1_ref[...]                                        # (9, 16)
    acc = jnp.zeros((B, H, W, C1), jnp.float32)
    for dy in range(3):                                     # static unroll, 9 taps
        for dx in range(3):
            tap = dy * 3 + dx
            acc = acc + xp1[:, dy:dy + H, dx:dx + W, :] * w1[tap:tap + 1, :]
    y1 = jnp.maximum(acc + b1_ref[...], 0.0)                # (B, H, W, 16)
    p1 = _max_pool_2x2(y1)                                  # (B, H/2, W/2, 16)

    # ---- block 2: conv2 as ONE im2col matmul (K = 9*16 = 144) + ReLU + pool
    xp2 = _zero_pad1(_zero_pad1(p1, 1), 2)                  # (B, H2+2, W2+2, 16)
    cols = [xp2[:, dy:dy + H2, dx:dx + W2, :]
            for dy in range(3) for dx in range(3)]
    patch = jnp.concatenate(cols, axis=-1)                  # (B, H2, W2, 144)
    patch = patch.reshape(B * H2 * W2, 9 * C1)              # lane dim unchanged
    y2 = jnp.dot(patch, w2_ref[...], preferred_element_type=jnp.float32)
    y2 = jnp.maximum(y2 + b2_ref[...], 0.0)
    y2 = y2.reshape(B, H2, W2, C2)                          # (B, H2, W2, 32)
    p2 = _max_pool_2x2(y2)                                  # (B, H/4, W/4, 32)

    # ---- flatten: NHWC order, lane-dense; NCHW permutation folded into fc1_w
    feat = jnp.concatenate(
        [p2[:, hh, ww, :] for hh in range(H4) for ww in range(W4)], axis=-1)

    # ---- fc1 + ReLU + dropout(eval: identity) + fc2 ------------------------
    h = jnp.dot(feat, fc1w_ref[...], preferred_element_type=jnp.float32)
    h = jnp.maximum(h + fc1b_ref[...], 0.0)
    # TODO(synk): Dropout(0.5) is identity in eval mode; train-mode dropout
    # masking and train-mode BatchNorm batch statistics are not implemented.
    out_ref[...] = (jnp.dot(h, fc2w_ref[...], preferred_element_type=jnp.float32)
                    + fc2b_ref[...])


# ---------------------------------------------------------------------------
# Wrapper (single pallas_call, everything whole-array resident in VMEM).
# ---------------------------------------------------------------------------
def _vmem_spec():
    return pl.BlockSpec(memory_space=pltpu.MemorySpace.VMEM)


def pacman_net_forward(prepared, x_nhwc):
    """Fused forward. x_nhwc: (B, H, W, 1) float32 -> (B, output_size)."""
    B, H, W, _ = x_nhwc.shape
    assert H % 4 == 0 and W % 4 == 0, "kernel assumes H, W divisible by 4"
    out_dim = prepared["fc2_w"].shape[-1]
    return pl.pallas_call(
        pacman_fused_kernel,
        out_shape=jax.ShapeDtypeStruct((B, out_dim), jnp.float32),
        in_specs=[_vmem_spec()] * 9,
        out_specs=_vmem_spec(),
        # TODO(synk): for large batches, tile B with a ("parallel",) grid so
        # v7x's two TensorCores split the work; unnecessary at this toy size.
    )(x_nhwc, prepared["w1"], prepared["b1"], prepared["w2"], prepared["b2"],
      prepared["fc1_w"], prepared["fc1_b"], prepared["fc2_w"], prepared["fc2_b"])


# ---------------------------------------------------------------------------
# One-time (outside jit) weight preprocessing.
# ---------------------------------------------------------------------------
def fold_conv_bn(w, b, gamma, beta, mean, var, eps=1e-5):
    """Fold eval-mode BN into conv weight/bias -> ((9*Cin, Cout) taps, (1, Cout))."""
    scale = gamma / jnp.sqrt(var + eps)                      # (Cout,)
    w_f = w * scale[:, None, None, None]                     # (Cout, Cin, 3, 3)
    b_f = scale * (b - mean) + beta                          # (Cout,)
    cout, cin = w.shape[0], w.shape[1]
    taps = jnp.transpose(w_f, (2, 3, 1, 0)).reshape(9 * cin, cout)
    return taps, b_f.reshape(1, cout)


def prepare_params(params, input_shape):
    """BN folding, tap stacking, fc transposes and NCHW-flatten perm, done once."""
    H, W = input_shape
    H4, W4 = max(H // 4, 1), max(W // 4, 1)
    w1, b1 = fold_conv_bn(params["conv1_w"], params["conv1_b"],
                          params["bn1_gamma"], params["bn1_beta"],
                          params["bn1_mean"], params["bn1_var"])
    w2, b2 = fold_conv_bn(params["conv2_w"], params["conv2_b"],
                          params["bn2_gamma"], params["bn2_beta"],
                          params["bn2_mean"], params["bn2_var"])
    # Fold PyTorch's NCHW x.view(B, -1) ordering into fc1's weight so the
    # kernel can flatten its NHWC conv output directly.
    hidden = params["fc1_w"].shape[0]
    fc1_wt = params["fc1_w"].T.reshape(32, H4, W4, hidden)   # (C, H, W, hid)
    fc1_w = jnp.transpose(fc1_wt, (1, 2, 0, 3)).reshape(32 * H4 * W4, hidden)
    return {
        "w1": w1, "b1": b1, "w2": w2, "b2": b2,
        "fc1_w": fc1_w, "fc1_b": params["fc1_b"].reshape(1, -1),
        "fc2_w": params["fc2_w"].T, "fc2_b": params["fc2_b"].reshape(1, -1),
    }


def init_params(key, input_shape, hidden_size_fc, output_size):
    H, W = input_shape
    h4, w4 = max(H // 4, 1), max(W // 4, 1)
    feat = 32 * h4 * w4
    ks = jax.random.split(key, 12)
    p = {
        "conv1_w": 0.10 * jax.random.normal(ks[0], (16, 1, 3, 3), jnp.float32),
        "conv1_b": 0.10 * jax.random.normal(ks[1], (16,), jnp.float32),
        "bn1_gamma": 1.0 + 0.10 * jax.random.normal(ks[2], (16,), jnp.float32),
        "bn1_beta": 0.10 * jax.random.normal(ks[3], (16,), jnp.float32),
        "conv2_w": 0.05 * jax.random.normal(ks[4], (32, 16, 3, 3), jnp.float32),
        "conv2_b": 0.10 * jax.random.normal(ks[5], (32,), jnp.float32),
        "bn2_gamma": 1.0 + 0.10 * jax.random.normal(ks[6], (32,), jnp.float32),
        "bn2_beta": 0.10 * jax.random.normal(ks[7], (32,), jnp.float32),
        "fc1_w": 0.05 * jax.random.normal(ks[8], (hidden_size_fc, feat), jnp.float32),
        "fc1_b": 0.10 * jax.random.normal(ks[9], (hidden_size_fc,), jnp.float32),
        "fc2_w": 0.05 * jax.random.normal(ks[10], (output_size, hidden_size_fc), jnp.float32),
        "fc2_b": 0.10 * jax.random.normal(ks[11], (output_size,), jnp.float32),
    }
    # eval-mode BatchNorm running statistics
    p["bn1_mean"] = jnp.zeros((16,), jnp.float32)
    p["bn1_var"] = jnp.ones((16,), jnp.float32)
    p["bn2_mean"] = jnp.zeros((32,), jnp.float32)
    p["bn2_var"] = jnp.ones((32,), jnp.float32)
    return p


# ---------------------------------------------------------------------------
# Pure-JAX (XLA) reference matching the PyTorch module in eval mode.
# ---------------------------------------------------------------------------
def reference_forward(params, x, eps=1e-5):
    v = x[:, None, :, :]                                     # NCHW, Cin=1

    def block(v, w, b, gamma, beta, mean, var):
        v = jax.lax.conv_general_dilated(
            v, w, window_strides=(1, 1), padding=((1, 1), (1, 1)),
            dimension_numbers=("NCHW", "OIHW", "NCHW"),
            precision=jax.lax.Precision.HIGHEST)
        v = v + b[None, :, None, None]
        v = (gamma[None, :, None, None] * (v - mean[None, :, None, None])
             / jnp.sqrt(var[None, :, None, None] + eps)
             + beta[None, :, None, None])
        v = jnp.maximum(v, 0.0)
        return jax.lax.reduce_window(v, -jnp.inf, jax.lax.max,
                                     (1, 1, 2, 2), (1, 1, 2, 2), "VALID")

    v = block(v, params["conv1_w"], params["conv1_b"], params["bn1_gamma"],
              params["bn1_beta"], params["bn1_mean"], params["bn1_var"])
    v = block(v, params["conv2_w"], params["conv2_b"], params["bn2_gamma"],
              params["bn2_beta"], params["bn2_mean"], params["bn2_var"])
    f = v.reshape(v.shape[0], -1)
    h = jnp.maximum(jnp.dot(f, params["fc1_w"].T,
                            precision=jax.lax.Precision.HIGHEST)
                    + params["fc1_b"], 0.0)
    return (jnp.dot(h, params["fc2_w"].T, precision=jax.lax.Precision.HIGHEST)
            + params["fc2_b"])


if __name__ == "__main__":
    INPUT_SHAPE = (16, 16)     # (height, width) of the map
    HIDDEN_FC = 32
    OUTPUT_SIZE = 4            # number of actions
    BATCH = 2

    key = jax.random.PRNGKey(0)
    k_params, k_x = jax.random.split(key)
    params = init_params(k_params, INPUT_SHAPE, HIDDEN_FC, OUTPUT_SIZE)
    prepared = prepare_params(params, INPUT_SHAPE)   # hoisted: runs exactly once
    x = jax.random.uniform(k_x, (BATCH,) + INPUT_SHAPE, jnp.float32) * 3.0

    fwd = jax.jit(pacman_net_forward)
    out = jax.block_until_ready(fwd(prepared, x.reshape(BATCH, *INPUT_SHAPE, 1)))
    assert out.shape == (BATCH, OUTPUT_SIZE), out.shape

    ref = jax.block_until_ready(jax.jit(reference_forward)(params, x))
    assert jnp.allclose(out, ref, rtol=1e-2, atol=1e-2), (out, ref)

    print("KERNEL_OK")
</pallas_src>

<mosaic_0001>
module attributes {stable_mosaic.version = 11 : i64} {
  func.func @pacman_fused_kernel(%arg0: memref<2x16x16x1xf32, #tpu.memory_space<vmem>>, %arg1: memref<9x16xf32, #tpu.memory_space<vmem>>, %arg2: memref<1x16xf32, #tpu.memory_space<vmem>>, %arg3: memref<144x32xf32, #tpu.memory_space<vmem>>, %arg4: memref<1x32xf32, #tpu.memory_space<vmem>>, %arg5: memref<512x32xf32, #tpu.memory_space<vmem>>, %arg6: memref<1x32xf32, #tpu.memory_space<vmem>>, %arg7: memref<32x4xf32, #tpu.memory_space<vmem>>, %arg8: memref<1x4xf32, #tpu.memory_space<vmem>>, %arg9: memref<2x4xf32, #tpu.memory_space<vmem>>) attributes {dimension_semantics = [], scalar_prefetch = 0 : i64, scratch_operands = 0 : i64, tpu.core_type = #tpu.core_type<tc>} {
    %c0 = arith.constant 0 : index
    %c0_0 = arith.constant 0 : index
    %c0_1 = arith.constant 0 : index
    %c0_2 = arith.constant 0 : index
    %0 = vector.load %arg0[%c0, %c0_0, %c0_1, %c0_2] : memref<2x16x16x1xf32, #tpu.memory_space<vmem>>, vector<2x16x16x1xf32>
    %cst = arith.constant 0.000000e+00 : f32
    %1 = vector.broadcast %cst : f32 to vector<2x1x16x1xf32>
    %2 = tpu.concatenate %1, %0, %1 in 1 : vector<2x1x16x1xf32>, vector<2x16x16x1xf32>, vector<2x1x16x1xf32> -> vector<2x18x16x1xf32>
    %cst_3 = arith.constant 0.000000e+00 : f32
    %3 = vector.broadcast %cst_3 : f32 to vector<2x18x1x1xf32>
    %4 = tpu.concatenate %3, %2, %3 in 2 : vector<2x18x1x1xf32>, vector<2x18x16x1xf32>, vector<2x18x1x1xf32> -> vector<2x18x18x1xf32>
    %c0_4 = arith.constant 0 : index
    %c0_5 = arith.constant 0 : index
    %5 = vector.load %arg1[%c0_4, %c0_5] : memref<9x16xf32, #tpu.memory_space<vmem>>, vector<9x16xf32>
    %cst_6 = arith.constant 0.000000e+00 : f32
    %6 = vector.broadcast %cst_6 : f32 to vector<2x16x16x16xf32>
    %7 = vector.extract_strided_slice %4 {offsets = [0, 0, 0, 0], sizes = [2, 16, 16, 1], strides = [1, 1, 1, 1]} : vector<2x18x18x1xf32> to vector<2x16x16x1xf32>
    %8 = vector.extract_strided_slice %5 {offsets = [0, 0], sizes = [1, 16], strides = [1, 1]} : vector<9x16xf32> to vector<1x16xf32>
    %9 = vector.shape_cast %8 : vector<1x16xf32> to vector<1x1x1x16xf32>
    %10 = vector.broadcast %7 : vector<2x16x16x1xf32> to vector<2x16x16x16xf32>
    %11 = vector.broadcast %9 : vector<1x1x1x16xf32> to vector<2x16x16x16xf32>
    %12 = arith.mulf %10, %11 : vector<2x16x16x16xf32>
    %13 = arith.addf %6, %12 : vector<2x16x16x16xf32>
    %14 = vector.extract_strided_slice %4 {offsets = [0, 0, 1, 0], sizes = [2, 16, 16, 1], strides = [1, 1, 1, 1]} : vector<2x18x18x1xf32> to vector<2x16x16x1xf32>
    %15 = vector.extract_strided_slice %5 {offsets = [1, 0], sizes = [1, 16], strides = [1, 1]} : vector<9x16xf32> to vector<1x16xf32>
    %16 = vector.shape_cast %15 : vector<1x16xf32> to vector<1x1x1x16xf32>
    %17 = vector.broadcast %14 : vector<2x16x16x1xf32> to vector<2x16x16x16xf32>
    %18 = vector.broadcast %16 : vector<1x1x1x16xf32> to vector<2x16x16x16xf32>
    %19 = arith.mulf %17, %18 : vector<2x16x16x16xf32>
    %20 = arith.addf %13, %19 : vector<2x16x16x16xf32>
    %21 = vector.extract_strided_slice %4 {offsets = [0, 0, 2, 0], sizes = [2, 16, 16, 1], strides = [1, 1, 1, 1]} : vector<2x18x18x1xf32> to vector<2x16x16x1xf32>
    %22 = vector.extract_strided_slice %5 {offsets = [2, 0], sizes = [1, 16], strides = [1, 1]} : vector<9x16xf32> to vector<1x16xf32>
    %23 = vector.shape_cast %22 : vector<1x16xf32> to vector<1x1x1x16xf32>
    %24 = vector.broadcast %21 : vector<2x16x16x1xf32> to vector<2x16x16x16xf32>
    %25 = vector.broadcast %23 : vector<1x1x1x16xf32> to vector<2x16x16x16xf32>
    %26 = arith.mulf %24, %25 : vector<2x16x16x16xf32>
    %27 = arith.addf %20, %26 : vector<2x16x16x16xf32>
    %28 = vector.extract_strided_slice %4 {offsets = [0, 1, 0, 0], sizes = [2, 16, 16, 1], strides = [1, 1, 1, 1]} : vector<2x18x18x1xf32> to vector<2x16x16x1xf32>
    %29 = vector.extract_strided_slice %5 {offsets = [3, 0], sizes = [1, 16], strides = [1, 1]} : vector<9x16xf32> to vector<1x16xf32>
    %30 = vector.shape_cast %29 : vector<1x16xf32> to vector<1x1x1x16xf32>
    %31 = vector.broadcast %28 : vector<2x16x16x1xf32> to vector<2x16x16x16xf32>
    %32 = vector.broadcast %30 : vector<1x1x1x16xf32> to vector<2x16x16x16xf32>
    %33 = arith.mulf %31, %32 : vector<2x16x16x16xf32>
    %34 = arith.addf %27, %33 : vector<2x16x16x16xf32>
    %35 = vector.extract_strided_slice %4 {offsets = [0, 1, 1, 0], sizes = [2, 16, 16, 1], strides = [1, 1, 1, 1]} : vector<2x18x18x1xf32> to vector<2x16x16x1xf32>
    %36 = vector.extract_strided_slice %5 {offsets = [4, 0], sizes = [1, 16], strides = [1, 1]} : vector<9x16xf32> to vector<1x16xf32>
    %37 = vector.shape_cast %36 : vector<1x16xf32> to vector<1x1x1x16xf32>
    %38 = vector.broadcast %35 : vector<2x16x16x1xf32> to vector<2x16x16x16xf32>
    %39 = vector.broadcast %37 : vector<1x1x1x16xf32> to vector<2x16x16x16xf32>
    %40 = arith.mulf %38, %39 : vector<2x16x16x16xf32>
    %41 = arith.addf %34, %40 : vector<2x16x16x16xf32>
    %42 = vector.extract_strided_slice %4 {offsets = [0, 1, 2, 0], sizes = [2, 16, 16, 1], strides = [1, 1, 1, 1]} : vector<2x18x18x1xf32> to vector<2x16x16x1xf32>
    %43 = vector.extract_strided_slice %5 {offsets = [5, 0], sizes = [1, 16], strides = [1, 1]} : vector<9x16xf32> to vector<1x16xf32>
    %44 = vector.shape_cast %43 : vector<1x16xf32> to vector<1x1x1x16xf32>
    %45 = vector.broadcast %42 : vector<2x16x16x1xf32> to vector<2x16x16x16xf32>
    %46 = vector.broadcast %44 : vector<1x1x1x16xf32> to vector<2x16x16x16xf32>
    %47 = arith.mulf %45, %46 : vector<2x16x16x16xf32>
    %48 = arith.addf %41, %47 : vector<2x16x16x16xf32>
    %49 = vector.extract_strided_slice %4 {offsets = [0, 2, 0, 0], sizes = [2, 16, 16, 1], strides = [1, 1, 1, 1]} : vector<2x18x18x1xf32> to vector<2x16x16x1xf32>
    %50 = vector.extract_strided_slice %5 {offsets = [6, 0], sizes = [1, 16], strides = [1, 1]} : vector<9x16xf32> to vector<1x16xf32>
    %51 = vector.shape_cast %50 : vector<1x16xf32> to vector<1x1x1x16xf32>
    %52 = vector.broadcast %49 : vector<2x16x16x1xf32> to vector<2x16x16x16xf32>
    %53 = vector.broadcast %51 : vector<1x1x1x16xf32> to vector<2x16x16x16xf32>
    %54 = arith.mulf %52, %53 : vector<2x16x16x16xf32>
    %55 = arith.addf %48, %54 : vector<2x16x16x16xf32>
    %56 = vector.extract_strided_slice %4 {offsets = [0, 2, 1, 0], sizes = [2, 16, 16, 1], strides = [1, 1, 1, 1]} : vector<2x18x18x1xf32> to vector<2x16x16x1xf32>
    %57 = vector.extract_strided_slice %5 {offsets = [7, 0], sizes = [1, 16], strides = [1, 1]} : vector<9x16xf32> to vector<1x16xf32>
    %58 = vector.shape_cast %57 : vector<1x16xf32> to vector<1x1x1x16xf32>
    %59 = vector.broadcast %56 : vector<2x16x16x1xf32> to vector<2x16x16x16xf32>
    %60 = vector.broadcast %58 : vector<1x1x1x16xf32> to vector<2x16x16x16xf32>
    %61 = arith.mulf %59, %60 : vector<2x16x16x16xf32>
    %62 = arith.addf %55, %61 : vector<2x16x16x16xf32>
    %63 = vector.extract_strided_slice %4 {offsets = [0, 2, 2, 0], sizes = [2, 16, 16, 1], strides = [1, 1, 1, 1]} : vector<2x18x18x1xf32> to vector<2x16x16x1xf32>
    %64 = vector.extract_strided_slice %5 {offsets = [8, 0], sizes = [1, 16], strides = [1, 1]} : vector<9x16xf32> to vector<1x16xf32>
    %65 = vector.shape_cast %64 : vector<1x16xf32> to vector<1x1x1x16xf32>
    %66 = vector.broadcast %63 : vector<2x16x16x1xf32> to vector<2x16x16x16xf32>
    %67 = vector.broadcast %65 : vector<1x1x1x16xf32> to vector<2x16x16x16xf32>
    %68 = arith.mulf %66, %67 : vector<2x16x16x16xf32>
    %69 = arith.addf %62, %68 : vector<2x16x16x16xf32>
    %c0_7 = arith.constant 0 : index
    %c0_8 = arith.constant 0 : index
    %70 = vector.load %arg2[%c0_7, %c0_8] : memref<1x16xf32, #tpu.memory_space<vmem>>, vector<1x16xf32>
    %71 = vector.shape_cast %70 : vector<1x16xf32> to vector<1x1x1x16xf32>
    %72 = vector.broadcast %71 : vector<1x1x1x16xf32> to vector<2x16x16x16xf32>
    %73 = arith.addf %69, %72 : vector<2x16x16x16xf32>
    %cst_9 = arith.constant 0.000000e+00 : f32
    %74 = vector.broadcast %cst_9 : f32 to vector<2x16x16x16xf32>
    %75 = arith.maximumf %73, %74 : vector<2x16x16x16xf32>
    %76 = vector.shape_cast %75 : vector<2x16x16x16xf32> to vector<2x8x2x16x16xf32>
    %77 = vector.extract_strided_slice %76 {offsets = [0, 0, 0, 0, 0], sizes = [2, 8, 1, 16, 16], strides = [1, 1, 1, 1, 1]} : vector<2x8x2x16x16xf32> to vector<2x8x1x16x16xf32>
    %78 = vector.shape_cast %77 : vector<2x8x1x16x16xf32> to vector<2x8x16x16xf32>
    %79 = vector.extract_strided_slice %76 {offsets = [0, 0, 1, 0, 0], sizes = [2, 8, 1, 16, 16], strides = [1, 1, 1, 1, 1]} : vector<2x8x2x16x16xf32> to vector<2x8x1x16x16xf32>
    %80 = vector.shape_cast %79 : vector<2x8x1x16x16xf32> to vector<2x8x16x16xf32>
    %81 = arith.maximumf %78, %80 : vector<2x8x16x16xf32>
    %82 = vector.shape_cast %81 : vector<2x8x16x16xf32> to vector<2x8x8x2x16xf32>
    %83 = vector.extract_strided_slice %82 {offsets = [0, 0, 0, 0, 0], sizes = [2, 8, 8, 1, 16], strides = [1, 1, 1, 1, 1]} : vector<2x8x8x2x16xf32> to vector<2x8x8x1x16xf32>
    %84 = vector.shape_cast %83 : vector<2x8x8x1x16xf32> to vector<2x8x8x16xf32>
    %85 = vector.extract_strided_slice %82 {offsets = [0, 0, 0, 1, 0], sizes = [2, 8, 8, 1, 16], strides = [1, 1, 1, 1, 1]} : vector<2x8x8x2x16xf32> to vector<2x8x8x1x16xf32>
    %86 = vector.shape_cast %85 : vector<2x8x8x1x16xf32> to vector<2x8x8x16xf32>
    %87 = arith.maximumf %84, %86 : vector<2x8x8x16xf32>
    %cst_10 = arith.constant 0.000000e+00 : f32
    %88 = vector.broadcast %cst_10 : f32 to vector<2x1x8x16xf32>
    %89 = tpu.concatenate %88, %87, %88 in 1 : vector<2x1x8x16xf32>, vector<2x8x8x16xf32>, vector<2x1x8x16xf32> -> vector<2x10x8x16xf32>
    %cst_11 = arith.constant 0.000000e+00 : f32
    %90 = vector.broadcast %cst_11 : f32 to vector<2x10x1x16xf32>
    %91 = tpu.concatenate %90, %89, %90 in 2 : vector<2x10x1x16xf32>, vector<2x10x8x16xf32>, vector<2x10x1x16xf32> -> vector<2x10x10x16xf32>
    %92 = vector.extract_strided_slice %91 {offsets = [0, 0, 0, 0], sizes = [2, 8, 8, 16], strides = [1, 1, 1, 1]} : vector<2x10x10x16xf32> to vector<2x8x8x16xf32>
    %93 = vector.extract_strided_slice %91 {offsets = [0, 0, 1, 0], sizes = [2, 8, 8, 16], strides = [1, 1, 1, 1]} : vector<2x10x10x16xf32> to vector<2x8x8x16xf32>
    %94 = vector.extract_strided_slice %91 {offsets = [0, 0, 2, 0], sizes = [2, 8, 8, 16], strides = [1, 1, 1, 1]} : vector<2x10x10x16xf32> to vector<2x8x8x16xf32>
    %95 = vector.extract_strided_slice %91 {offsets = [0, 1, 0, 0], sizes = [2, 8, 8, 16], strides = [1, 1, 1, 1]} : vector<2x10x10x16xf32> to vector<2x8x8x16xf32>
    %96 = vector.extract_strided_slice %91 {offsets = [0, 1, 1, 0], sizes = [2, 8, 8, 16], strides = [1, 1, 1, 1]} : vector<2x10x10x16xf32> to vector<2x8x8x16xf32>
    %97 = vector.extract_strided_slice %91 {offsets = [0, 1, 2, 0], sizes = [2, 8, 8, 16], strides = [1, 1, 1, 1]} : vector<2x10x10x16xf32> to vector<2x8x8x16xf32>
    %98 = vector.extract_strided_slice %91 {offsets = [0, 2, 0, 0], sizes = [2, 8, 8, 16], strides = [1, 1, 1, 1]} : vector<2x10x10x16xf32> to vector<2x8x8x16xf32>
    %99 = vector.extract_strided_slice %91 {offsets = [0, 2, 1, 0], sizes = [2, 8, 8, 16], strides = [1, 1, 1, 1]} : vector<2x10x10x16xf32> to vector<2x8x8x16xf32>
    %100 = vector.extract_strided_slice %91 {offsets = [0, 2, 2, 0], sizes = [2, 8, 8, 16], strides = [1, 1, 1, 1]} : vector<2x10x10x16xf32> to vector<2x8x8x16xf32>
    %101 = tpu.concatenate %92, %93, %94, %95, %96, %97, %98, %99, %100 in 3 : vector<2x8x8x16xf32>, vector<2x8x8x16xf32>, vector<2x8x8x16xf32>, vector<2x8x8x16xf32>, vector<2x8x8x16xf32>, vector<2x8x8x16xf32>, vector<2x8x8x16xf32>, vector<2x8x8x16xf32>, vector<2x8x8x16xf32> -> vector<2x8x8x144xf32>
    %102 = vector.shape_cast %101 : vector<2x8x8x144xf32> to vector<128x144xf32>
    %c0_12 = arith.constant 0 : index
    %c0_13 = arith.constant 0 : index
    %103 = vector.load %arg3[%c0_12, %c0_13] : memref<144x32xf32, #tpu.memory_space<vmem>>, vector<144x32xf32>
    %cst_14 = arith.constant dense<0.000000e+00> : vector<128x32xf32>
    %104 = tpu.matmul %102, %103, %cst_14 {dimension_numbers = #tpu.dot_dimension_numbers<[1], [0], [0], [1], [0, 0, 1, 1], [], []>} : vector<128x144xf32>, vector<144x32xf32>, vector<128x32xf32> -> vector<128x32xf32>
    %c0_15 = arith.constant 0 : index
    %c0_16 = arith.constant 0 : index
    %105 = vector.load %arg4[%c0_15, %c0_16] : memref<1x32xf32, #tpu.memory_space<vmem>>, vector<1x32xf32>
    %106 = vector.broadcast %105 : vector<1x32xf32> to vector<128x32xf32>
    %107 = arith.addf %104, %106 : vector<128x32xf32>
    %cst_17 = arith.constant 0.000000e+00 : f32
    %108 = vector.broadcast %cst_17 : f32 to vector<128x32xf32>
    %109 = arith.maximumf %107, %108 : vector<128x32xf32>
    %110 = vector.shape_cast %109 : vector<128x32xf32> to vector<2x8x8x32xf32>
    %111 = vector.shape_cast %110 : vector<2x8x8x32xf32> to vector<2x4x2x8x32xf32>
    %112 = vector.extract_strided_slice %111 {offsets = [0, 0, 0, 0, 0], sizes = [2, 4, 1, 8, 32], strides = [1, 1, 1, 1, 1]} : vector<2x4x2x8x32xf32> to vector<2x4x1x8x32xf32>
    %113 = vector.shape_cast %112 : vector<2x4x1x8x32xf32> to vector<2x4x8x32xf32>
    %114 = vector.extract_strided_slice %111 {offsets = [0, 0, 1, 0, 0], sizes = [2, 4, 1, 8, 32], strides = [1, 1, 1, 1, 1]} : vector<2x4x2x8x32xf32> to vector<2x4x1x8x32xf32>
    %115 = vector.shape_cast %114 : vector<2x4x1x8x32xf32> to vector<2x4x8x32xf32>
    %116 = arith.maximumf %113, %115 : vector<2x4x8x32xf32>
    %117 = vector.shape_cast %116 : vector<2x4x8x32xf32> to vector<2x4x4x2x32xf32>
    %118 = vector.extract_strided_slice %117 {offsets = [0, 0, 0, 0, 0], sizes = [2, 4, 4, 1, 32], strides = [1, 1, 1, 1, 1]} : vector<2x4x4x2x32xf32> to vector<2x4x4x1x32xf32>
    %119 = vector.shape_cast %118 : vector<2x4x4x1x32xf32> to vector<2x4x4x32xf32>
    %120 = vector.extract_strided_slice %117 {offsets = [0, 0, 0, 1, 0], sizes = [2, 4, 4, 1, 32], strides = [1, 1, 1, 1, 1]} : vector<2x4x4x2x32xf32> to vector<2x4x4x1x32xf32>
    %121 = vector.shape_cast %120 : vector<2x4x4x1x32xf32> to vector<2x4x4x32xf32>
    %122 = arith.maximumf %119, %121 : vector<2x4x4x32xf32>
    %123 = vector.extract_strided_slice %122 {offsets = [0, 0, 0, 0], sizes = [2, 1, 1, 32], strides = [1, 1, 1, 1]} : vector<2x4x4x32xf32> to vector<2x1x1x32xf32>
    %124 = vector.shape_cast %123 : vector<2x1x1x32xf32> to vector<2x32xf32>
    %125 = vector.extract_strided_slice %122 {offsets = [0, 0, 1, 0], sizes = [2, 1, 1, 32], strides = [1, 1, 1, 1]} : vector<2x4x4x32xf32> to vector<2x1x1x32xf32>
    %126 = vector.shape_cast %125 : vector<2x1x1x32xf32> to vector<2x32xf32>
    %127 = vector.extract_strided_slice %122 {offsets = [0, 0, 2, 0], sizes = [2, 1, 1, 32], strides = [1, 1, 1, 1]} : vector<2x4x4x32xf32> to vector<2x1x1x32xf32>
    %128 = vector.shape_cast %127 : vector<2x1x1x32xf32> to vector<2x32xf32>
    %129 = vector.extract_strided_slice %122 {offsets = [0, 0, 3, 0], sizes = [2, 1, 1, 32], strides = [1, 1, 1, 1]} : vector<2x4x4x32xf32> to vector<2x1x1x32xf32>
    %130 = vector.shape_cast %129 : vector<2x1x1x32xf32> to vector<2x32xf32>
    %131 = vector.extract_strided_slice %122 {offsets = [0, 1, 0, 0], sizes = [2, 1, 1, 32], strides = [1, 1, 1, 1]} : vector<2x4x4x32xf32> to vector<2x1x1x32xf32>
    %132 = vector.shape_cast %131 : vector<2x1x1x32xf32> to vector<2x32xf32>
    %133 = vector.extract_strided_slice %122 {offsets = [0, 1, 1, 0], sizes = [2, 1, 1, 32], strides = [1, 1, 1, 1]} : vector<2x4x4x32xf32> to vector<2x1x1x32xf32>
    %134 = vector.shape_cast %133 : vector<2x1x1x32xf32> to vector<2x32xf32>
    %135 = vector.extract_strided_slice %122 {offsets = [0, 1, 2, 0], sizes = [2, 1, 1, 32], strides = [1, 1, 1, 1]} : vector<2x4x4x32xf32> to vector<2x1x1x32xf32>
    %136 = vector.shape_cast %135 : vector<2x1x1x32xf32> to vector<2x32xf32>
    %137 = vector.extract_strided_slice %122 {offsets = [0, 1, 3, 0], sizes = [2, 1, 1, 32], strides = [1, 1, 1, 1]} : vector<2x4x4x32xf32> to vector<2x1x1x32xf32>
    %138 = vector.shape_cast %137 : vector<2x1x1x32xf32> to vector<2x32xf32>
    %139 = vector.extract_strided_slice %122 {offsets = [0, 2, 0, 0], sizes = [2, 1, 1, 32], strides = [1, 1, 1, 1]} : vector<2x4x4x32xf32> to vector<2x1x1x32xf32>
    %140 = vector.shape_cast %139 : vector<2x1x1x32xf32> to vector<2x32xf32>
    %141 = vector.extract_strided_slice %122 {offsets = [0, 2, 1, 0], sizes = [2, 1, 1, 32], strides = [1, 1, 1, 1]} : vector<2x4x4x32xf32> to vector<2x1x1x32xf32>
    %142 = vector.shape_cast %141 : vector<2x1x1x32xf32> to vector<2x32xf32>
    %143 = vector.extract_strided_slice %122 {offsets = [0, 2, 2, 0], sizes = [2, 1, 1, 32], strides = [1, 1, 1, 1]} : vector<2x4x4x32xf32> to vector<2x1x1x32xf32>
    %144 = vector.shape_cast %143 : vector<2x1x1x32xf32> to vector<2x32xf32>
    %145 = vector.extract_strided_slice %122 {offsets = [0, 2, 3, 0], sizes = [2, 1, 1, 32], strides = [1, 1, 1, 1]} : vector<2x4x4x32xf32> to vector<2x1x1x32xf32>
    %146 = vector.shape_cast %145 : vector<2x1x1x32xf32> to vector<2x32xf32>
    %147 = vector.extract_strided_slice %122 {offsets = [0, 3, 0, 0], sizes = [2, 1, 1, 32], strides = [1, 1, 1, 1]} : vector<2x4x4x32xf32> to vector<2x1x1x32xf32>
    %148 = vector.shape_cast %147 : vector<2x1x1x32xf32> to vector<2x32xf32>
    %149 = vector.extract_strided_slice %122 {offsets = [0, 3, 1, 0], sizes = [2, 1, 1, 32], strides = [1, 1, 1, 1]} : vector<2x4x4x32xf32> to vector<2x1x1x32xf32>
    %150 = vector.shape_cast %149 : vector<2x1x1x32xf32> to vector<2x32xf32>
    %151 = vector.extract_strided_slice %122 {offsets = [0, 3, 2, 0], sizes = [2, 1, 1, 32], strides = [1, 1, 1, 1]} : vector<2x4x4x32xf32> to vector<2x1x1x32xf32>
    %152 = vector.shape_cast %151 : vector<2x1x1x32xf32> to vector<2x32xf32>
    %153 = vector.extract_strided_slice %122 {offsets = [0, 3, 3, 0], sizes = [2, 1, 1, 32], strides = [1, 1, 1, 1]} : vector<2x4x4x32xf32> to vector<2x1x1x32xf32>
    %154 = vector.shape_cast %153 : vector<2x1x1x32xf32> to vector<2x32xf32>
    %155 = tpu.concatenate %124, %126, %128, %130, %132, %134, %136, %138, %140, %142, %144, %146, %148, %150, %152, %154 in 1 : vector<2x32xf32>, vector<2x32xf32>, vector<2x32xf32>, vector<2x32xf32>, vector<2x32xf32>, vector<2x32xf32>, vector<2x32xf32>, vector<2x32xf32>, vector<2x32xf32>, vector<2x32xf32>, vector<2x32xf32>, vector<2x32xf32>, vector<2x32xf32>, vector<2x32xf32>, vector<2x32xf32>, vector<2x32xf32> -> vector<2x512xf32>
    %c0_18 = arith.constant 0 : index
    %c0_19 = arith.constant 0 : index
    %156 = vector.load %arg5[%c0_18, %c0_19] : memref<512x32xf32, #tpu.memory_space<vmem>>, vector<512x32xf32>
    %cst_20 = arith.constant dense<0.000000e+00> : vector<2x32xf32>
    %157 = tpu.matmul %155, %156, %cst_20 {dimension_numbers = #tpu.dot_dimension_numbers<[1], [0], [0], [1], [0, 0, 1, 1], [], []>} : vector<2x512xf32>, vector<512x32xf32>, vector<2x32xf32> -> vector<2x32xf32>
    %c0_21 = arith.constant 0 : index
    %c0_22 = arith.constant 0 : index
    %158 = vector.load %arg6[%c0_21, %c0_22] : memref<1x32xf32, #tpu.memory_space<vmem>>, vector<1x32xf32>
    %159 = vector.broadcast %158 : vector<1x32xf32> to vector<2x32xf32>
    %160 = arith.addf %157, %159 : vector<2x32xf32>
    %cst_23 = arith.constant 0.000000e+00 : f32
    %161 = vector.broadcast %cst_23 : f32 to vector<2x32xf32>
    %162 = arith.maximumf %160, %161 : vector<2x32xf32>
    %c0_24 = arith.constant 0 : index
    %c0_25 = arith.constant 0 : index
    %163 = vector.load %arg7[%c0_24, %c0_25] : memref<32x4xf32, #tpu.memory_space<vmem>>, vector<32x4xf32>
    %cst_26 = arith.constant dense<0.000000e+00> : vector<2x4xf32>
    %164 = tpu.matmul %162, %163, %cst_26 {dimension_numbers = #tpu.dot_dimension_numbers<[1], [0], [0], [1], [0, 0, 1, 1], [], []>} : vector<2x32xf32>, vector<32x4xf32>, vector<2x4xf32> -> vector<2x4xf32>
    %c0_27 = arith.constant 0 : index
    %c0_28 = arith.constant 0 : index
    %165 = vector.load %arg8[%c0_27, %c0_28] : memref<1x4xf32, #tpu.memory_space<vmem>>, vector<1x4xf32>
    %166 = vector.broadcast %165 : vector<1x4xf32> to vector<2x4xf32>
    %167 = arith.addf %164, %166 : vector<2x4xf32>
    %c0_29 = arith.constant 0 : index
    %c0_30 = arith.constant 0 : index
    %168 = vector.load %arg9[%c0_29, %c0_30] : memref<2x4xf32, #tpu.memory_space<vmem>>, vector<2x4xf32>
    tpu.vector_store %arg9[%c0_29, %c0_30], %167 {strides = array<i32>} : memref<2x4xf32, #tpu.memory_space<vmem>>, vector<2x4xf32>,
    return
  }
}

</mosaic_0001>

<llo_original>
// kernel: pacman_net_forward.1
$region0: #{pacman_net_forward.1}
  #allocation0 [shape = 'u32[]', space=smem, size = 0x4, offset = 0x4, fixed_abs, tag = 'smem constant byte address 0x4 - core index']
  #allocation1 [shape = 'u32[144,128]{1,0:T(1,128)}', space=vmem, size = 0x12000, scoped, tag = 'internal scratch']
  %s0 = inlined_call_operand.vmem [shape: f32[2,16,16,1], index: 0, kind: input, shape index: {}]
  %s1 = inlined_call_operand.vmem [shape: f32[9,16], index: 1, kind: input, shape index: {}]
  %s2 = inlined_call_operand.vmem [shape: f32[1,16], index: 2, kind: input, shape index: {}]
  %s3 = inlined_call_operand.vmem [shape: f32[144,32], index: 3, kind: input, shape index: {}]
  %s4 = inlined_call_operand.vmem [shape: f32[1,32], index: 4, kind: input, shape index: {}]
  %s5 = inlined_call_operand.vmem [shape: f32[512,32], index: 5, kind: input, shape index: {}]
  %s6 = inlined_call_operand.vmem [shape: f32[1,32], index: 6, kind: input, shape index: {}]
  %s7 = inlined_call_operand.vmem [shape: f32[32,4], index: 7, kind: input, shape index: {}]
  %s8 = inlined_call_operand.vmem [shape: f32[1,4], index: 8, kind: input, shape index: {}]
  %s9 = inlined_call_operand.hbm [shape: f32[2,4], index: 9, kind: output, shape index: {}]
  %s10 = sld [smem:[#allocation0]]
  $region46: #{pacman_net_forward.1} parent=0
    _
  %s12 = ssub.s32 1, %s10
  %s13 = scalar_select 0, %s12, %s10
  $region1: #{pacman_net_forward.1} parent=0
    #allocation2 [shape = 'u8[1024]{0}', space=vmem, size = 0x400, scoped, tag = 'output window, operand 0, single buffered']
    #allocation3 [shape = 's32[1]{0}', space=sflag, size = 0x4, scoped, tag = 'scoped memory for pacman_net_forward.1']
    %14 = vsyncpa [#allocation3], 0
    // Predicated region
    $region2: #{pacman_net_forward.1} parent=1 // pred_check
      _
    $region3: #{pacman_net_forward.1} parent=1 // pred_check_branch
      %16 = sbr.rel (0) target = $region5
    $region4: #{pacman_net_forward.1} parent=1 // pred_region
      _
    $region5: #{pacman_net_forward.1} parent=1 // pred_fallthru
      _
    // Predicated region
    $region6: #{pacman_net_forward.1} parent=1 // pred_check
      _
    $region7: #{pacman_net_forward.1} parent=1 // pred_check_branch
      %18 = sbr.rel (0) target = $region9
    $region8: #{pacman_net_forward.1} parent=1 // pred_region
      _
    $region9: #{pacman_net_forward.1} parent=1 // pred_fallthru
      _
    // Predicated region
    $region10: #{pacman_net_forward.1} parent=1 // pred_check
      _
    $region11: #{pacman_net_forward.1} parent=1 // pred_check_branch
      %20 = sbr.rel (0) target = $region13
    $region12: #{pacman_net_forward.1} parent=1 // pred_region
      _
    $region13: #{pacman_net_forward.1} parent=1 // pred_fallthru
      _
    // Predicated region
    $region14: #{pacman_net_forward.1} parent=1 // pred_check
      _
    $region15: #{pacman_net_forward.1} parent=1 // pred_check_branch
      %22 = sbr.rel (0) target = $region17
    $region16: #{pacman_net_forward.1} parent=1 // pred_region
      _
    $region17: #{pacman_net_forward.1} parent=1 // pred_fallthru
      _
    // Predicated region
    $region18: #{pacman_net_forward.1} parent=1 // pred_check
      _
    $region19: #{pacman_net_forward.1} parent=1 // pred_check_branch
      %24 = sbr.rel (0) target = $region21
    $region20: #{pacman_net_forward.1} parent=1 // pred_region
      _
    $region21: #{pacman_net_forward.1} parent=1 // pred_fallthru
      _
    // Predicated region
    $region22: #{pacman_net_forward.1} parent=1 // pred_check
      _
    $region23: #{pacman_net_forward.1} parent=1 // pred_check_branch
      %26 = sbr.rel (0) target = $region25
    $region24: #{pacman_net_forward.1} parent=1 // pred_region
      _
    $region25: #{pacman_net_forward.1} parent=1 // pred_fallthru
      _
    // Predicated region
    $region26: #{pacman_net_forward.1} parent=1 // pred_check
      _
    $region27: #{pacman_net_forward.1} parent=1 // pred_check_branch
      %28 = sbr.rel (0) target = $region29
    $region28: #{pacman_net_forward.1} parent=1 // pred_region
      _
    $region29: #{pacman_net_forward.1} parent=1 // pred_fallthru
      _
    // Predicated region
    $region30: #{pacman_net_forward.1} parent=1 // pred_check
      _
    $region31: #{pacman_net_forward.1} parent=1 // pred_check_branch
      %30 = sbr.rel (0) target = $region33
    $region32: #{pacman_net_forward.1} parent=1 // pred_region
      _
    $region33: #{pacman_net_forward.1} parent=1 // pred_fallthru
      _
    // Predicated region
    $region34: #{pacman_net_forward.1} parent=1 // pred_check
      _
    $region35: #{pacman_net_forward.1} parent=1 // pred_check_branch
      %32 = sbr.rel (0) target = $region37
    $region36: #{pacman_net_forward.1} parent=1 // pred_region
      _
    $region37: #{pacman_net_forward.1} parent=1 // pred_fallthru
      _
    %v33 = vld [vmem:[%s0] sm:$0xff]
    %v34 = vld [vmem:[%s0 + $0x8] sm:$0xff]
    %v35 = vld [vmem:[%s0 + $0x10] sm:$0xff]
    %v36 = vld [vmem:[%s0 + $0x18] sm:$0xff]
    %v37 = vld [vmem:[%s0 + $0x20] sm:$0xff]
    %v38 = vld [vmem:[%s0 + $0x28] sm:$0xff]
    %v39 = vld [vmem:[%s0 + $0x30] sm:$0xff]
    %v40 = vld [vmem:[%s0 + $0x38] sm:$0xff]
    %v41 = vld [vmem:[%s0 + $0x40] sm:$0xff]
    %v42 = vld [vmem:[%s0 + $0x48] sm:$0xff]
    %v43 = vld [vmem:[%s0 + $0x50] sm:$0xff]
    %v44 = vld [vmem:[%s0 + $0x58] sm:$0xff]
    %v45 = vld [vmem:[%s0 + $0x60] sm:$0xff]
    %v46 = vld [vmem:[%s0 + $0x68] sm:$0xff]
    %v47 = vld [vmem:[%s0 + $0x70] sm:$0xff]
    %v48 = vld [vmem:[%s0 + $0x78] sm:$0xff]
    %v49 = vld [vmem:[%s0 + $0x80] sm:$0xff]
    %v50 = vld [vmem:[%s0 + $0x88] sm:$0xff]
    %v51 = vld [vmem:[%s0 + $0x90] sm:$0xff]
    %v52 = vld [vmem:[%s0 + $0x98] sm:$0xff]
    %v53 = vld [vmem:[%s0 + $0xa0] sm:$0xff]
    %v54 = vld [vmem:[%s0 + $0xa8] sm:$0xff]
    %v55 = vld [vmem:[%s0 + $0xb0] sm:$0xff]
    %v56 = vld [vmem:[%s0 + $0xb8] sm:$0xff]
    %v57 = vld [vmem:[%s0 + $0xc0] sm:$0xff]
    %v58 = vld [vmem:[%s0 + $0xc8] sm:$0xff]
    %v59 = vld [vmem:[%s0 + $0xd0] sm:$0xff]
    %v60 = vld [vmem:[%s0 + $0xd8] sm:$0xff]
    %v61 = vld [vmem:[%s0 + $0xe0] sm:$0xff]
    %v62 = vld [vmem:[%s0 + $0xe8] sm:$0xff]
    %v63 = vld [vmem:[%s0 + $0xf0] sm:$0xff]
    %v64 = vld [vmem:[%s0 + $0xf8] sm:$0xff]
    %v65 = vld [vmem:[%s0 + $0x100] sm:$0xff]
    %v66 = vld [vmem:[%s0 + $0x108] sm:$0xff]
    %v67 = vld [vmem:[%s0 + $0x110] sm:$0xff]
    %v68 = vld [vmem:[%s0 + $0x118] sm:$0xff]
    %v69 = vld [vmem:[%s0 + $0x120] sm:$0xff]
    %v70 = vld [vmem:[%s0 + $0x128] sm:$0xff]
    %v71 = vld [vmem:[%s0 + $0x130] sm:$0xff]
    %v72 = vld [vmem:[%s0 + $0x138] sm:$0xff]
    %v73 = vld [vmem:[%s0 + $0x140] sm:$0xff]
    %v74 = vld [vmem:[%s0 + $0x148] sm:$0xff]
    %v75 = vld [vmem:[%s0 + $0x150] sm:$0xff]
    %v76 = vld [vmem:[%s0 + $0x158] sm:$0xff]
    %v77 = vld [vmem:[%s0 + $0x160] sm:$0xff]
    %v78 = vld [vmem:[%s0 + $0x168] sm:$0xff]
    %v79 = vld [vmem:[%s0 + $0x170] sm:$0xff]
    %v80 = vld [vmem:[%s0 + $0x178] sm:$0xff]
    %v81 = vld [vmem:[%s0 + $0x180] sm:$0xff]
    %v82 = vld [vmem:[%s0 + $0x188] sm:$0xff]
    %v83 = vld [vmem:[%s0 + $0x190] sm:$0xff]
    %v84 = vld [vmem:[%s0 + $0x198] sm:$0xff]
    %v85 = vld [vmem:[%s0 + $0x1a0] sm:$0xff]
    %v86 = vld [vmem:[%s0 + $0x1a8] sm:$0xff]
    %v87 = vld [vmem:[%s0 + $0x1b0] sm:$0xff]
    %v88 = vld [vmem:[%s0 + $0x1b8] sm:$0xff]
    %v89 = vld [vmem:[%s0 + $0x1c0] sm:$0xff]
    %v90 = vld [vmem:[%s0 + $0x1c8] sm:$0xff]
    %v91 = vld [vmem:[%s0 + $0x1d0] sm:$0xff]
    %v92 = vld [vmem:[%s0 + $0x1d8] sm:$0xff]
    %v93 = vld [vmem:[%s0 + $0x1e0] sm:$0xff]
    %v94 = vld [vmem:[%s0 + $0x1e8] sm:$0xff]
    %v95 = vld [vmem:[%s0 + $0x1f0] sm:$0xff]
    %v96 = vld [vmem:[%s0 + $0x1f8] sm:$0xff]
    %vm162 = vcmask 1040384
    %v163 = vrot.slane 0.0, 7
    %v164 = vsel %vm162, %v163, %v163
    %v165 = vrot.slane %v33, 7
    %v166 = vrot.slane %v34, 7
    %v167 = vsel %vm162, %v165, %v166
    %v168 = vrot.slane %v35, 7
    %v169 = vrot.slane %v36, 7
    %v170 = vsel %vm162, %v168, %v169
    %v171 = vrot.slane %v37, 7
    %v172 = vrot.slane %v38, 7
    %v173 = vsel %vm162, %v171, %v172
    %v174 = vrot.slane %v39, 7
    %v175 = vrot.slane %v40, 7
    %v176 = vsel %vm162, %v174, %v175
    %v177 = vrot.slane %v41, 7
    %v178 = vrot.slane %v42, 7
    %v179 = vsel %vm162, %v177, %v178
    %v180 = vrot.slane %v43, 7
    %v181 = vrot.slane %v44, 7
    %v182 = vsel %vm162, %v180, %v181
    %v183 = vrot.slane %v45, 7
    %v184 = vrot.slane %v46, 7
    %v185 = vsel %vm162, %v183, %v184
    %v186 = vrot.slane %v47, 7
    %v187 = vrot.slane %v48, 7
    %v188 = vsel %vm162, %v186, %v187
    %v189 = vrot.slane %v49, 7
    %v190 = vrot.slane %v50, 7
    %v191 = vsel %vm162, %v189, %v190
    %v192 = vrot.slane %v51, 7
    %v193 = vrot.slane %v52, 7
    %v194 = vsel %vm162, %v192, %v193
    %v195 = vrot.slane %v53, 7
    %v196 = vrot.slane %v54, 7
    %v197 = vsel %vm162, %v195, %v196
    %v198 = vrot.slane %v55, 7
    %v199 = vrot.slane %v56, 7
    %v200 = vsel %vm162, %v198, %v199
    %v201 = vrot.slane %v57, 7
    %v202 = vrot.slane %v58, 7
    %v203 = vsel %vm162, %v201, %v202
    %v204 = vrot.slane %v59, 7
    %v205 = vrot.slane %v60, 7
    %v206 = vsel %vm162, %v204, %v205
    %v207 = vrot.slane %v61, 7
    %v208 = vrot.slane %v62, 7
    %v209 = vsel %vm162, %v207, %v208
    %v210 = vrot.slane %v63, 7
    %v211 = vrot.slane %v64, 7
    %v212 = vsel %vm162, %v210, %v211
    %v213 = vrot.slane %v65, 7
    %v214 = vrot.slane %v66, 7
    %v215 = vsel %vm162, %v213, %v214
    %v216 = vrot.slane %v67, 7
    %v217 = vrot.slane %v68, 7
    %v218 = vsel %vm162, %v216, %v217
    %v219 = vrot.slane %v69, 7
    %v220 = vrot.slane %v70, 7
    %v221 = vsel %vm162, %v219, %v220
    %v222 = vrot.slane %v71, 7
    %v223 = vrot.slane %v72, 7
    %v224 = vsel %vm162, %v222, %v223
    %v225 = vrot.slane %v73, 7
    %v226 = vrot.slane %v74, 7
    %v227 = vsel %vm162, %v225, %v226
    %v228 = vrot.slane %v75, 7
    %v229 = vrot.slane %v76, 7
    %v230 = vsel %vm162, %v228, %v229
    %v231 = vrot.slane %v77, 7
    %v232 = vrot.slane %v78, 7
    %v233 = vsel %vm162, %v231, %v232
    %v234 = vrot.slane %v79, 7
    %v235 = vrot.slane %v80, 7
    %v236 = vsel %vm162, %v234, %v235
    %v237 = vrot.slane %v81, 7
    %v238 = vrot.slane %v82, 7
    %v239 = vsel %vm162, %v237, %v238
    %v240 = vrot.slane %v83, 7
    %v241 = vrot.slane %v84, 7
    %v242 = vsel %vm162, %v240, %v241
    %v243 = vrot.slane %v85, 7
    %v244 = vrot.slane %v86, 7
    %v245 = vsel %vm162, %v243, %v244
    %v246 = vrot.slane %v87, 7
    %v247 = vrot.slane %v88, 7
    %v248 = vsel %vm162, %v246, %v247
    %v249 = vrot.slane %v89, 7
    %v250 = vrot.slane %v90, 7
    %v251 = vsel %vm162, %v249, %v250
    %v252 = vrot.slane %v91, 7
    %v253 = vrot.slane %v92, 7
    %v254 = vsel %vm162, %v252, %v253
    %v255 = vrot.slane %v93, 7
    %v256 = vrot.slane %v94, 7
    %v257 = vsel %vm162, %v255, %v256
    %v258 = vrot.slane %v95, 7
    %v259 = vrot.slane %v96, 7
    %v260 = vsel %vm162, %v258, %v259
    %v326 = vsel %vm162, 0.0, %v163
    %v327 = vsel %vm162, 0.0, %v165
    %v328 = vsel %vm162, 0.0, %v168
    %v329 = vsel %vm162, 0.0, %v171
    %v330 = vsel %vm162, 0.0, %v174
    %v331 = vsel %vm162, 0.0, %v177
    %v332 = vsel %vm162, 0.0, %v180
    %v333 = vsel %vm162, 0.0, %v183
    %v334 = vsel %vm162, 0.0, %v186
    %v335 = vsel %vm162, 0.0, %v189
    %v336 = vsel %vm162, 0.0, %v192
    %v337 = vsel %vm162, 0.0, %v195
    %v338 = vsel %vm162, 0.0, %v198
    %v339 = vsel %vm162, 0.0, %v201
    %v340 = vsel %vm162, 0.0, %v204
    %v341 = vsel %vm162, 0.0, %v207
    %v342 = vsel %vm162, 0.0, %v210
    %v343 = vsel %vm162, 0.0, %v213
    %v344 = vsel %vm162, 0.0, %v216
    %v345 = vsel %vm162, 0.0, %v219
    %v346 = vsel %vm162, 0.0, %v222
    %v347 = vsel %vm162, 0.0, %v225
    %v348 = vsel %vm162, 0.0, %v228
    %v349 = vsel %vm162, 0.0, %v231
    %v350 = vsel %vm162, 0.0, %v234
    %v351 = vsel %vm162, 0.0, %v237
    %v352 = vsel %vm162, 0.0, %v240
    %v353 = vsel %vm162, 0.0, %v243
    %v354 = vsel %vm162, 0.0, %v246
    %v355 = vsel %vm162, 0.0, %v249
    %v356 = vsel %vm162, 0.0, %v252
    %v357 = vsel %vm162, 0.0, %v255
    %v358 = vsel %vm162, 0.0, %v258
    %v359 = vsel %vm162, %v163, 0.0
    %v360 = vsel %vm162, %v166, 0.0
    %v361 = vsel %vm162, %v169, 0.0
    %v362 = vsel %vm162, %v172, 0.0
    %v363 = vsel %vm162, %v175, 0.0
    %v364 = vsel %vm162, %v178, 0.0
    %v365 = vsel %vm162, %v181, 0.0
    %v366 = vsel %vm162, %v184, 0.0
    %v367 = vsel %vm162, %v187, 0.0
    %v368 = vsel %vm162, %v190, 0.0
    %v369 = vsel %vm162, %v193, 0.0
    %v370 = vsel %vm162, %v196, 0.0
    %v371 = vsel %vm162, %v199, 0.0
    %v372 = vsel %vm162, %v202, 0.0
    %v373 = vsel %vm162, %v205, 0.0
    %v374 = vsel %vm162, %v208, 0.0
    %v375 = vsel %vm162, %v211, 0.0
    %v376 = vsel %vm162, %v214, 0.0
    %v377 = vsel %vm162, %v217, 0.0
    %v378 = vsel %vm162, %v220, 0.0
    %v379 = vsel %vm162, %v223, 0.0
    %v380 = vsel %vm162, %v226, 0.0
    %v381 = vsel %vm162, %v229, 0.0
    %v382 = vsel %vm162, %v232, 0.0
    %v383 = vsel %vm162, %v235, 0.0
    %v384 = vsel %vm162, %v238, 0.0
    %v385 = vsel %vm162, %v241, 0.0
    %v386 = vsel %vm162, %v244, 0.0
    %v387 = vsel %vm162, %v247, 0.0
    %v388 = vsel %vm162, %v250, 0.0
    %v389 = vsel %vm162, %v253, 0.0
    %v390 = vsel %vm162, %v256, 0.0
    %v391 = vsel %vm162, %v259, 0.0
    %v392 = vld [vmem:[%s1] sm:$0xff]
    %v393 = vld [vmem:[%s1 + $0x8] sm:$0x1]
    %395 = vset.pattern.permute.xlu0 0
    %396 = vperm.xlu0 %395, %v326
    %v397 = vpop.permute.xlu0 %396
    %399 = vset.pattern.permute.xlu0 0
    %400 = vperm.xlu0 %399, %v164
    %v401 = vpop.permute.xlu0 %400
    %404 = vset.pattern.permute.xlu0 0
    %405 = vperm.xlu0 %404, %v327
    %v406 = vpop.permute.xlu0 %405
    %408 = vset.pattern.permute.xlu0 0
    %409 = vperm.xlu0 %408, %v167
    %v410 = vpop.permute.xlu0 %409
    %413 = vset.pattern.permute.xlu0 0
    %414 = vperm.xlu0 %413, %v328
    %v415 = vpop.permute.xlu0 %414
    %417 = vset.pattern.permute.xlu0 0
    %418 = vperm.xlu0 %417, %v170
    %v419 = vpop.permute.xlu0 %418
    %422 = vset.pattern.permute.xlu0 0
    %423 = vperm.xlu0 %422, %v329
    %v424 = vpop.permute.xlu0 %423
    %426 = vset.pattern.permute.xlu0 0
    %427 = vperm.xlu0 %426, %v173
    %v428 = vpop.permute.xlu0 %427
    %431 = vset.pattern.permute.xlu0 0
    %432 = vperm.xlu0 %431, %v330
    %v433 = vpop.permute.xlu0 %432
    %435 = vset.pattern.permute.xlu0 0
    %436 = vperm.xlu0 %435, %v176
    %v437 = vpop.permute.xlu0 %436
    %440 = vset.pattern.permute.xlu0 0
    %441 = vperm.xlu0 %440, %v331
    %v442 = vpop.permute.xlu0 %441
    %444 = vset.pattern.permute.xlu0 0
    %445 = vperm.xlu0 %444, %v179
    %v446 = vpop.permute.xlu0 %445
    %449 = vset.pattern.permute.xlu0 0
    %450 = vperm.xlu0 %449, %v332
    %v451 = vpop.permute.xlu0 %450
    %453 = vset.pattern.permute.xlu0 0
    %454 = vperm.xlu0 %453, %v182
    %v455 = vpop.permute.xlu0 %454
    %458 = vset.pattern.permute.xlu0 0
    %459 = vperm.xlu0 %458, %v333
    %v460 = vpop.permute.xlu0 %459
    %462 = vset.pattern.permute.xlu0 0
    %463 = vperm.xlu0 %462, %v185
    %v464 = vpop.permute.xlu0 %463
    %467 = vset.pattern.permute.xlu0 0
    %468 = vperm.xlu0 %467, %v334
    %v469 = vpop.permute.xlu0 %468
    %471 = vset.pattern.permute.xlu0 0
    %472 = vperm.xlu0 %471, %v188
    %v473 = vpop.permute.xlu0 %472
    %476 = vset.pattern.permute.xlu0 0
    %477 = vperm.xlu0 %476, %v335
    %v478 = vpop.permute.xlu0 %477
    %480 = vset.pattern.permute.xlu0 0
    %481 = vperm.xlu0 %480, %v191
    %v482 = vpop.permute.xlu0 %481
    %485 = vset.pattern.permute.xlu0 0
    %486 = vperm.xlu0 %485, %v336
    %v487 = vpop.permute.xlu0 %486
    %489 = vset.pattern.permute.xlu0 0
    %490 = vperm.xlu0 %489, %v194
    %v491 = vpop.permute.xlu0 %490
    %494 = vset.pattern.permute.xlu0 0
    %495 = vperm.xlu0 %494, %v337
    %v496 = vpop.permute.xlu0 %495
    %498 = vset.pattern.permute.xlu0 0
    %499 = vperm.xlu0 %498, %v197
    %v500 = vpop.permute.xlu0 %499
    %503 = vset.pattern.permute.xlu0 0
    %504 = vperm.xlu0 %503, %v338
    %v505 = vpop.permute.xlu0 %504
    %507 = vset.pattern.permute.xlu0 0
    %508 = vperm.xlu0 %507, %v200
    %v509 = vpop.permute.xlu0 %508
    %512 = vset.pattern.permute.xlu0 0
    %513 = vperm.xlu0 %512, %v339
    %v514 = vpop.permute.xlu0 %513
    %516 = vset.pattern.permute.xlu0 0
    %517 = vperm.xlu0 %516, %v203
    %v518 = vpop.permute.xlu0 %517
    %521 = vset.pattern.permute.xlu0 0
    %522 = vperm.xlu0 %521, %v340
    %v523 = vpop.permute.xlu0 %522
    %525 = vset.pattern.permute.xlu0 0
    %526 = vperm.xlu0 %525, %v206
    %v527 = vpop.permute.xlu0 %526
    %530 = vset.pattern.permute.xlu0 0
    %531 = vperm.xlu0 %530, %v341
    %v532 = vpop.permute.xlu0 %531
    %534 = vset.pattern.permute.xlu0 0
    %535 = vperm.xlu0 %534, %v209
    %v536 = vpop.permute.xlu0 %535
    %539 = vset.pattern.permute.xlu0 0
    %540 = vperm.xlu0 %539, %v343
    %v541 = vpop.permute.xlu0 %540
    %543 = vset.pattern.permute.xlu0 0
    %544 = vperm.xlu0 %543, %v215
    %v545 = vpop.permute.xlu0 %544
    %548 = vset.pattern.permute.xlu0 0
    %549 = vperm.xlu0 %548, %v344
    %v550 = vpop.permute.xlu0 %549
    %552 = vset.pattern.permute.xlu0 0
    %553 = vperm.xlu0 %552, %v218
    %v554 = vpop.permute.xlu0 %553
    %557 = vset.pattern.permute.xlu0 0
    %558 = vperm.xlu0 %557, %v345
    %v559 = vpop.permute.xlu0 %558
    %561 = vset.pattern.permute.xlu0 0
    %562 = vperm.xlu0 %561, %v221
    %v563 = vpop.permute.xlu0 %562
    %566 = vset.pattern.permute.xlu0 0
    %567 = vperm.xlu0 %566, %v346
    %v568 = vpop.permute.xlu0 %567
    %570 = vset.pattern.permute.xlu0 0
    %571 = vperm.xlu0 %570, %v224
    %v572 = vpop.permute.xlu0 %571
    %575 = vset.pattern.permute.xlu0 0
    %576 = vperm.xlu0 %575, %v347
    %v577 = vpop.permute.xlu0 %576
    %579 = vset.pattern.permute.xlu0 0
    %580 = vperm.xlu0 %579, %v227
    %v581 = vpop.permute.xlu0 %580
    %584 = vset.pattern.permute.xlu0 0
    %585 = vperm.xlu0 %584, %v348
    %v586 = vpop.permute.xlu0 %585
    %588 = vset.pattern.permute.xlu0 0
    %589 = vperm.xlu0 %588, %v230
    %v590 = vpop.permute.xlu0 %589
    %593 = vset.pattern.permute.xlu0 0
    %594 = vperm.xlu0 %593, %v349
    %v595 = vpop.permute.xlu0 %594
    %597 = vset.pattern.permute.xlu0 0
    %598 = vperm.xlu0 %597, %v233
    %v599 = vpop.permute.xlu0 %598
    %602 = vset.pattern.permute.xlu0 0
    %603 = vperm.xlu0 %602, %v350
    %v604 = vpop.permute.xlu0 %603
    %606 = vset.pattern.permute.xlu0 0
    %607 = vperm.xlu0 %606, %v236
    %v608 = vpop.permute.xlu0 %607
    %611 = vset.pattern.permute.xlu0 0
    %612 = vperm.xlu0 %611, %v351
    %v613 = vpop.permute.xlu0 %612
    %615 = vset.pattern.permute.xlu0 0
    %616 = vperm.xlu0 %615, %v239
    %v617 = vpop.permute.xlu0 %616
    %620 = vset.pattern.permute.xlu0 0
    %621 = vperm.xlu0 %620, %v352
    %v622 = vpop.permute.xlu0 %621
    %624 = vset.pattern.permute.xlu0 0
    %625 = vperm.xlu0 %624, %v242
    %v626 = vpop.permute.xlu0 %625
    %629 = vset.pattern.permute.xlu0 0
    %630 = vperm.xlu0 %629, %v353
    %v631 = vpop.permute.xlu0 %630
    %633 = vset.pattern.permute.xlu0 0
    %634 = vperm.xlu0 %633, %v245
    %v635 = vpop.permute.xlu0 %634
    %638 = vset.pattern.permute.xlu0 0
    %639 = vperm.xlu0 %638, %v354
    %v640 = vpop.permute.xlu0 %639
    %642 = vset.pattern.permute.xlu0 0
    %643 = vperm.xlu0 %642, %v248
    %v644 = vpop.permute.xlu0 %643
    %647 = vset.pattern.permute.xlu0 0
    %648 = vperm.xlu0 %647, %v355
    %v649 = vpop.permute.xlu0 %648
    %651 = vset.pattern.permute.xlu0 0
    %652 = vperm.xlu0 %651, %v251
    %v653 = vpop.permute.xlu0 %652
    %656 = vset.pattern.permute.xlu0 0
    %657 = vperm.xlu0 %656, %v356
    %v658 = vpop.permute.xlu0 %657
    %660 = vset.pattern.permute.xlu0 0
    %661 = vperm.xlu0 %660, %v254
    %v662 = vpop.permute.xlu0 %661
    %665 = vset.pattern.permute.xlu0 0
    %666 = vperm.xlu0 %665, %v357
    %v667 = vpop.permute.xlu0 %666
    %669 = vset.pattern.permute.xlu0 0
    %670 = vperm.xlu0 %669, %v257
    %v671 = vpop.permute.xlu0 %670
    %v673 = vlaneseq
    %v674 = vshrl.u32 %v673, 7
    %v675 = vsub.s32 0, %v674
    %v676 = vrot.slane %v392, %v675
    %v677 = vmul.f32 %v397, %v676
    %v678 = vmul.f32 %v401, %v676
    %v679 = vmul.f32 %v406, %v676
    %v680 = vmul.f32 %v410, %v676
    %v681 = vmul.f32 %v415, %v676
    %v682 = vmul.f32 %v419, %v676
    %v683 = vmul.f32 %v424, %v676
    %v684 = vmul.f32 %v428, %v676
    %v685 = vmul.f32 %v433, %v676
    %v686 = vmul.f32 %v437, %v676
    %v687 = vmul.f32 %v442, %v676
    %v688 = vmul.f32 %v446, %v676
    %v689 = vmul.f32 %v451, %v676
    %v690 = vmul.f32 %v455, %v676
    %v691 = vmul.f32 %v460, %v676
    %v692 = vmul.f32 %v464, %v676
    %v693 = vmul.f32 %v469, %v676
    %v694 = vmul.f32 %v473, %v676
    %v695 = vmul.f32 %v478, %v676
    %v696 = vmul.f32 %v482, %v676
    %v697 = vmul.f32 %v487, %v676
    %v698 = vmul.f32 %v491, %v676
    %v699 = vmul.f32 %v496, %v676
    %v700 = vmul.f32 %v500, %v676
    %v701 = vmul.f32 %v505, %v676
    %v702 = vmul.f32 %v509, %v676
    %v703 = vmul.f32 %v514, %v676
    %v704 = vmul.f32 %v518, %v676
    %v705 = vmul.f32 %v523, %v676
    %v706 = vmul.f32 %v527, %v676
    %v707 = vmul.f32 %v532, %v676
    %v708 = vmul.f32 %v536, %v676
    %v709 = vmul.f32 %v541, %v676
    %v710 = vmul.f32 %v545, %v676
    %v711 = vmul.f32 %v550, %v676
    %v712 = vmul.f32 %v554, %v676
    %v713 = vmul.f32 %v559, %v676
    %v714 = vmul.f32 %v563, %v676
    %v715 = vmul.f32 %v568, %v676
    %v716 = vmul.f32 %v572, %v676
    %v717 = vmul.f32 %v577, %v676
    %v718 = vmul.f32 %v581, %v676
    %v719 = vmul.f32 %v586, %v676
    %v720 = vmul.f32 %v590, %v676
    %v721 = vmul.f32 %v595, %v676
    %v722 = vmul.f32 %v599, %v676
    %v723 = vmul.f32 %v604, %v676
    %v724 = vmul.f32 %v608, %v676
    %v725 = vmul.f32 %v613, %v676
    %v726 = vmul.f32 %v617, %v676
    %v727 = vmul.f32 %v622, %v676
    %v728 = vmul.f32 %v626, %v676
    %v729 = vmul.f32 %v631, %v676
    %v730 = vmul.f32 %v635, %v676
    %v731 = vmul.f32 %v640, %v676
    %v732 = vmul.f32 %v644, %v676
    %v733 = vmul.f32 %v649, %v676
    %v734 = vmul.f32 %v653, %v676
    %v735 = vmul.f32 %v658, %v676
    %v736 = vmul.f32 %v662, %v676
    %v737 = vmul.f32 %v667, %v676
    %v738 = vmul.f32 %v671, %v676
    %v739 = vadd.f32 %v677, 0.0
    %v740 = vadd.f32 %v678, 0.0
    %v741 = vadd.f32 %v679, 0.0
    %v742 = vadd.f32 %v680, 0.0
    %v743 = vadd.f32 %v681, 0.0
    %v744 = vadd.f32 %v682, 0.0
    %v745 = vadd.f32 %v683, 0.0
    %v746 = vadd.f32 %v684, 0.0
    %v747 = vadd.f32 %v685, 0.0
    %v748 = vadd.f32 %v686, 0.0
    %v749 = vadd.f32 %v687, 0.0
    %v750 = vadd.f32 %v688, 0.0
    %v751 = vadd.f32 %v689, 0.0
    %v752 = vadd.f32 %v690, 0.0
    %v753 = vadd.f32 %v691, 0.0
    %v754 = vadd.f32 %v692, 0.0
    %v755 = vadd.f32 %v693, 0.0
    %v756 = vadd.f32 %v694, 0.0
    %v757 = vadd.f32 %v695, 0.0
    %v758 = vadd.f32 %v696, 0.0
    %v759 = vadd.f32 %v697, 0.0
    %v760 = vadd.f32 %v698, 0.0
    %v761 = vadd.f32 %v699, 0.0
    %v762 = vadd.f32 %v700, 0.0
    %v763 = vadd.f32 %v701, 0.0
    %v764 = vadd.f32 %v702, 0.0
    %v765 = vadd.f32 %v703, 0.0
    %v766 = vadd.f32 %v704, 0.0
    %v767 = vadd.f32 %v705, 0.0
    %v768 = vadd.f32 %v706, 0.0
    %v769 = vadd.f32 %v707, 0.0
    %v770 = vadd.f32 %v708, 0.0
    %v771 = vadd.f32 %v709, 0.0
    %v772 = vadd.f32 %v710, 0.0
    %v773 = vadd.f32 %v711, 0.0
    %v774 = vadd.f32 %v712, 0.0
    %v775 = vadd.f32 %v713, 0.0
    %v776 = vadd.f32 %v714, 0.0
    %v777 = vadd.f32 %v715, 0.0
    %v778 = vadd.f32 %v716, 0.0
    %v779 = vadd.f32 %v717, 0.0
    %v780 = vadd.f32 %v718, 0.0
    %v781 = vadd.f32 %v719, 0.0
    %v782 = vadd.f32 %v720, 0.0
    %v783 = vadd.f32 %v721, 0.0
    %v784 = vadd.f32 %v722, 0.0
    %v785 = vadd.f32 %v723, 0.0
    %v786 = vadd.f32 %v724, 0.0
    %v787 = vadd.f32 %v725, 0.0
    %v788 = vadd.f32 %v726, 0.0
    %v789 = vadd.f32 %v727, 0.0
    %v790 = vadd.f32 %v728, 0.0
    %v791 = vadd.f32 %v729, 0.0
    %v792 = vadd.f32 %v730, 0.0
    %v793 = vadd.f32 %v731, 0.0
    %v794 = vadd.f32 %v732, 0.0
    %v795 = vadd.f32 %v733, 0.0
    %v796 = vadd.f32 %v734, 0.0
    %v797 = vadd.f32 %v735, 0.0
    %v798 = vadd.f32 %v736, 0.0
    %v799 = vadd.f32 %v737, 0.0
    %v800 = vadd.f32 %v738, 0.0
    %802 = vset.pattern.permute.xlu0 0
    %803 = vperm.xlu0 %802, %v359
    %v804 = vpop.permute.xlu0 %803
    %807 = vset.pattern.permute.xlu0 0
    %808 = vperm.xlu0 %807, %v360
    %v809 = vpop.permute.xlu0 %808
    %812 = vset.pattern.permute.xlu0 0
    %813 = vperm.xlu0 %812, %v361
    %v814 = vpop.permute.xlu0 %813
    %817 = vset.pattern.permute.xlu0 0
    %818 = vperm.xlu0 %817, %v362
    %v819 = vpop.permute.xlu0 %818
    %822 = vset.pattern.permute.xlu0 0
    %823 = vperm.xlu0 %822, %v363
    %v824 = vpop.permute.xlu0 %823
    %827 = vset.pattern.permute.xlu0 0
    %828 = vperm.xlu0 %827, %v364
    %v829 = vpop.permute.xlu0 %828
    %832 = vset.pattern.permute.xlu0 0
    %833 = vperm.xlu0 %832, %v365
    %v834 = vpop.permute.xlu0 %833
    %837 = vset.pattern.permute.xlu0 0
    %838 = vperm.xlu0 %837, %v366
    %v839 = vpop.permute.xlu0 %838
    %842 = vset.pattern.permute.xlu0 0
    %843 = vperm.xlu0 %842, %v367
    %v844 = vpop.permute.xlu0 %843
    %847 = vset.pattern.permute.xlu0 0
    %848 = vperm.xlu0 %847, %v368
    %v849 = vpop.permute.xlu0 %848
    %852 = vset.pattern.permute.xlu0 0
    %853 = vperm.xlu0 %852, %v369
    %v854 = vpop.permute.xlu0 %853
    %857 = vset.pattern.permute.xlu0 0
    %858 = vperm.xlu0 %857, %v370
    %v859 = vpop.permute.xlu0 %858
    %862 = vset.pattern.permute.xlu0 0
    %863 = vperm.xlu0 %862, %v371
    %v864 = vpop.permute.xlu0 %863
    %867 = vset.pattern.permute.xlu0 0
    %868 = vperm.xlu0 %867, %v372
    %v869 = vpop.permute.xlu0 %868
    %872 = vset.pattern.permute.xlu0 0
    %873 = vperm.xlu0 %872, %v373
    %v874 = vpop.permute.xlu0 %873
    %877 = vset.pattern.permute.xlu0 0
    %878 = vperm.xlu0 %877, %v374
    %v879 = vpop.permute.xlu0 %878
    %882 = vset.pattern.permute.xlu0 0
    %883 = vperm.xlu0 %882, %v376
    %v884 = vpop.permute.xlu0 %883
    %887 = vset.pattern.permute.xlu0 0
    %888 = vperm.xlu0 %887, %v377
    %v889 = vpop.permute.xlu0 %888
    %892 = vset.pattern.permute.xlu0 0
    %893 = vperm.xlu0 %892, %v378
    %v894 = vpop.permute.xlu0 %893
    %897 = vset.pattern.permute.xlu0 0
    %898 = vperm.xlu0 %897, %v379
    %v899 = vpop.permute.xlu0 %898
    %902 = vset.pattern.permute.xlu0 0
    %903 = vperm.xlu0 %902, %v380
    %v904 = vpop.permute.xlu0 %903
    %907 = vset.pattern.permute.xlu0 0
    %908 = vperm.xlu0 %907, %v381
    %v909 = vpop.permute.xlu0 %908
    %912 = vset.pattern.permute.xlu0 0
    %913 = vperm.xlu0 %912, %v382
    %v914 = vpop.permute.xlu0 %913
    %917 = vset.pattern.permute.xlu0 0
    %918 = vperm.xlu0 %917, %v383
    %v919 = vpop.permute.xlu0 %918
    %922 = vset.pattern.permute.xlu0 0
    %923 = vperm.xlu0 %922, %v384
    %v924 = vpop.permute.xlu0 %923
    %927 = vset.pattern.permute.xlu0 0
    %928 = vperm.xlu0 %927, %v385
    %v929 = vpop.permute.xlu0 %928
    %932 = vset.pattern.permute.xlu0 0
    %933 = vperm.xlu0 %932, %v386
    %v934 = vpop.permute.xlu0 %933
    %937 = vset.pattern.permute.xlu0 0
    %938 = vperm.xlu0 %937, %v387
    %v939 = vpop.permute.xlu0 %938
    %942 = vset.pattern.permute.xlu0 0
    %943 = vperm.xlu0 %942, %v388
    %v944 = vpop.permute.xlu0 %943
    %947 = vset.pattern.permute.xlu0 0
    %948 = vperm.xlu0 %947, %v389
    %v949 = vpop.permute.xlu0 %948
    %952 = vset.pattern.permute.xlu0 0
    %953 = vperm.xlu0 %952, %v390
    %v954 = vpop.permute.xlu0 %953
    %v956 = vlaneseq
    %v957 = vshrl.u32 %v956, 7
    %v958 = vsub.s32 1, %v957
    %v959 = vrot.slane %v392, %v958
    %v960 = vmul.f32 %v397, %v959
    %v961 = vmul.f32 %v401, %v959
    %v962 = vmul.f32 %v804, %v959
    %v963 = vmul.f32 %v406, %v959
    %v964 = vmul.f32 %v410, %v959
    %v965 = vmul.f32 %v809, %v959
    %v966 = vmul.f32 %v415, %v959
    %v967 = vmul.f32 %v419, %v959
    %v968 = vmul.f32 %v814, %v959
    %v969 = vmul.f32 %v424, %v959
    %v970 = vmul.f32 %v428, %v959
    %v971 = vmul.f32 %v819, %v959
    %v972 = vmul.f32 %v433, %v959
    %v973 = vmul.f32 %v437, %v959
    %v974 = vmul.f32 %v824, %v959
    %v975 = vmul.f32 %v442, %v959
    %v976 = vmul.f32 %v446, %v959
    %v977 = vmul.f32 %v829, %v959
    %v978 = vmul.f32 %v451, %v959
    %v979 = vmul.f32 %v455, %v959
    %v980 = vmul.f32 %v834, %v959
    %v981 = vmul.f32 %v460, %v959
    %v982 = vmul.f32 %v464, %v959
    %v983 = vmul.f32 %v839, %v959
    %v984 = vmul.f32 %v469, %v959
    %v985 = vmul.f32 %v473, %v959
    %v986 = vmul.f32 %v844, %v959
    %v987 = vmul.f32 %v478, %v959
    %v988 = vmul.f32 %v482, %v959
    %v989 = vmul.f32 %v849, %v959
    %v990 = vmul.f32 %v487, %v959
    %v991 = vmul.f32 %v491, %v959
    %v992 = vmul.f32 %v854, %v959
    %v993 = vmul.f32 %v496, %v959
    %v994 = vmul.f32 %v500, %v959
    %v995 = vmul.f32 %v859, %v959
    %v996 = vmul.f32 %v505, %v959
    %v997 = vmul.f32 %v509, %v959
    %v998 = vmul.f32 %v864, %v959
    %v999 = vmul.f32 %v514, %v959
    %v1000 = vmul.f32 %v518, %v959
    %v1001 = vmul.f32 %v869, %v959
    %v1002 = vmul.f32 %v523, %v959
    %v1003 = vmul.f32 %v527, %v959
    %v1004 = vmul.f32 %v874, %v959
    %v1005 = vmul.f32 %v532, %v959
    %v1006 = vmul.f32 %v536, %v959
    %v1007 = vmul.f32 %v879, %v959
    %v1008 = vmul.f32 %v541, %v959
    %v1009 = vmul.f32 %v545, %v959
    %v1010 = vmul.f32 %v884, %v959
    %v1011 = vmul.f32 %v550, %v959
    %v1012 = vmul.f32 %v554, %v959
    %v1013 = vmul.f32 %v889, %v959
    %v1014 = vmul.f32 %v559, %v959
    %v1015 = vmul.f32 %v563, %v959
    %v1016 = vmul.f32 %v894, %v959
    %v1017 = vmul.f32 %v568, %v959
    %v1018 = vmul.f32 %v572, %v959
    %v1019 = vmul.f32 %v899, %v959
    %v1020 = vmul.f32 %v577, %v959
    %v1021 = vmul.f32 %v581, %v959
    %v1022 = vmul.f32 %v904, %v959
    %v1023 = vmul.f32 %v586, %v959
    %v1024 = vmul.f32 %v590, %v959
    %v1025 = vmul.f32 %v909, %v959
    %v1026 = vmul.f32 %v595, %v959
    %v1027 = vmul.f32 %v599, %v959
    %v1028 = vmul.f32 %v914, %v959
    %v1029 = vmul.f32 %v604, %v959
    %v1030 = vmul.f32 %v608, %v959
    %v1031 = vmul.f32 %v919, %v959
    %v1032 = vmul.f32 %v613, %v959
    %v1033 = vmul.f32 %v617, %v959
    %v1034 = vmul.f32 %v924, %v959
    %v1035 = vmul.f32 %v622, %v959
    %v1036 = vmul.f32 %v626, %v959
    %v1037 = vmul.f32 %v929, %v959
    %v1038 = vmul.f32 %v631, %v959
    %v1039 = vmul.f32 %v635, %v959
    %v1040 = vmul.f32 %v934, %v959
    %v1041 = vmul.f32 %v640, %v959
    %v1042 = vmul.f32 %v644, %v959
    %v1043 = vmul.f32 %v939, %v959
    %v1044 = vmul.f32 %v649, %v959
    %v1045 = vmul.f32 %v653, %v959
    %v1046 = vmul.f32 %v944, %v959
    %v1047 = vmul.f32 %v658, %v959
    %v1048 = vmul.f32 %v662, %v959
    %v1049 = vmul.f32 %v949, %v959
    %v1050 = vmul.f32 %v667, %v959
    %v1051 = vmul.f32 %v671, %v959
    %v1052 = vmul.f32 %v954, %v959
    %vm1146 = vcmask 1046528
    %v1147 = vrot.slane %v960, 1
    %v1148 = vrot.slane %v961, 1
    %v1149 = vsel %vm1146, %v1147, %v1148
    %v1150 = vrot.slane %v962, 1
    %v1151 = vsel %vm1146, %v1148, %v1150
    %v1152 = vrot.slane %v963, 1
    %v1153 = vrot.slane %v964, 1
    %v1154 = vsel %vm1146, %v1152, %v1153
    %v1155 = vrot.slane %v965, 1
    %v1156 = vsel %vm1146, %v1153, %v1155
    %v1157 = vrot.slane %v966, 1
    %v1158 = vrot.slane %v967, 1
    %v1159 = vsel %vm1146, %v1157, %v1158
    %v1160 = vrot.slane %v968, 1
    %v1161 = vsel %vm1146, %v1158, %v1160
    %v1162 = vrot.slane %v969, 1
    %v1163 = vrot.slane %v970, 1
    %v1164 = vsel %vm1146, %v1162, %v1163
    %v1165 = vrot.slane %v971, 1
    %v1166 = vsel %vm1146, %v1163, %v1165
    %v1167 = vrot.slane %v972, 1
    %v1168 = vrot.slane %v973, 1
    %v1169 = vsel %vm1146, %v1167, %v1168
    %v1170 = vrot.slane %v974, 1
    %v1171 = vsel %vm1146, %v1168, %v1170
    %v1172 = vrot.slane %v975, 1
    %v1173 = vrot.slane %v976, 1
    %v1174 = vsel %vm1146, %v1172, %v1173
    %v1175 = vrot.slane %v977, 1
    %v1176 = vsel %vm1146, %v1173, %v1175
    %v1177 = vrot.slane %v978, 1
    %v1178 = vrot.slane %v979, 1
    %v1179 = vsel %vm1146, %v1177, %v1178
    %v1180 = vrot.slane %v980, 1
    %v1181 = vsel %vm1146, %v1178, %v1180
    %v1182 = vrot.slane %v981, 1
    %v1183 = vrot.slane %v982, 1
    %v1184 = vsel %vm1146, %v1182, %v1183
    %v1185 = vrot.slane %v983, 1
    %v1186 = vsel %vm1146, %v1183, %v1185
    %v1187 = vrot.slane %v984, 1
    %v1188 = vrot.slane %v985, 1
    %v1189 = vsel %vm1146, %v1187, %v1188
    %v1190 = vrot.slane %v986, 1
    %v1191 = vsel %vm1146, %v1188, %v1190
    %v1192 = vrot.slane %v987, 1
    %v1193 = vrot.slane %v988, 1
    %v1194 = vsel %vm1146, %v1192, %v1193
    %v1195 = vrot.slane %v989, 1
    %v1196 = vsel %vm1146, %v1193, %v1195
    %v1197 = vrot.slane %v990, 1
    %v1198 = vrot.slane %v991, 1
    %v1199 = vsel %vm1146, %v1197, %v1198
    %v1200 = vrot.slane %v992, 1
    %v1201 = vsel %vm1146, %v1198, %v1200
    %v1202 = vrot.slane %v993, 1
    %v1203 = vrot.slane %v994, 1
    %v1204 = vsel %vm1146, %v1202, %v1203
    %v1205 = vrot.slane %v995, 1
    %v1206 = vsel %vm1146, %v1203, %v1205
    %v1207 = vrot.slane %v996, 1
    %v1208 = vrot.slane %v997, 1
    %v1209 = vsel %vm1146, %v1207, %v1208
    %v1210 = vrot.slane %v998, 1
    %v1211 = vsel %vm1146, %v1208, %v1210
    %v1212 = vrot.slane %v999, 1
    %v1213 = vrot.slane %v1000, 1
    %v1214 = vsel %vm1146, %v1212, %v1213
    %v1215 = vrot.slane %v1001, 1
    %v1216 = vsel %vm1146, %v1213, %v1215
    %v1217 = vrot.slane %v1002, 1
    %v1218 = vrot.slane %v1003, 1
    %v1219 = vsel %vm1146, %v1217, %v1218
    %v1220 = vrot.slane %v1004, 1
    %v1221 = vsel %vm1146, %v1218, %v1220
    %v1222 = vrot.slane %v1005, 1
    %v1223 = vrot.slane %v1006, 1
    %v1224 = vsel %vm1146, %v1222, %v1223
    %v1225 = vrot.slane %v1007, 1
    %v1226 = vsel %vm1146, %v1223, %v1225
    %v1227 = vrot.slane %v1008, 1
    %v1228 = vrot.slane %v1009, 1
    %v1229 = vsel %vm1146, %v1227, %v1228
    %v1230 = vrot.slane %v1010, 1
    %v1231 = vsel %vm1146, %v1228, %v1230
    %v1232 = vrot.slane %v1011, 1
    %v1233 = vrot.slane %v1012, 1
    %v1234 = vsel %vm1146, %v1232, %v1233
    %v1235 = vrot.slane %v1013, 1
    %v1236 = vsel %vm1146, %v1233, %v1235
    %v1237 = vrot.slane %v1014, 1
    %v1238 = vrot.slane %v1015, 1
    %v1239 = vsel %vm1146, %v1237, %v1238
    %v1240 = vrot.slane %v1016, 1
    %v1241 = vsel %vm1146, %v1238, %v1240
    %v1242 = vrot.slane %v1017, 1
    %v1243 = vrot.slane %v1018, 1
    %v1244 = vsel %vm1146, %v1242, %v1243
    %v1245 = vrot.slane %v1019, 1
    %v1246 = vsel %vm1146, %v1243, %v1245
    %v1247 = vrot.slane %v1020, 1
    %v1248 = vrot.slane %v1021, 1
    %v1249 = vsel %vm1146, %v1247, %v1248
    %v1250 = vrot.slane %v1022, 1
    %v1251 = vsel %vm1146, %v1248, %v1250
    %v1252 = vrot.slane %v1023, 1
    %v1253 = vrot.slane %v1024, 1
    %v1254 = vsel %vm1146, %v1252, %v1253
    %v1255 = vrot.slane %v1025, 1
    %v1256 = vsel %vm1146, %v1253, %v1255
    %v1257 = vrot.slane %v1026, 1
    %v1258 = vrot.slane %v1027, 1
    %v1259 = vsel %vm1146, %v1257, %v1258
    %v1260 = vrot.slane %v1028, 1
    %v1261 = vsel %vm1146, %v1258, %v1260
    %v1262 = vrot.slane %v1029, 1
    %v1263 = vrot.slane %v1030, 1
    %v1264 = vsel %vm1146, %v1262, %v1263
    %v1265 = vrot.slane %v1031, 1
    %v1266 = vsel %vm1146, %v1263, %v1265
    %v1267 = vrot.slane %v1032, 1
    %v1268 = vrot.slane %v1033, 1
    %v1269 = vsel %vm1146, %v1267, %v1268
    %v1270 = vrot.slane %v1034, 1
    %v1271 = vsel %vm1146, %v1268, %v1270
    %v1272 = vrot.slane %v1035, 1
    %v1273 = vrot.slane %v1036, 1
    %v1274 = vsel %vm1146, %v1272, %v1273
    %v1275 = vrot.slane %v1037, 1
    %v1276 = vsel %vm1146, %v1273, %v1275
    %v1277 = vrot.slane %v1038, 1
    %v1278 = vrot.slane %v1039, 1
    %v1279 = vsel %vm1146, %v1277, %v1278
    %v1280 = vrot.slane %v1040, 1
    %v1281 = vsel %vm1146, %v1278, %v1280
    %v1282 = vrot.slane %v1041, 1
    %v1283 = vrot.slane %v1042, 1
    %v1284 = vsel %vm1146, %v1282, %v1283
    %v1285 = vrot.slane %v1043, 1
    %v1286 = vsel %vm1146, %v1283, %v1285
    %v1287 = vrot.slane %v1044, 1
    %v1288 = vrot.slane %v1045, 1
    %v1289 = vsel %vm1146, %v1287, %v1288
    %v1290 = vrot.slane %v1046, 1
    %v1291 = vsel %vm1146, %v1288, %v1290
    %v1292 = vrot.slane %v1047, 1
    %v1293 = vrot.slane %v1048, 1
    %v1294 = vsel %vm1146, %v1292, %v1293
    %v1295 = vrot.slane %v1049, 1
    %v1296 = vsel %vm1146, %v1293, %v1295
    %v1297 = vrot.slane %v1050, 1
    %v1298 = vrot.slane %v1051, 1
    %v1299 = vsel %vm1146, %v1297, %v1298
    %v1300 = vrot.slane %v1052, 1
    %v1301 = vsel %vm1146, %v1298, %v1300
    %v1364 = vadd.f32 %v739, %v1149
    %v1365 = vadd.f32 %v740, %v1151
    %v1366 = vadd.f32 %v741, %v1154
    %v1367 = vadd.f32 %v742, %v1156
    %v1368 = vadd.f32 %v743, %v1159
    %v1369 = vadd.f32 %v744, %v1161
    %v1370 = vadd.f32 %v745, %v1164
    %v1371 = vadd.f32 %v746, %v1166
    %v1372 = vadd.f32 %v747, %v1169
    %v1373 = vadd.f32 %v748, %v1171
    %v1374 = vadd.f32 %v749, %v1174
    %v1375 = vadd.f32 %v750, %v1176
    %v1376 = vadd.f32 %v751, %v1179
    %v1377 = vadd.f32 %v752, %v1181
    %v1378 = vadd.f32 %v753, %v1184
    %v1379 = vadd.f32 %v754, %v1186
    %v1380 = vadd.f32 %v755, %v1189
    %v1381 = vadd.f32 %v756, %v1191
    %v1382 = vadd.f32 %v757, %v1194
    %v1383 = vadd.f32 %v758, %v1196
    %v1384 = vadd.f32 %v759, %v1199
    %v1385 = vadd.f32 %v760, %v1201
    %v1386 = vadd.f32 %v761, %v1204
    %v1387 = vadd.f32 %v762, %v1206
    %v1388 = vadd.f32 %v763, %v1209
    %v1389 = vadd.f32 %v764, %v1211
    %v1390 = vadd.f32 %v765, %v1214
    %v1391 = vadd.f32 %v766, %v1216
    %v1392 = vadd.f32 %v767, %v1219
    %v1393 = vadd.f32 %v768, %v1221
    %v1394 = vadd.f32 %v769, %v1224
    %v1395 = vadd.f32 %v770, %v1226
    %v1396 = vadd.f32 %v771, %v1229
    %v1397 = vadd.f32 %v772, %v1231
    %v1398 = vadd.f32 %v773, %v1234
    %v1399 = vadd.f32 %v774, %v1236
    %v1400 = vadd.f32 %v775, %v1239
    %v1401 = vadd.f32 %v776, %v1241
    %v1402 = vadd.f32 %v777, %v1244
    %v1403 = vadd.f32 %v778, %v1246
    %v1404 = vadd.f32 %v779, %v1249
    %v1405 = vadd.f32 %v780, %v1251
    %v1406 = vadd.f32 %v781, %v1254
    %v1407 = vadd.f32 %v782, %v1256
    %v1408 = vadd.f32 %v783, %v1259
    %v1409 = vadd.f32 %v784, %v1261
    %v1410 = vadd.f32 %v785, %v1264
    %v1411 = vadd.f32 %v786, %v1266
    %v1412 = vadd.f32 %v787, %v1269
    %v1413 = vadd.f32 %v788, %v1271
    %v1414 = vadd.f32 %v789, %v1274
    %v1415 = vadd.f32 %v790, %v1276
    %v1416 = vadd.f32 %v791, %v1279
    %v1417 = vadd.f32 %v792, %v1281
    %v1418 = vadd.f32 %v793, %v1284
    %v1419 = vadd.f32 %v794, %v1286
    %v1420 = vadd.f32 %v795, %v1289
    %v1421 = vadd.f32 %v796, %v1291
    %v1422 = vadd.f32 %v797, %v1294
    %v1423 = vadd.f32 %v798, %v1296
    %v1424 = vadd.f32 %v799, %v1299
    %v1425 = vadd.f32 %v800, %v1301
    %v1426 = vlaneseq
    %v1427 = vshrl.u32 %v1426, 7
    %v1428 = vsub.s32 2, %v1427
    %v1429 = vrot.slane %v392, %v1428
    %v1430 = vmul.f32 %v397, %v1429
    %v1431 = vmul.f32 %v401, %v1429
    %v1432 = vmul.f32 %v804, %v1429
    %v1433 = vmul.f32 %v406, %v1429
    %v1434 = vmul.f32 %v410, %v1429
    %v1435 = vmul.f32 %v809, %v1429
    %v1436 = vmul.f32 %v415, %v1429
    %v1437 = vmul.f32 %v419, %v1429
    %v1438 = vmul.f32 %v814, %v1429
    %v1439 = vmul.f32 %v424, %v1429
    %v1440 = vmul.f32 %v428, %v1429
    %v1441 = vmul.f32 %v819, %v1429
    %v1442 = vmul.f32 %v433, %v1429
    %v1443 = vmul.f32 %v437, %v1429
    %v1444 = vmul.f32 %v824, %v1429
    %v1445 = vmul.f32 %v442, %v1429
    %v1446 = vmul.f32 %v446, %v1429
    %v1447 = vmul.f32 %v829, %v1429
    %v1448 = vmul.f32 %v451, %v1429
    %v1449 = vmul.f32 %v455, %v1429
    %v1450 = vmul.f32 %v834, %v1429
    %v1451 = vmul.f32 %v460, %v1429
    %v1452 = vmul.f32 %v464, %v1429
    %v1453 = vmul.f32 %v839, %v1429
    %v1454 = vmul.f32 %v469, %v1429
    %v1455 = vmul.f32 %v473, %v1429
    %v1456 = vmul.f32 %v844, %v1429
    %v1457 = vmul.f32 %v478, %v1429
    %v1458 = vmul.f32 %v482, %v1429
    %v1459 = vmul.f32 %v849, %v1429
    %v1460 = vmul.f32 %v487, %v1429
    %v1461 = vmul.f32 %v491, %v1429
    %v1462 = vmul.f32 %v854, %v1429
    %v1463 = vmul.f32 %v496, %v1429
    %v1464 = vmul.f32 %v500, %v1429
    %v1465 = vmul.f32 %v859, %v1429
    %v1466 = vmul.f32 %v505, %v1429
    %v1467 = vmul.f32 %v509, %v1429
    %v1468 = vmul.f32 %v864, %v1429
    %v1469 = vmul.f32 %v514, %v1429
    %v1470 = vmul.f32 %v518, %v1429
    %v1471 = vmul.f32 %v869, %v1429
    %v1472 = vmul.f32 %v523, %v1429
    %v1473 = vmul.f32 %v527, %v1429
    %v1474 = vmul.f32 %v874, %v1429
    %v1475 = vmul.f32 %v532, %v1429
    %v1476 = vmul.f32 %v536, %v1429
    %v1477 = vmul.f32 %v879, %v1429
    %v1478 = vmul.f32 %v541, %v1429
    %v1479 = vmul.f32 %v545, %v1429
    %v1480 = vmul.f32 %v884, %v1429
    %v1481 = vmul.f32 %v550, %v1429
    %v1482 = vmul.f32 %v554, %v1429
    %v1483 = vmul.f32 %v889, %v1429
    %v1484 = vmul.f32 %v559, %v1429
    %v1485 = vmul.f32 %v563, %v1429
    %v1486 = vmul.f32 %v894, %v1429
    %v1487 = vmul.f32 %v568, %v1429
    %v1488 = vmul.f32 %v572, %v1429
    %v1489 = vmul.f32 %v899, %v1429
    %v1490 = vmul.f32 %v577, %v1429
    %v1491 = vmul.f32 %v581, %v1429
    %v1492 = vmul.f32 %v904, %v1429
    %v1493 = vmul.f32 %v586, %v1429
    %v1494 = vmul.f32 %v590, %v1429
    %v1495 = vmul.f32 %v909, %v1429
    %v1496 = vmul.f32 %v595, %v1429
    %v1497 = vmul.f32 %v599, %v1429
    %v1498 = vmul.f32 %v914, %v1429
    %v1499 = vmul.f32 %v604, %v1429
    %v1500 = vmul.f32 %v608, %v1429
    %v1501 = vmul.f32 %v919, %v1429
    %v1502 = vmul.f32 %v613, %v1429
    %v1503 = vmul.f32 %v617, %v1429
    %v1504 = vmul.f32 %v924, %v1429
    %v1505 = vmul.f32 %v622, %v1429
    %v1506 = vmul.f32 %v626, %v1429
    %v1507 = vmul.f32 %v929, %v1429
    %v1508 = vmul.f32 %v631, %v1429
    %v1509 = vmul.f32 %v635, %v1429
    %v1510 = vmul.f32 %v934, %v1429
    %v1511 = vmul.f32 %v640, %v1429
    %v1512 = vmul.f32 %v644, %v1429
    %v1513 = vmul.f32 %v939, %v1429
    %v1514 = vmul.f32 %v649, %v1429
    %v1515 = vmul.f32 %v653, %v1429
    %v1516 = vmul.f32 %v944, %v1429
    %v1517 = vmul.f32 %v658, %v1429
    %v1518 = vmul.f32 %v662, %v1429
    %v1519 = vmul.f32 %v949, %v1429
    %v1520 = vmul.f32 %v667, %v1429
    %v1521 = vmul.f32 %v671, %v1429
    %v1522 = vmul.f32 %v954, %v1429
    %vm1616 = vcmask 1045504
    %v1617 = vrot.slane %v1430, 2
    %v1618 = vrot.slane %v1431, 2
    %v1619 = vsel %vm1616, %v1617, %v1618
    %v1620 = vrot.slane %v1432, 2
    %v1621 = vsel %vm1616, %v1618, %v1620
    %v1622 = vrot.slane %v1433, 2
    %v1623 = vrot.slane %v1434, 2
    %v1624 = vsel %vm1616, %v1622, %v1623
    %v1625 = vrot.slane %v1435, 2
    %v1626 = vsel %vm1616, %v1623, %v1625
    %v1627 = vrot.slane %v1436, 2
    %v1628 = vrot.slane %v1437, 2
    %v1629 = vsel %vm1616, %v1627, %v1628
    %v1630 = vrot.slane %v1438, 2
    %v1631 = vsel %vm1616, %v1628, %v1630
    %v1632 = vrot.slane %v1439, 2
    %v1633 = vrot.slane %v1440, 2
    %v1634 = vsel %vm1616, %v1632, %v1633
    %v1635 = vrot.slane %v1441, 2
    %v1636 = vsel %vm1616, %v1633, %v1635
    %v1637 = vrot.slane %v1442, 2
    %v1638 = vrot.slane %v1443, 2
    %v1639 = vsel %vm1616, %v1637, %v1638
    %v1640 = vrot.slane %v1444, 2
    %v1641 = vsel %vm1616, %v1638, %v1640
    %v1642 = vrot.slane %v1445, 2
    %v1643 = vrot.slane %v1446, 2
    %v1644 = vsel %vm1616, %v1642, %v1643
    %v1645 = vrot.slane %v1447, 2
    %v1646 = vsel %vm1616, %v1643, %v1645
    %v1647 = vrot.slane %v1448, 2
    %v1648 = vrot.slane %v1449, 2
    %v1649 = vsel %vm1616, %v1647, %v1648
    %v1650 = vrot.slane %v1450, 2
    %v1651 = vsel %vm1616, %v1648, %v1650
    %v1652 = vrot.slane %v1451, 2
    %v1653 = vrot.slane %v1452, 2
    %v1654 = vsel %vm1616, %v1652, %v1653
    %v1655 = vrot.slane %v1453, 2
    %v1656 = vsel %vm1616, %v1653, %v1655
    %v1657 = vrot.slane %v1454, 2
    %v1658 = vrot.slane %v1455, 2
    %v1659 = vsel %vm1616, %v1657, %v1658
    %v1660 = vrot.slane %v1456, 2
    %v1661 = vsel %vm1616, %v1658, %v1660
    %v1662 = vrot.slane %v1457, 2
    %v1663 = vrot.slane %v1458, 2
    %v1664 = vsel %vm1616, %v1662, %v1663
    %v1665 = vrot.slane %v1459, 2
    %v1666 = vsel %vm1616, %v1663, %v1665
    %v1667 = vrot.slane %v1460, 2
    %v1668 = vrot.slane %v1461, 2
    %v1669 = vsel %vm1616, %v1667, %v1668
    %v1670 = vrot.slane %v1462, 2
    %v1671 = vsel %vm1616, %v1668, %v1670
    %v1672 = vrot.slane %v1463, 2
    %v1673 = vrot.slane %v1464, 2
    %v1674 = vsel %vm1616, %v1672, %v1673
    %v1675 = vrot.slane %v1465, 2
    %v1676 = vsel %vm1616, %v1673, %v1675
    %v1677 = vrot.slane %v1466, 2
    %v1678 = vrot.slane %v1467, 2
    %v1679 = vsel %vm1616, %v1677, %v1678
    %v1680 = vrot.slane %v1468, 2
    %v1681 = vsel %vm1616, %v1678, %v1680
    %v1682 = vrot.slane %v1469, 2
    %v1683 = vrot.slane %v1470, 2
    %v1684 = vsel %vm1616, %v1682, %v1683
    %v1685 = vrot.slane %v1471, 2
    %v1686 = vsel %vm1616, %v1683, %v1685
    %v1687 = vrot.slane %v1472, 2
    %v1688 = vrot.slane %v1473, 2
    %v1689 = vsel %vm1616, %v1687, %v1688
    %v1690 = vrot.slane %v1474, 2
    %v1691 = vsel %vm1616, %v1688, %v1690
    %v1692 = vrot.slane %v1475, 2
    %v1693 = vrot.slane %v1476, 2
    %v1694 = vsel %vm1616, %v1692, %v1693
    %v1695 = vrot.slane %v1477, 2
    %v1696 = vsel %vm1616, %v1693, %v1695
    %v1697 = vrot.slane %v1478, 2
    %v1698 = vrot.slane %v1479, 2
    %v1699 = vsel %vm1616, %v1697, %v1698
    %v1700 = vrot.slane %v1480, 2
    %v1701 = vsel %vm1616, %v1698, %v1700
    %v1702 = vrot.slane %v1481, 2
    %v1703 = vrot.slane %v1482, 2
    %v1704 = vsel %vm1616, %v1702, %v1703
    %v1705 = vrot.slane %v1483, 2
    %v1706 = vsel %vm1616, %v1703, %v1705
    %v1707 = vrot.slane %v1484, 2
    %v1708 = vrot.slane %v1485, 2
    %v1709 = vsel %vm1616, %v1707, %v1708
    %v1710 = vrot.slane %v1486, 2
    %v1711 = vsel %vm1616, %v1708, %v1710
    %v1712 = vrot.slane %v1487, 2
    %v1713 = vrot.slane %v1488, 2
    %v1714 = vsel %vm1616, %v1712, %v1713
    %v1715 = vrot.slane %v1489, 2
    %v1716 = vsel %vm1616, %v1713, %v1715
    %v1717 = vrot.slane %v1490, 2
    %v1718 = vrot.slane %v1491, 2
    %v1719 = vsel %vm1616, %v1717, %v1718
    %v1720 = vrot.slane %v1492, 2
    %v1721 = vsel %vm1616, %v1718, %v1720
    %v1722 = vrot.slane %v1493, 2
    %v1723 = vrot.slane %v1494, 2
    %v1724 = vsel %vm1616, %v1722, %v1723
    %v1725 = vrot.slane %v1495, 2
    %v1726 = vsel %vm1616, %v1723, %v1725
    %v1727 = vrot.slane %v1496, 2
    %v1728 = vrot.slane %v1497, 2
    %v1729 = vsel %vm1616, %v1727, %v1728
    %v1730 = vrot.slane %v1498, 2
    %v1731 = vsel %vm1616, %v1728, %v1730
    %v1732 = vrot.slane %v1499, 2
    %v1733 = vrot.slane %v1500, 2
    %v1734 = vsel %vm1616, %v1732, %v1733
    %v1735 = vrot.slane %v1501, 2
    %v1736 = vsel %vm1616, %v1733, %v1735
    %v1737 = vrot.slane %v1502, 2
    %v1738 = vrot.slane %v1503, 2
    %v1739 = vsel %vm1616, %v1737, %v1738
    %v1740 = vrot.slane %v1504, 2
    %v1741 = vsel %vm1616, %v1738, %v1740
    %v1742 = vrot.slane %v1505, 2
    %v1743 = vrot.slane %v1506, 2
    %v1744 = vsel %vm1616, %v1742, %v1743
    %v1745 = vrot.slane %v1507, 2
    %v1746 = vsel %vm1616, %v1743, %v1745
    %v1747 = vrot.slane %v1508, 2
    %v1748 = vrot.slane %v1509, 2
    %v1749 = vsel %vm1616, %v1747, %v1748
    %v1750 = vrot.slane %v1510, 2
    %v1751 = vsel %vm1616, %v1748, %v1750
    %v1752 = vrot.slane %v1511, 2
    %v1753 = vrot.slane %v1512, 2
    %v1754 = vsel %vm1616, %v1752, %v1753
    %v1755 = vrot.slane %v1513, 2
    %v1756 = vsel %vm1616, %v1753, %v1755
    %v1757 = vrot.slane %v1514, 2
    %v1758 = vrot.slane %v1515, 2
    %v1759 = vsel %vm1616, %v1757, %v1758
    %v1760 = vrot.slane %v1516, 2
    %v1761 = vsel %vm1616, %v1758, %v1760
    %v1762 = vrot.slane %v1517, 2
    %v1763 = vrot.slane %v1518, 2
    %v1764 = vsel %vm1616, %v1762, %v1763
    %v1765 = vrot.slane %v1519, 2
    %v1766 = vsel %vm1616, %v1763, %v1765
    %v1767 = vrot.slane %v1520, 2
    %v1768 = vrot.slane %v1521, 2
    %v1769 = vsel %vm1616, %v1767, %v1768
    %v1770 = vrot.slane %v1522, 2
    %v1771 = vsel %vm1616, %v1768, %v1770
    %v1834 = vadd.f32 %v1364, %v1619
    %v1835 = vadd.f32 %v1365, %v1621
    %v1836 = vadd.f32 %v1366, %v1624
    %v1837 = vadd.f32 %v1367, %v1626
    %v1838 = vadd.f32 %v1368, %v1629
    %v1839 = vadd.f32 %v1369, %v1631
    %v1840 = vadd.f32 %v1370, %v1634
    %v1841 = vadd.f32 %v1371, %v1636
    %v1842 = vadd.f32 %v1372, %v1639
    %v1843 = vadd.f32 %v1373, %v1641
    %v1844 = vadd.f32 %v1374, %v1644
    %v1845 = vadd.f32 %v1375, %v1646
    %v1846 = vadd.f32 %v1376, %v1649
    %v1847 = vadd.f32 %v1377, %v1651
    %v1848 = vadd.f32 %v1378, %v1654
    %v1849 = vadd.f32 %v1379, %v1656
    %v1850 = vadd.f32 %v1380, %v1659
    %v1851 = vadd.f32 %v1381, %v1661
    %v1852 = vadd.f32 %v1382, %v1664
    %v1853 = vadd.f32 %v1383, %v1666
    %v1854 = vadd.f32 %v1384, %v1669
    %v1855 = vadd.f32 %v1385, %v1671
    %v1856 = vadd.f32 %v1386, %v1674
    %v1857 = vadd.f32 %v1387, %v1676
    %v1858 = vadd.f32 %v1388, %v1679
    %v1859 = vadd.f32 %v1389, %v1681
    %v1860 = vadd.f32 %v1390, %v1684
    %v1861 = vadd.f32 %v1391, %v1686
    %v1862 = vadd.f32 %v1392, %v1689
    %v1863 = vadd.f32 %v1393, %v1691
    %v1864 = vadd.f32 %v1394, %v1694
    %v1865 = vadd.f32 %v1395, %v1696
    %v1866 = vadd.f32 %v1396, %v1699
    %v1867 = vadd.f32 %v1397, %v1701
    %v1868 = vadd.f32 %v1398, %v1704
    %v1869 = vadd.f32 %v1399, %v1706
    %v1870 = vadd.f32 %v1400, %v1709
    %v1871 = vadd.f32 %v1401, %v1711
    %v1872 = vadd.f32 %v1402, %v1714
    %v1873 = vadd.f32 %v1403, %v1716
    %v1874 = vadd.f32 %v1404, %v1719
    %v1875 = vadd.f32 %v1405, %v1721
    %v1876 = vadd.f32 %v1406, %v1724
    %v1877 = vadd.f32 %v1407, %v1726
    %v1878 = vadd.f32 %v1408, %v1729
    %v1879 = vadd.f32 %v1409, %v1731
    %v1880 = vadd.f32 %v1410, %v1734
    %v1881 = vadd.f32 %v1411, %v1736
    %v1882 = vadd.f32 %v1412, %v1739
    %v1883 = vadd.f32 %v1413, %v1741
    %v1884 = vadd.f32 %v1414, %v1744
    %v1885 = vadd.f32 %v1415, %v1746
    %v1886 = vadd.f32 %v1416, %v1749
    %v1887 = vadd.f32 %v1417, %v1751
    %v1888 = vadd.f32 %v1418, %v1754
    %v1889 = vadd.f32 %v1419, %v1756
    %v1890 = vadd.f32 %v1420, %v1759
    %v1891 = vadd.f32 %v1421, %v1761
    %v1892 = vadd.f32 %v1422, %v1764
    %v1893 = vadd.f32 %v1423, %v1766
    %v1894 = vadd.f32 %v1424, %v1769
    %v1895 = vadd.f32 %v1425, %v1771
    %1897 = vset.pattern.permute.xlu0 0
    %1898 = vperm.xlu0 %1897, %v342
    %v1899 = vpop.permute.xlu0 %1898
    %1901 = vset.pattern.permute.xlu0 0
    %1902 = vperm.xlu0 %1901, %v212
    %v1903 = vpop.permute.xlu0 %1902
    %1906 = vset.pattern.permute.xlu0 0
    %1907 = vperm.xlu0 %1906, %v358
    %v1908 = vpop.permute.xlu0 %1907
    %1910 = vset.pattern.permute.xlu0 0
    %1911 = vperm.xlu0 %1910, %v260
    %v1912 = vpop.permute.xlu0 %1911
    %v1914 = vlaneseq
    %v1915 = vshrl.u32 %v1914, 7
    %v1916 = vsub.s32 3, %v1915
    %v1917 = vrot.slane %v392, %v1916
    %v1918 = vmul.f32 %v406, %v1917
    %v1919 = vmul.f32 %v410, %v1917
    %v1920 = vmul.f32 %v415, %v1917
    %v1921 = vmul.f32 %v419, %v1917
    %v1922 = vmul.f32 %v424, %v1917
    %v1923 = vmul.f32 %v428, %v1917
    %v1924 = vmul.f32 %v433, %v1917
    %v1925 = vmul.f32 %v437, %v1917
    %v1926 = vmul.f32 %v442, %v1917
    %v1927 = vmul.f32 %v446, %v1917
    %v1928 = vmul.f32 %v451, %v1917
    %v1929 = vmul.f32 %v455, %v1917
    %v1930 = vmul.f32 %v460, %v1917
    %v1931 = vmul.f32 %v464, %v1917
    %v1932 = vmul.f32 %v469, %v1917
    %v1933 = vmul.f32 %v473, %v1917
    %v1934 = vmul.f32 %v478, %v1917
    %v1935 = vmul.f32 %v482, %v1917
    %v1936 = vmul.f32 %v487, %v1917
    %v1937 = vmul.f32 %v491, %v1917
    %v1938 = vmul.f32 %v496, %v1917
    %v1939 = vmul.f32 %v500, %v1917
    %v1940 = vmul.f32 %v505, %v1917
    %v1941 = vmul.f32 %v509, %v1917
    %v1942 = vmul.f32 %v514, %v1917
    %v1943 = vmul.f32 %v518, %v1917
    %v1944 = vmul.f32 %v523, %v1917
    %v1945 = vmul.f32 %v527, %v1917
    %v1946 = vmul.f32 %v532, %v1917
    %v1947 = vmul.f32 %v536, %v1917
    %v1948 = vmul.f32 %v1899, %v1917
    %v1949 = vmul.f32 %v1903, %v1917
    %v1950 = vmul.f32 %v541, %v1917
    %v1951 = vmul.f32 %v545, %v1917
    %v1952 = vmul.f32 %v550, %v1917
    %v1953 = vmul.f32 %v554, %v1917
    %v1954 = vmul.f32 %v559, %v1917
    %v1955 = vmul.f32 %v563, %v1917
    %v1956 = vmul.f32 %v568, %v1917
    %v1957 = vmul.f32 %v572, %v1917
    %v1958 = vmul.f32 %v577, %v1917
    %v1959 = vmul.f32 %v581, %v1917
    %v1960 = vmul.f32 %v586, %v1917
    %v1961 = vmul.f32 %v590, %v1917
    %v1962 = vmul.f32 %v595, %v1917
    %v1963 = vmul.f32 %v599, %v1917
    %v1964 = vmul.f32 %v604, %v1917
    %v1965 = vmul.f32 %v608, %v1917
    %v1966 = vmul.f32 %v613, %v1917
    %v1967 = vmul.f32 %v617, %v1917
    %v1968 = vmul.f32 %v622, %v1917
    %v1969 = vmul.f32 %v626, %v1917
    %v1970 = vmul.f32 %v631, %v1917
    %v1971 = vmul.f32 %v635, %v1917
    %v1972 = vmul.f32 %v640, %v1917
    %v1973 = vmul.f32 %v644, %v1917
    %v1974 = vmul.f32 %v649, %v1917
    %v1975 = vmul.f32 %v653, %v1917
    %v1976 = vmul.f32 %v658, %v1917
    %v1977 = vmul.f32 %v662, %v1917
    %v1978 = vmul.f32 %v667, %v1917
    %v1979 = vmul.f32 %v671, %v1917
    %v1980 = vmul.f32 %v1908, %v1917
    %v1981 = vmul.f32 %v1912, %v1917
    %v1982 = vadd.f32 %v1834, %v1918
    %v1983 = vadd.f32 %v1835, %v1919
    %v1984 = vadd.f32 %v1836, %v1920
    %v1985 = vadd.f32 %v1837, %v1921
    %v1986 = vadd.f32 %v1838, %v1922
    %v1987 = vadd.f32 %v1839, %v1923
    %v1988 = vadd.f32 %v1840, %v1924
    %v1989 = vadd.f32 %v1841, %v1925
    %v1990 = vadd.f32 %v1842, %v1926
    %v1991 = vadd.f32 %v1843, %v1927
    %v1992 = vadd.f32 %v1844, %v1928
    %v1993 = vadd.f32 %v1845, %v1929
    %v1994 = vadd.f32 %v1846, %v1930
    %v1995 = vadd.f32 %v1847, %v1931
    %v1996 = vadd.f32 %v1848, %v1932
    %v1997 = vadd.f32 %v1849, %v1933
    %v1998 = vadd.f32 %v1850, %v1934
    %v1999 = vadd.f32 %v1851, %v1935
    %v2000 = vadd.f32 %v1852, %v1936
    %v2001 = vadd.f32 %v1853, %v1937
    %v2002 = vadd.f32 %v1854, %v1938
    %v2003 = vadd.f32 %v1855, %v1939
    %v2004 = vadd.f32 %v1856, %v1940
    %v2005 = vadd.f32 %v1857, %v1941
    %v2006 = vadd.f32 %v1858, %v1942
    %v2007 = vadd.f32 %v1859, %v1943
    %v2008 = vadd.f32 %v1860, %v1944
    %v2009 = vadd.f32 %v1861, %v1945
    %v2010 = vadd.f32 %v1862, %v1946
    %v2011 = vadd.f32 %v1863, %v1947
    %v2012 = vadd.f32 %v1864, %v1948
    %v2013 = vadd.f32 %v1865, %v1949
    %v2014 = vadd.f32 %v1834, %v1950
    %v2015 = vadd.f32 %v1835, %v1951
    %v2016 = vadd.f32 %v1866, %v1952
    %v2017 = vadd.f32 %v1867, %v1953
    %v2018 = vadd.f32 %v1868, %v1954
    %v2019 = vadd.f32 %v1869, %v1955
    %v2020 = vadd.f32 %v1870, %v1956
    %v2021 = vadd.f32 %v1871, %v1957
    %v2022 = vadd.f32 %v1872, %v1958
    %v2023 = vadd.f32 %v1873, %v1959
    %v2024 = vadd.f32 %v1874, %v1960
    %v2025 = vadd.f32 %v1875, %v1961
    %v2026 = vadd.f32 %v1876, %v1962
    %v2027 = vadd.f32 %v1877, %v1963
    %v2028 = vadd.f32 %v1878, %v1964
    %v2029 = vadd.f32 %v1879, %v1965
    %v2030 = vadd.f32 %v1880, %v1966
    %v2031 = vadd.f32 %v1881, %v1967
    %v2032 = vadd.f32 %v1882, %v1968
    %v2033 = vadd.f32 %v1883, %v1969
    %v2034 = vadd.f32 %v1884, %v1970
    %v2035 = vadd.f32 %v1885, %v1971
    %v2036 = vadd.f32 %v1886, %v1972
    %v2037 = vadd.f32 %v1887, %v1973
    %v2038 = vadd.f32 %v1888, %v1974
    %v2039 = vadd.f32 %v1889, %v1975
    %v2040 = vadd.f32 %v1890, %v1976
    %v2041 = vadd.f32 %v1891, %v1977
    %v2042 = vadd.f32 %v1892, %v1978
    %v2043 = vadd.f32 %v1893, %v1979
    %v2044 = vadd.f32 %v1894, %v1980
    %v2045 = vadd.f32 %v1895, %v1981
    %2047 = vset.pattern.permute.xlu0 0
    %2048 = vperm.xlu0 %2047, %v375
    %v2049 = vpop.permute.xlu0 %2048
    %2052 = vset.pattern.permute.xlu0 0
    %2053 = vperm.xlu0 %2052, %v391
    %v2054 = vpop.permute.xlu0 %2053
    %v2056 = vlaneseq
    %v2057 = vshrl.u32 %v2056, 7
    %v2058 = vsub.s32 4, %v2057
    %v2059 = vrot.slane %v392, %v2058
    %v2060 = vmul.f32 %v406, %v2059
    %v2061 = vmul.f32 %v410, %v2059
    %v2062 = vmul.f32 %v809, %v2059
    %v2063 = vmul.f32 %v415, %v2059
    %v2064 = vmul.f32 %v419, %v2059
    %v2065 = vmul.f32 %v814, %v2059
    %v2066 = vmul.f32 %v424, %v2059
    %v2067 = vmul.f32 %v428, %v2059
    %v2068 = vmul.f32 %v819, %v2059
    %v2069 = vmul.f32 %v433, %v2059
    %v2070 = vmul.f32 %v437, %v2059
    %v2071 = vmul.f32 %v824, %v2059
    %v2072 = vmul.f32 %v442, %v2059
    %v2073 = vmul.f32 %v446, %v2059
    %v2074 = vmul.f32 %v829, %v2059
    %v2075 = vmul.f32 %v451, %v2059
    %v2076 = vmul.f32 %v455, %v2059
    %v2077 = vmul.f32 %v834, %v2059
    %v2078 = vmul.f32 %v460, %v2059
    %v2079 = vmul.f32 %v464, %v2059
    %v2080 = vmul.f32 %v839, %v2059
    %v2081 = vmul.f32 %v469, %v2059
    %v2082 = vmul.f32 %v473, %v2059
    %v2083 = vmul.f32 %v844, %v2059
    %v2084 = vmul.f32 %v478, %v2059
    %v2085 = vmul.f32 %v482, %v2059
    %v2086 = vmul.f32 %v849, %v2059
    %v2087 = vmul.f32 %v487, %v2059
    %v2088 = vmul.f32 %v491, %v2059
    %v2089 = vmul.f32 %v854, %v2059
    %v2090 = vmul.f32 %v496, %v2059
    %v2091 = vmul.f32 %v500, %v2059
    %v2092 = vmul.f32 %v859, %v2059
    %v2093 = vmul.f32 %v505, %v2059
    %v2094 = vmul.f32 %v509, %v2059
    %v2095 = vmul.f32 %v864, %v2059
    %v2096 = vmul.f32 %v514, %v2059
    %v2097 = vmul.f32 %v518, %v2059
    %v2098 = vmul.f32 %v869, %v2059
    %v2099 = vmul.f32 %v523, %v2059
    %v2100 = vmul.f32 %v527, %v2059
    %v2101 = vmul.f32 %v874, %v2059
    %v2102 = vmul.f32 %v532, %v2059
    %v2103 = vmul.f32 %v536, %v2059
    %v2104 = vmul.f32 %v879, %v2059
    %v2105 = vmul.f32 %v1899, %v2059
    %v2106 = vmul.f32 %v1903, %v2059
    %v2107 = vmul.f32 %v2049, %v2059
    %v2108 = vmul.f32 %v541, %v2059
    %v2109 = vmul.f32 %v545, %v2059
    %v2110 = vmul.f32 %v884, %v2059
    %v2111 = vmul.f32 %v550, %v2059
    %v2112 = vmul.f32 %v554, %v2059
    %v2113 = vmul.f32 %v889, %v2059
    %v2114 = vmul.f32 %v559, %v2059
    %v2115 = vmul.f32 %v563, %v2059
    %v2116 = vmul.f32 %v894, %v2059
    %v2117 = vmul.f32 %v568, %v2059
    %v2118 = vmul.f32 %v572, %v2059
    %v2119 = vmul.f32 %v899, %v2059
    %v2120 = vmul.f32 %v577, %v2059
    %v2121 = vmul.f32 %v581, %v2059
    %v2122 = vmul.f32 %v904, %v2059
    %v2123 = vmul.f32 %v586, %v2059
    %v2124 = vmul.f32 %v590, %v2059
    %v2125 = vmul.f32 %v909, %v2059
    %v2126 = vmul.f32 %v595, %v2059
    %v2127 = vmul.f32 %v599, %v2059
    %v2128 = vmul.f32 %v914, %v2059
    %v2129 = vmul.f32 %v604, %v2059
    %v2130 = vmul.f32 %v608, %v2059
    %v2131 = vmul.f32 %v919, %v2059
    %v2132 = vmul.f32 %v613, %v2059
    %v2133 = vmul.f32 %v617, %v2059
    %v2134 = vmul.f32 %v924, %v2059
    %v2135 = vmul.f32 %v622, %v2059
    %v2136 = vmul.f32 %v626, %v2059
    %v2137 = vmul.f32 %v929, %v2059
    %v2138 = vmul.f32 %v631, %v2059
    %v2139 = vmul.f32 %v635, %v2059
    %v2140 = vmul.f32 %v934, %v2059
    %v2141 = vmul.f32 %v640, %v2059
    %v2142 = vmul.f32 %v644, %v2059
    %v2143 = vmul.f32 %v939, %v2059
    %v2144 = vmul.f32 %v649, %v2059
    %v2145 = vmul.f32 %v653, %v2059
    %v2146 = vmul.f32 %v944, %v2059
    %v2147 = vmul.f32 %v658, %v2059
    %v2148 = vmul.f32 %v662, %v2059
    %v2149 = vmul.f32 %v949, %v2059
    %v2150 = vmul.f32 %v667, %v2059
    %v2151 = vmul.f32 %v671, %v2059
    %v2152 = vmul.f32 %v954, %v2059
    %v2153 = vmul.f32 %v1908, %v2059
    %v2154 = vmul.f32 %v1912, %v2059
    %v2155 = vmul.f32 %v2054, %v2059
    %v2252 = vrot.slane %v2060, 1
    %v2253 = vrot.slane %v2061, 1
    %v2254 = vsel %vm1146, %v2252, %v2253
    %v2255 = vrot.slane %v2062, 1
    %v2256 = vsel %vm1146, %v2253, %v2255
    %v2257 = vrot.slane %v2063, 1
    %v2258 = vrot.slane %v2064, 1
    %v2259 = vsel %vm1146, %v2257, %v2258
    %v2260 = vrot.slane %v2065, 1
    %v2261 = vsel %vm1146, %v2258, %v2260
    %v2262 = vrot.slane %v2066, 1
    %v2263 = vrot.slane %v2067, 1
    %v2264 = vsel %vm1146, %v2262, %v2263
    %v2265 = vrot.slane %v2068, 1
    %v2266 = vsel %vm1146, %v2263, %v2265
    %v2267 = vrot.slane %v2069, 1
    %v2268 = vrot.slane %v2070, 1
    %v2269 = vsel %vm1146, %v2267, %v2268
    %v2270 = vrot.slane %v2071, 1
    %v2271 = vsel %vm1146, %v2268, %v2270
    %v2272 = vrot.slane %v2072, 1
    %v2273 = vrot.slane %v2073, 1
    %v2274 = vsel %vm1146, %v2272, %v2273
    %v2275 = vrot.slane %v2074, 1
    %v2276 = vsel %vm1146, %v2273, %v2275
    %v2277 = vrot.slane %v2075, 1
    %v2278 = vrot.slane %v2076, 1
    %v2279 = vsel %vm1146, %v2277, %v2278
    %v2280 = vrot.slane %v2077, 1
    %v2281 = vsel %vm1146, %v2278, %v2280
    %v2282 = vrot.slane %v2078, 1
    %v2283 = vrot.slane %v2079, 1
    %v2284 = vsel %vm1146, %v2282, %v2283
    %v2285 = vrot.slane %v2080, 1
    %v2286 = vsel %vm1146, %v2283, %v2285
    %v2287 = vrot.slane %v2081, 1
    %v2288 = vrot.slane %v2082, 1
    %v2289 = vsel %vm1146, %v2287, %v2288
    %v2290 = vrot.slane %v2083, 1
    %v2291 = vsel %vm1146, %v2288, %v2290
    %v2292 = vrot.slane %v2084, 1
    %v2293 = vrot.slane %v2085, 1
    %v2294 = vsel %vm1146, %v2292, %v2293
    %v2295 = vrot.slane %v2086, 1
    %v2296 = vsel %vm1146, %v2293, %v2295
    %v2297 = vrot.slane %v2087, 1
    %v2298 = vrot.slane %v2088, 1
    %v2299 = vsel %vm1146, %v2297, %v2298
    %v2300 = vrot.slane %v2089, 1
    %v2301 = vsel %vm1146, %v2298, %v2300
    %v2302 = vrot.slane %v2090, 1
    %v2303 = vrot.slane %v2091, 1
    %v2304 = vsel %vm1146, %v2302, %v2303
    %v2305 = vrot.slane %v2092, 1
    %v2306 = vsel %vm1146, %v2303, %v2305
    %v2307 = vrot.slane %v2093, 1
    %v2308 = vrot.slane %v2094, 1
    %v2309 = vsel %vm1146, %v2307, %v2308
    %v2310 = vrot.slane %v2095, 1
    %v2311 = vsel %vm1146, %v2308, %v2310
    %v2312 = vrot.slane %v2096, 1
    %v2313 = vrot.slane %v2097, 1
    %v2314 = vsel %vm1146, %v2312, %v2313
    %v2315 = vrot.slane %v2098, 1
    %v2316 = vsel %vm1146, %v2313, %v2315
    %v2317 = vrot.slane %v2099, 1
    %v2318 = vrot.slane %v2100, 1
    %v2319 = vsel %vm1146, %v2317, %v2318
    %v2320 = vrot.slane %v2101, 1
    %v2321 = vsel %vm1146, %v2318, %v2320
    %v2322 = vrot.slane %v2102, 1
    %v2323 = vrot.slane %v2103, 1
    %v2324 = vsel %vm1146, %v2322, %v2323
    %v2325 = vrot.slane %v2104, 1
    %v2326 = vsel %vm1146, %v2323, %v2325
    %v2327 = vrot.slane %v2105, 1
    %v2328 = vrot.slane %v2106, 1
    %v2329 = vsel %vm1146, %v2327, %v2328
    %v2330 = vrot.slane %v2107, 1
    %v2331 = vsel %vm1146, %v2328, %v2330
    %v2332 = vrot.slane %v2108, 1
    %v2333 = vrot.slane %v2109, 1
    %v2334 = vsel %vm1146, %v2332, %v2333
    %v2335 = vrot.slane %v2110, 1
    %v2336 = vsel %vm1146, %v2333, %v2335
    %v2337 = vrot.slane %v2111, 1
    %v2338 = vrot.slane %v2112, 1
    %v2339 = vsel %vm1146, %v2337, %v2338
    %v2340 = vrot.slane %v2113, 1
    %v2341 = vsel %vm1146, %v2338, %v2340
    %v2342 = vrot.slane %v2114, 1
    %v2343 = vrot.slane %v2115, 1
    %v2344 = vsel %vm1146, %v2342, %v2343
    %v2345 = vrot.slane %v2116, 1
    %v2346 = vsel %vm1146, %v2343, %v2345
    %v2347 = vrot.slane %v2117, 1
    %v2348 = vrot.slane %v2118, 1
    %v2349 = vsel %vm1146, %v2347, %v2348
    %v2350 = vrot.slane %v2119, 1
    %v2351 = vsel %vm1146, %v2348, %v2350
    %v2352 = vrot.slane %v2120, 1
    %v2353 = vrot.slane %v2121, 1
    %v2354 = vsel %vm1146, %v2352, %v2353
    %v2355 = vrot.slane %v2122, 1
    %v2356 = vsel %vm1146, %v2353, %v2355
    %v2357 = vrot.slane %v2123, 1
    %v2358 = vrot.slane %v2124, 1
    %v2359 = vsel %vm1146, %v2357, %v2358
    %v2360 = vrot.slane %v2125, 1
    %v2361 = vsel %vm1146, %v2358, %v2360
    %v2362 = vrot.slane %v2126, 1
    %v2363 = vrot.slane %v2127, 1
    %v2364 = vsel %vm1146, %v2362, %v2363
    %v2365 = vrot.slane %v2128, 1
    %v2366 = vsel %vm1146, %v2363, %v2365
    %v2367 = vrot.slane %v2129, 1
    %v2368 = vrot.slane %v2130, 1
    %v2369 = vsel %vm1146, %v2367, %v2368
    %v2370 = vrot.slane %v2131, 1
    %v2371 = vsel %vm1146, %v2368, %v2370
    %v2372 = vrot.slane %v2132, 1
    %v2373 = vrot.slane %v2133, 1
    %v2374 = vsel %vm1146, %v2372, %v2373
    %v2375 = vrot.slane %v2134, 1
    %v2376 = vsel %vm1146, %v2373, %v2375
    %v2377 = vrot.slane %v2135, 1
    %v2378 = vrot.slane %v2136, 1
    %v2379 = vsel %vm1146, %v2377, %v2378
    %v2380 = vrot.slane %v2137, 1
    %v2381 = vsel %vm1146, %v2378, %v2380
    %v2382 = vrot.slane %v2138, 1
    %v2383 = vrot.slane %v2139, 1
    %v2384 = vsel %vm1146, %v2382, %v2383
    %v2385 = vrot.slane %v2140, 1
    %v2386 = vsel %vm1146, %v2383, %v2385
    %v2387 = vrot.slane %v2141, 1
    %v2388 = vrot.slane %v2142, 1
    %v2389 = vsel %vm1146, %v2387, %v2388
    %v2390 = vrot.slane %v2143, 1
    %v2391 = vsel %vm1146, %v2388, %v2390
    %v2392 = vrot.slane %v2144, 1
    %v2393 = vrot.slane %v2145, 1
    %v2394 = vsel %vm1146, %v2392, %v2393
    %v2395 = vrot.slane %v2146, 1
    %v2396 = vsel %vm1146, %v2393, %v2395
    %v2397 = vrot.slane %v2147, 1
    %v2398 = vrot.slane %v2148, 1
    %v2399 = vsel %vm1146, %v2397, %v2398
    %v2400 = vrot.slane %v2149, 1
    %v2401 = vsel %vm1146, %v2398, %v2400
    %v2402 = vrot.slane %v2150, 1
    %v2403 = vrot.slane %v2151, 1
    %v2404 = vsel %vm1146, %v2402, %v2403
    %v2405 = vrot.slane %v2152, 1
    %v2406 = vsel %vm1146, %v2403, %v2405
    %v2407 = vrot.slane %v2153, 1
    %v2408 = vrot.slane %v2154, 1
    %v2409 = vsel %vm1146, %v2407, %v2408
    %v2410 = vrot.slane %v2155, 1
    %v2411 = vsel %vm1146, %v2408, %v2410
    %v2476 = vadd.f32 %v1982, %v2254
    %v2477 = vadd.f32 %v1983, %v2256
    %v2478 = vadd.f32 %v1984, %v2259
    %v2479 = vadd.f32 %v1985, %v2261
    %v2480 = vadd.f32 %v1986, %v2264
    %v2481 = vadd.f32 %v1987, %v2266
    %v2482 = vadd.f32 %v1988, %v2269
    %v2483 = vadd.f32 %v1989, %v2271
    %v2484 = vadd.f32 %v1990, %v2274
    %v2485 = vadd.f32 %v1991, %v2276
    %v2486 = vadd.f32 %v1992, %v2279
    %v2487 = vadd.f32 %v1993, %v2281
    %v2488 = vadd.f32 %v1994, %v2284
    %v2489 = vadd.f32 %v1995, %v2286
    %v2490 = vadd.f32 %v1996, %v2289
    %v2491 = vadd.f32 %v1997, %v2291
    %v2492 = vadd.f32 %v1998, %v2294
    %v2493 = vadd.f32 %v1999, %v2296
    %v2494 = vadd.f32 %v2000, %v2299
    %v2495 = vadd.f32 %v2001, %v2301
    %v2496 = vadd.f32 %v2002, %v2304
    %v2497 = vadd.f32 %v2003, %v2306
    %v2498 = vadd.f32 %v2004, %v2309
    %v2499 = vadd.f32 %v2005, %v2311
    %v2500 = vadd.f32 %v2006, %v2314
    %v2501 = vadd.f32 %v2007, %v2316
    %v2502 = vadd.f32 %v2008, %v2319
    %v2503 = vadd.f32 %v2009, %v2321
    %v2504 = vadd.f32 %v2010, %v2324
    %v2505 = vadd.f32 %v2011, %v2326
    %v2506 = vadd.f32 %v2012, %v2329
    %v2507 = vadd.f32 %v2013, %v2331
    %v2508 = vadd.f32 %v2014, %v2334
    %v2509 = vadd.f32 %v2015, %v2336
    %v2510 = vadd.f32 %v2016, %v2339
    %v2511 = vadd.f32 %v2017, %v2341
    %v2512 = vadd.f32 %v2018, %v2344
    %v2513 = vadd.f32 %v2019, %v2346
    %v2514 = vadd.f32 %v2020, %v2349
    %v2515 = vadd.f32 %v2021, %v2351
    %v2516 = vadd.f32 %v2022, %v2354
    %v2517 = vadd.f32 %v2023, %v2356
    %v2518 = vadd.f32 %v2024, %v2359
    %v2519 = vadd.f32 %v2025, %v2361
    %v2520 = vadd.f32 %v2026, %v2364
    %v2521 = vadd.f32 %v2027, %v2366
    %v2522 = vadd.f32 %v2028, %v2369
    %v2523 = vadd.f32 %v2029, %v2371
    %v2524 = vadd.f32 %v2030, %v2374
    %v2525 = vadd.f32 %v2031, %v2376
    %v2526 = vadd.f32 %v2032, %v2379
    %v2527 = vadd.f32 %v2033, %v2381
    %v2528 = vadd.f32 %v2034, %v2384
    %v2529 = vadd.f32 %v2035, %v2386
    %v2530 = vadd.f32 %v2036, %v2389
    %v2531 = vadd.f32 %v2037, %v2391
    %v2532 = vadd.f32 %v2038, %v2394
    %v2533 = vadd.f32 %v2039, %v2396
    %v2534 = vadd.f32 %v2040, %v2399
    %v2535 = vadd.f32 %v2041, %v2401
    %v2536 = vadd.f32 %v2042, %v2404
    %v2537 = vadd.f32 %v2043, %v2406
    %v2538 = vadd.f32 %v2044, %v2409
    %v2539 = vadd.f32 %v2045, %v2411
    %v2540 = vlaneseq
    %v2541 = vshrl.u32 %v2540, 7
    %v2542 = vsub.s32 5, %v2541
    %v2543 = vrot.slane %v392, %v2542
    %v2544 = vmul.f32 %v406, %v2543
    %v2545 = vmul.f32 %v410, %v2543
    %v2546 = vmul.f32 %v809, %v2543
    %v2547 = vmul.f32 %v415, %v2543
    %v2548 = vmul.f32 %v419, %v2543
    %v2549 = vmul.f32 %v814, %v2543
    %v2550 = vmul.f32 %v424, %v2543
    %v2551 = vmul.f32 %v428, %v2543
    %v2552 = vmul.f32 %v819, %v2543
    %v2553 = vmul.f32 %v433, %v2543
    %v2554 = vmul.f32 %v437, %v2543
    %v2555 = vmul.f32 %v824, %v2543
    %v2556 = vmul.f32 %v442, %v2543
    %v2557 = vmul.f32 %v446, %v2543
    %v2558 = vmul.f32 %v829, %v2543
    %v2559 = vmul.f32 %v451, %v2543
    %v2560 = vmul.f32 %v455, %v2543
    %v2561 = vmul.f32 %v834, %v2543
    %v2562 = vmul.f32 %v460, %v2543
    %v2563 = vmul.f32 %v464, %v2543
    %v2564 = vmul.f32 %v839, %v2543
    %v2565 = vmul.f32 %v469, %v2543
    %v2566 = vmul.f32 %v473, %v2543
    %v2567 = vmul.f32 %v844, %v2543
    %v2568 = vmul.f32 %v478, %v2543
    %v2569 = vmul.f32 %v482, %v2543
    %v2570 = vmul.f32 %v849, %v2543
    %v2571 = vmul.f32 %v487, %v2543
    %v2572 = vmul.f32 %v491, %v2543
    %v2573 = vmul.f32 %v854, %v2543
    %v2574 = vmul.f32 %v496, %v2543
    %v2575 = vmul.f32 %v500, %v2543
    %v2576 = vmul.f32 %v859, %v2543
    %v2577 = vmul.f32 %v505, %v2543
    %v2578 = vmul.f32 %v509, %v2543
    %v2579 = vmul.f32 %v864, %v2543
    %v2580 = vmul.f32 %v514, %v2543
    %v2581 = vmul.f32 %v518, %v2543
    %v2582 = vmul.f32 %v869, %v2543
    %v2583 = vmul.f32 %v523, %v2543
    %v2584 = vmul.f32 %v527, %v2543
    %v2585 = vmul.f32 %v874, %v2543
    %v2586 = vmul.f32 %v532, %v2543
    %v2587 = vmul.f32 %v536, %v2543
    %v2588 = vmul.f32 %v879, %v2543
    %v2589 = vmul.f32 %v1899, %v2543
    %v2590 = vmul.f32 %v1903, %v2543
    %v2591 = vmul.f32 %v2049, %v2543
    %v2592 = vmul.f32 %v541, %v2543
    %v2593 = vmul.f32 %v545, %v2543
    %v2594 = vmul.f32 %v884, %v2543
    %v2595 = vmul.f32 %v550, %v2543
    %v2596 = vmul.f32 %v554, %v2543
    %v2597 = vmul.f32 %v889, %v2543
    %v2598 = vmul.f32 %v559, %v2543
    %v2599 = vmul.f32 %v563, %v2543
    %v2600 = vmul.f32 %v894, %v2543
    %v2601 = vmul.f32 %v568, %v2543
    %v2602 = vmul.f32 %v572, %v2543
    %v2603 = vmul.f32 %v899, %v2543
    %v2604 = vmul.f32 %v577, %v2543
    %v2605 = vmul.f32 %v581, %v2543
    %v2606 = vmul.f32 %v904, %v2543
    %v2607 = vmul.f32 %v586, %v2543
    %v2608 = vmul.f32 %v590, %v2543
    %v2609 = vmul.f32 %v909, %v2543
    %v2610 = vmul.f32 %v595, %v2543
    %v2611 = vmul.f32 %v599, %v2543
    %v2612 = vmul.f32 %v914, %v2543
    %v2613 = vmul.f32 %v604, %v2543
    %v2614 = vmul.f32 %v608, %v2543
    %v2615 = vmul.f32 %v919, %v2543
    %v2616 = vmul.f32 %v613, %v2543
    %v2617 = vmul.f32 %v617, %v2543
    %v2618 = vmul.f32 %v924, %v2543
    %v2619 = vmul.f32 %v622, %v2543
    %v2620 = vmul.f32 %v626, %v2543
    %v2621 = vmul.f32 %v929, %v2543
    %v2622 = vmul.f32 %v631, %v2543
    %v2623 = vmul.f32 %v635, %v2543
    %v2624 = vmul.f32 %v934, %v2543
    %v2625 = vmul.f32 %v640, %v2543
    %v2626 = vmul.f32 %v644, %v2543
    %v2627 = vmul.f32 %v939, %v2543
    %v2628 = vmul.f32 %v649, %v2543
    %v2629 = vmul.f32 %v653, %v2543
    %v2630 = vmul.f32 %v944, %v2543
    %v2631 = vmul.f32 %v658, %v2543
    %v2632 = vmul.f32 %v662, %v2543
    %v2633 = vmul.f32 %v949, %v2543
    %v2634 = vmul.f32 %v667, %v2543
    %v2635 = vmul.f32 %v671, %v2543
    %v2636 = vmul.f32 %v954, %v2543
    %v2637 = vmul.f32 %v1908, %v2543
    %v2638 = vmul.f32 %v1912, %v2543
    %v2639 = vmul.f32 %v2054, %v2543
    %v2736 = vrot.slane %v2544, 2
    %v2737 = vrot.slane %v2545, 2
    %v2738 = vsel %vm1616, %v2736, %v2737
    %v2739 = vrot.slane %v2546, 2
    %v2740 = vsel %vm1616, %v2737, %v2739
    %v2741 = vrot.slane %v2547, 2
    %v2742 = vrot.slane %v2548, 2
    %v2743 = vsel %vm1616, %v2741, %v2742
    %v2744 = vrot.slane %v2549, 2
    %v2745 = vsel %vm1616, %v2742, %v2744
    %v2746 = vrot.slane %v2550, 2
    %v2747 = vrot.slane %v2551, 2
    %v2748 = vsel %vm1616, %v2746, %v2747
    %v2749 = vrot.slane %v2552, 2
    %v2750 = vsel %vm1616, %v2747, %v2749
    %v2751 = vrot.slane %v2553, 2
    %v2752 = vrot.slane %v2554, 2
    %v2753 = vsel %vm1616, %v2751, %v2752
    %v2754 = vrot.slane %v2555, 2
    %v2755 = vsel %vm1616, %v2752, %v2754
    %v2756 = vrot.slane %v2556, 2
    %v2757 = vrot.slane %v2557, 2
    %v2758 = vsel %vm1616, %v2756, %v2757
    %v2759 = vrot.slane %v2558, 2
    %v2760 = vsel %vm1616, %v2757, %v2759
    %v2761 = vrot.slane %v2559, 2
    %v2762 = vrot.slane %v2560, 2
    %v2763 = vsel %vm1616, %v2761, %v2762
    %v2764 = vrot.slane %v2561, 2
    %v2765 = vsel %vm1616, %v2762, %v2764
    %v2766 = vrot.slane %v2562, 2
    %v2767 = vrot.slane %v2563, 2
    %v2768 = vsel %vm1616, %v2766, %v2767
    %v2769 = vrot.slane %v2564, 2
    %v2770 = vsel %vm1616, %v2767, %v2769
    %v2771 = vrot.slane %v2565, 2
    %v2772 = vrot.slane %v2566, 2
    %v2773 = vsel %vm1616, %v2771, %v2772
    %v2774 = vrot.slane %v2567, 2
    %v2775 = vsel %vm1616, %v2772, %v2774
    %v2776 = vrot.slane %v2568, 2
    %v2777 = vrot.slane %v2569, 2
    %v2778 = vsel %vm1616, %v2776, %v2777
    %v2779 = vrot.slane %v2570, 2
    %v2780 = vsel %vm1616, %v2777, %v2779
    %v2781 = vrot.slane %v2571, 2
    %v2782 = vrot.slane %v2572, 2
    %v2783 = vsel %vm1616, %v2781, %v2782
    %v2784 = vrot.slane %v2573, 2
    %v2785 = vsel %vm1616, %v2782, %v2784
    %v2786 = vrot.slane %v2574, 2
    %v2787 = vrot.slane %v2575, 2
    %v2788 = vsel %vm1616, %v2786, %v2787
    %v2789 = vrot.slane %v2576, 2
    %v2790 = vsel %vm1616, %v2787, %v2789
    %v2791 = vrot.slane %v2577, 2
    %v2792 = vrot.slane %v2578, 2
    %v2793 = vsel %vm1616, %v2791, %v2792
    %v2794 = vrot.slane %v2579, 2
    %v2795 = vsel %vm1616, %v2792, %v2794
    %v2796 = vrot.slane %v2580, 2
    %v2797 = vrot.slane %v2581, 2
    %v2798 = vsel %vm1616, %v2796, %v2797
    %v2799 = vrot.slane %v2582, 2
    %v2800 = vsel %vm1616, %v2797, %v2799
    %v2801 = vrot.slane %v2583, 2
    %v2802 = vrot.slane %v2584, 2
    %v2803 = vsel %vm1616, %v2801, %v2802
    %v2804 = vrot.slane %v2585, 2
    %v2805 = vsel %vm1616, %v2802, %v2804
    %v2806 = vrot.slane %v2586, 2
    %v2807 = vrot.slane %v2587, 2
    %v2808 = vsel %vm1616, %v2806, %v2807
    %v2809 = vrot.slane %v2588, 2
    %v2810 = vsel %vm1616, %v2807, %v2809
    %v2811 = vrot.slane %v2589, 2
    %v2812 = vrot.slane %v2590, 2
    %v2813 = vsel %vm1616, %v2811, %v2812
    %v2814 = vrot.slane %v2591, 2
    %v2815 = vsel %vm1616, %v2812, %v2814
    %v2816 = vrot.slane %v2592, 2
    %v2817 = vrot.slane %v2593, 2
    %v2818 = vsel %vm1616, %v2816, %v2817
    %v2819 = vrot.slane %v2594, 2
    %v2820 = vsel %vm1616, %v2817, %v2819
    %v2821 = vrot.slane %v2595, 2
    %v2822 = vrot.slane %v2596, 2
    %v2823 = vsel %vm1616, %v2821, %v2822
    %v2824 = vrot.slane %v2597, 2
    %v2825 = vsel %vm1616, %v2822, %v2824
    %v2826 = vrot.slane %v2598, 2
    %v2827 = vrot.slane %v2599, 2
    %v2828 = vsel %vm1616, %v2826, %v2827
    %v2829 = vrot.slane %v2600, 2
    %v2830 = vsel %vm1616, %v2827, %v2829
    %v2831 = vrot.slane %v2601, 2
    %v2832 = vrot.slane %v2602, 2
    %v2833 = vsel %vm1616, %v2831, %v2832
    %v2834 = vrot.slane %v2603, 2
    %v2835 = vsel %vm1616, %v2832, %v2834
    %v2836 = vrot.slane %v2604, 2
    %v2837 = vrot.slane %v2605, 2
    %v2838 = vsel %vm1616, %v2836, %v2837
    %v2839 = vrot.slane %v2606, 2
    %v2840 = vsel %vm1616, %v2837, %v2839
    %v2841 = vrot.slane %v2607, 2
    %v2842 = vrot.slane %v2608, 2
    %v2843 = vsel %vm1616, %v2841, %v2842
    %v2844 = vrot.slane %v2609, 2
    %v2845 = vsel %vm1616, %v2842, %v2844
    %v2846 = vrot.slane %v2610, 2
    %v2847 = vrot.slane %v2611, 2
    %v2848 = vsel %vm1616, %v2846, %v2847
    %v2849 = vrot.slane %v2612, 2
    %v2850 = vsel %vm1616, %v2847, %v2849
    %v2851 = vrot.slane %v2613, 2
    %v2852 = vrot.slane %v2614, 2
    %v2853 = vsel %vm1616, %v2851, %v2852
    %v2854 = vrot.slane %v2615, 2
    %v2855 = vsel %vm1616, %v2852, %v2854
    %v2856 = vrot.slane %v2616, 2
    %v2857 = vrot.slane %v2617, 2
    %v2858 = vsel %vm1616, %v2856, %v2857
    %v2859 = vrot.slane %v2618, 2
    %v2860 = vsel %vm1616, %v2857, %v2859
    %v2861 = vrot.slane %v2619, 2
    %v2862 = vrot.slane %v2620, 2
    %v2863 = vsel %vm1616, %v2861, %v2862
    %v2864 = vrot.slane %v2621, 2
    %v2865 = vsel %vm1616, %v2862, %v2864
    %v2866 = vrot.slane %v2622, 2
    %v2867 = vrot.slane %v2623, 2
    %v2868 = vsel %vm1616, %v2866, %v2867
    %v2869 = vrot.slane %v2624, 2
    %v2870 = vsel %vm1616, %v2867, %v2869
    %v2871 = vrot.slane %v2625, 2
    %v2872 = vrot.slane %v2626, 2
    %v2873 = vsel %vm1616, %v2871, %v2872
    %v2874 = vrot.slane %v2627, 2
    %v2875 = vsel %vm1616, %v2872, %v2874
    %v2876 = vrot.slane %v2628, 2
    %v2877 = vrot.slane %v2629, 2
    %v2878 = vsel %vm1616, %v2876, %v2877
    %v2879 = vrot.slane %v2630, 2
    %v2880 = vsel %vm1616, %v2877, %v2879
    %v2881 = vrot.slane %v2631, 2
    %v2882 = vrot.slane %v2632, 2
    %v2883 = vsel %vm1616, %v2881, %v2882
    %v2884 = vrot.slane %v2633, 2
    %v2885 = vsel %vm1616, %v2882, %v2884
    %v2886 = vrot.slane %v2634, 2
    %v2887 = vrot.slane %v2635, 2
    %v2888 = vsel %vm1616, %v2886, %v2887
    %v2889 = vrot.slane %v2636, 2
    %v2890 = vsel %vm1616, %v2887, %v2889
    %v2891 = vrot.slane %v2637, 2
    %v2892 = vrot.slane %v2638, 2
    %v2893 = vsel %vm1616, %v2891, %v2892
    %v2894 = vrot.slane %v2639, 2
    %v2895 = vsel %vm1616, %v2892, %v2894
    %v2960 = vadd.f32 %v2476, %v2738
    %v2961 = vadd.f32 %v2477, %v2740
    %v2962 = vadd.f32 %v2478, %v2743
    %v2963 = vadd.f32 %v2479, %v2745
    %v2964 = vadd.f32 %v2480, %v2748
    %v2965 = vadd.f32 %v2481, %v2750
    %v2966 = vadd.f32 %v2482, %v2753
    %v2967 = vadd.f32 %v2483, %v2755
    %v2968 = vadd.f32 %v2484, %v2758
    %v2969 = vadd.f32 %v2485, %v2760
    %v2970 = vadd.f32 %v2486, %v2763
    %v2971 = vadd.f32 %v2487, %v2765
    %v2972 = vadd.f32 %v2488, %v2768
    %v2973 = vadd.f32 %v2489, %v2770
    %v2974 = vadd.f32 %v2490, %v2773
    %v2975 = vadd.f32 %v2491, %v2775
    %v2976 = vadd.f32 %v2492, %v2778
    %v2977 = vadd.f32 %v2493, %v2780
    %v2978 = vadd.f32 %v2494, %v2783
    %v2979 = vadd.f32 %v2495, %v2785
    %v2980 = vadd.f32 %v2496, %v2788
    %v2981 = vadd.f32 %v2497, %v2790
    %v2982 = vadd.f32 %v2498, %v2793
    %v2983 = vadd.f32 %v2499, %v2795
    %v2984 = vadd.f32 %v2500, %v2798
    %v2985 = vadd.f32 %v2501, %v2800
    %v2986 = vadd.f32 %v2502, %v2803
    %v2987 = vadd.f32 %v2503, %v2805
    %v2988 = vadd.f32 %v2504, %v2808
    %v2989 = vadd.f32 %v2505, %v2810
    %v2990 = vadd.f32 %v2506, %v2813
    %v2991 = vadd.f32 %v2507, %v2815
    %v2992 = vadd.f32 %v2508, %v2818
    %v2993 = vadd.f32 %v2509, %v2820
    %v2994 = vadd.f32 %v2510, %v2823
    %v2995 = vadd.f32 %v2511, %v2825
    %v2996 = vadd.f32 %v2512, %v2828
    %v2997 = vadd.f32 %v2513, %v2830
    %v2998 = vadd.f32 %v2514, %v2833
    %v2999 = vadd.f32 %v2515, %v2835
    %v3000 = vadd.f32 %v2516, %v2838
    %v3001 = vadd.f32 %v2517, %v2840
    %v3002 = vadd.f32 %v2518, %v2843
    %v3003 = vadd.f32 %v2519, %v2845
    %v3004 = vadd.f32 %v2520, %v2848
    %v3005 = vadd.f32 %v2521, %v2850
    %v3006 = vadd.f32 %v2522, %v2853
    %v3007 = vadd.f32 %v2523, %v2855
    %v3008 = vadd.f32 %v2524, %v2858
    %v3009 = vadd.f32 %v2525, %v2860
    %v3010 = vadd.f32 %v2526, %v2863
    %v3011 = vadd.f32 %v2527, %v2865
    %v3012 = vadd.f32 %v2528, %v2868
    %v3013 = vadd.f32 %v2529, %v2870
    %v3014 = vadd.f32 %v2530, %v2873
    %v3015 = vadd.f32 %v2531, %v2875
    %v3016 = vadd.f32 %v2532, %v2878
    %v3017 = vadd.f32 %v2533, %v2880
    %v3018 = vadd.f32 %v2534, %v2883
    %v3019 = vadd.f32 %v2535, %v2885
    %v3020 = vadd.f32 %v2536, %v2888
    %v3021 = vadd.f32 %v2537, %v2890
    %v3022 = vadd.f32 %v2538, %v2893
    %v3023 = vadd.f32 %v2539, %v2895
    %v3024 = vlaneseq
    %v3025 = vshrl.u32 %v3024, 7
    %v3026 = vsub.s32 6, %v3025
    %v3027 = vrot.slane %v392, %v3026
    %v3028 = vmul.f32 %v415, %v3027
    %v3029 = vmul.f32 %v419, %v3027
    %v3030 = vmul.f32 %v424, %v3027
    %v3031 = vmul.f32 %v428, %v3027
    %v3032 = vmul.f32 %v433, %v3027
    %v3033 = vmul.f32 %v437, %v3027
    %v3034 = vmul.f32 %v442, %v3027
    %v3035 = vmul.f32 %v446, %v3027
    %v3036 = vmul.f32 %v451, %v3027
    %v3037 = vmul.f32 %v455, %v3027
    %v3038 = vmul.f32 %v460, %v3027
    %v3039 = vmul.f32 %v464, %v3027
    %v3040 = vmul.f32 %v469, %v3027
    %v3041 = vmul.f32 %v473, %v3027
    %v3042 = vmul.f32 %v478, %v3027
    %v3043 = vmul.f32 %v482, %v3027
    %v3044 = vmul.f32 %v487, %v3027
    %v3045 = vmul.f32 %v491, %v3027
    %v3046 = vmul.f32 %v496, %v3027
    %v3047 = vmul.f32 %v500, %v3027
    %v3048 = vmul.f32 %v505, %v3027
    %v3049 = vmul.f32 %v509, %v3027
    %v3050 = vmul.f32 %v514, %v3027
    %v3051 = vmul.f32 %v518, %v3027
    %v3052 = vmul.f32 %v523, %v3027
    %v3053 = vmul.f32 %v527, %v3027
    %v3054 = vmul.f32 %v532, %v3027
    %v3055 = vmul.f32 %v536, %v3027
    %v3056 = vmul.f32 %v1899, %v3027
    %v3057 = vmul.f32 %v1903, %v3027
    %v3058 = vmul.f32 %v397, %v3027
    %v3059 = vmul.f32 %v401, %v3027
    %v3060 = vmul.f32 %v550, %v3027
    %v3061 = vmul.f32 %v554, %v3027
    %v3062 = vmul.f32 %v559, %v3027
    %v3063 = vmul.f32 %v563, %v3027
    %v3064 = vmul.f32 %v568, %v3027
    %v3065 = vmul.f32 %v572, %v3027
    %v3066 = vmul.f32 %v577, %v3027
    %v3067 = vmul.f32 %v581, %v3027
    %v3068 = vmul.f32 %v586, %v3027
    %v3069 = vmul.f32 %v590, %v3027
    %v3070 = vmul.f32 %v595, %v3027
    %v3071 = vmul.f32 %v599, %v3027
    %v3072 = vmul.f32 %v604, %v3027
    %v3073 = vmul.f32 %v608, %v3027
    %v3074 = vmul.f32 %v613, %v3027
    %v3075 = vmul.f32 %v617, %v3027
    %v3076 = vmul.f32 %v622, %v3027
    %v3077 = vmul.f32 %v626, %v3027
    %v3078 = vmul.f32 %v631, %v3027
    %v3079 = vmul.f32 %v635, %v3027
    %v3080 = vmul.f32 %v640, %v3027
    %v3081 = vmul.f32 %v644, %v3027
    %v3082 = vmul.f32 %v649, %v3027
    %v3083 = vmul.f32 %v653, %v3027
    %v3084 = vmul.f32 %v658, %v3027
    %v3085 = vmul.f32 %v662, %v3027
    %v3086 = vmul.f32 %v667, %v3027
    %v3087 = vmul.f32 %v671, %v3027
    %v3088 = vmul.f32 %v1908, %v3027
    %v3089 = vmul.f32 %v1912, %v3027
    %v3090 = vadd.f32 %v2960, %v3028
    %v3091 = vadd.f32 %v2961, %v3029
    %v3092 = vadd.f32 %v2962, %v3030
    %v3093 = vadd.f32 %v2963, %v3031
    %v3094 = vadd.f32 %v2964, %v3032
    %v3095 = vadd.f32 %v2965, %v3033
    %v3096 = vadd.f32 %v2966, %v3034
    %v3097 = vadd.f32 %v2967, %v3035
    %v3098 = vadd.f32 %v2968, %v3036
    %v3099 = vadd.f32 %v2969, %v3037
    %v3100 = vadd.f32 %v2970, %v3038
    %v3101 = vadd.f32 %v2971, %v3039
    %v3102 = vadd.f32 %v2972, %v3040
    %v3103 = vadd.f32 %v2973, %v3041
    %v3104 = vadd.f32 %v2974, %v3042
    %v3105 = vadd.f32 %v2975, %v3043
    %v3106 = vadd.f32 %v2976, %v3044
    %v3107 = vadd.f32 %v2977, %v3045
    %v3108 = vadd.f32 %v2978, %v3046
    %v3109 = vadd.f32 %v2979, %v3047
    %v3110 = vadd.f32 %v2980, %v3048
    %v3111 = vadd.f32 %v2981, %v3049
    %v3112 = vadd.f32 %v2982, %v3050
    %v3113 = vadd.f32 %v2983, %v3051
    %v3114 = vadd.f32 %v2984, %v3052
    %v3115 = vadd.f32 %v2985, %v3053
    %v3116 = vadd.f32 %v2986, %v3054
    %v3117 = vadd.f32 %v2987, %v3055
    %v3118 = vadd.f32 %v2988, %v3056
    %v3119 = vadd.f32 %v2989, %v3057
    %v3120 = vadd.f32 %v2990, %v3058
    %v3121 = vadd.f32 %v2991, %v3059
    %v3122 = vadd.f32 %v2992, %v3060
    %v3123 = vadd.f32 %v2993, %v3061
    %v3124 = vadd.f32 %v2994, %v3062
    %v3125 = vadd.f32 %v2995, %v3063
    %v3126 = vadd.f32 %v2996, %v3064
    %v3127 = vadd.f32 %v2997, %v3065
    %v3128 = vadd.f32 %v2998, %v3066
    %v3129 = vadd.f32 %v2999, %v3067
    %v3130 = vadd.f32 %v3000, %v3068
    %v3131 = vadd.f32 %v3001, %v3069
    %v3132 = vadd.f32 %v3002, %v3070
    %v3133 = vadd.f32 %v3003, %v3071
    %v3134 = vadd.f32 %v3004, %v3072
    %v3135 = vadd.f32 %v3005, %v3073
    %v3136 = vadd.f32 %v3006, %v3074
    %v3137 = vadd.f32 %v3007, %v3075
    %v3138 = vadd.f32 %v3008, %v3076
    %v3139 = vadd.f32 %v3009, %v3077
    %v3140 = vadd.f32 %v3010, %v3078
    %v3141 = vadd.f32 %v3011, %v3079
    %v3142 = vadd.f32 %v3012, %v3080
    %v3143 = vadd.f32 %v3013, %v3081
    %v3144 = vadd.f32 %v3014, %v3082
    %v3145 = vadd.f32 %v3015, %v3083
    %v3146 = vadd.f32 %v3016, %v3084
    %v3147 = vadd.f32 %v3017, %v3085
    %v3148 = vadd.f32 %v3018, %v3086
    %v3149 = vadd.f32 %v3019, %v3087
    %v3150 = vadd.f32 %v3020, %v3088
    %v3151 = vadd.f32 %v3021, %v3089
    %v3152 = vadd.f32 %v3022, %v3058
    %v3153 = vadd.f32 %v3023, %v3059
    %v3154 = vlaneseq
    %v3155 = vshrl.u32 %v3154, 7
    %v3156 = vsub.s32 7, %v3155
    %v3157 = vrot.slane %v392, %v3156
    %v3158 = vmul.f32 %v415, %v3157
    %v3159 = vmul.f32 %v419, %v3157
    %v3160 = vmul.f32 %v814, %v3157
    %v3161 = vmul.f32 %v424, %v3157
    %v3162 = vmul.f32 %v428, %v3157
    %v3163 = vmul.f32 %v819, %v3157
    %v3164 = vmul.f32 %v433, %v3157
    %v3165 = vmul.f32 %v437, %v3157
    %v3166 = vmul.f32 %v824, %v3157
    %v3167 = vmul.f32 %v442, %v3157
    %v3168 = vmul.f32 %v446, %v3157
    %v3169 = vmul.f32 %v829, %v3157
    %v3170 = vmul.f32 %v451, %v3157
    %v3171 = vmul.f32 %v455, %v3157
    %v3172 = vmul.f32 %v834, %v3157
    %v3173 = vmul.f32 %v460, %v3157
    %v3174 = vmul.f32 %v464, %v3157
    %v3175 = vmul.f32 %v839, %v3157
    %v3176 = vmul.f32 %v469, %v3157
    %v3177 = vmul.f32 %v473, %v3157
    %v3178 = vmul.f32 %v844, %v3157
    %v3179 = vmul.f32 %v478, %v3157
    %v3180 = vmul.f32 %v482, %v3157
    %v3181 = vmul.f32 %v849, %v3157
    %v3182 = vmul.f32 %v487, %v3157
    %v3183 = vmul.f32 %v491, %v3157
    %v3184 = vmul.f32 %v854, %v3157
    %v3185 = vmul.f32 %v496, %v3157
    %v3186 = vmul.f32 %v500, %v3157
    %v3187 = vmul.f32 %v859, %v3157
    %v3188 = vmul.f32 %v505, %v3157
    %v3189 = vmul.f32 %v509, %v3157
    %v3190 = vmul.f32 %v864, %v3157
    %v3191 = vmul.f32 %v514, %v3157
    %v3192 = vmul.f32 %v518, %v3157
    %v3193 = vmul.f32 %v869, %v3157
    %v3194 = vmul.f32 %v523, %v3157
    %v3195 = vmul.f32 %v527, %v3157
    %v3196 = vmul.f32 %v874, %v3157
    %v3197 = vmul.f32 %v532, %v3157
    %v3198 = vmul.f32 %v536, %v3157
    %v3199 = vmul.f32 %v879, %v3157
    %v3200 = vmul.f32 %v1899, %v3157
    %v3201 = vmul.f32 %v1903, %v3157
    %v3202 = vmul.f32 %v2049, %v3157
    %v3203 = vmul.f32 %v397, %v3157
    %v3204 = vmul.f32 %v401, %v3157
    %v3205 = vmul.f32 %v804, %v3157
    %v3206 = vmul.f32 %v550, %v3157
    %v3207 = vmul.f32 %v554, %v3157
    %v3208 = vmul.f32 %v889, %v3157
    %v3209 = vmul.f32 %v559, %v3157
    %v3210 = vmul.f32 %v563, %v3157
    %v3211 = vmul.f32 %v894, %v3157
    %v3212 = vmul.f32 %v568, %v3157
    %v3213 = vmul.f32 %v572, %v3157
    %v3214 = vmul.f32 %v899, %v3157
    %v3215 = vmul.f32 %v577, %v3157
    %v3216 = vmul.f32 %v581, %v3157
    %v3217 = vmul.f32 %v904, %v3157
    %v3218 = vmul.f32 %v586, %v3157
    %v3219 = vmul.f32 %v590, %v3157
    %v3220 = vmul.f32 %v909, %v3157
    %v3221 = vmul.f32 %v595, %v3157
    %v3222 = vmul.f32 %v599, %v3157
    %v3223 = vmul.f32 %v914, %v3157
    %v3224 = vmul.f32 %v604, %v3157
    %v3225 = vmul.f32 %v608, %v3157
    %v3226 = vmul.f32 %v919, %v3157
    %v3227 = vmul.f32 %v613, %v3157
    %v3228 = vmul.f32 %v617, %v3157
    %v3229 = vmul.f32 %v924, %v3157
    %v3230 = vmul.f32 %v622, %v3157
    %v3231 = vmul.f32 %v626, %v3157
    %v3232 = vmul.f32 %v929, %v3157
    %v3233 = vmul.f32 %v631, %v3157
    %v3234 = vmul.f32 %v635, %v3157
    %v3235 = vmul.f32 %v934, %v3157
    %v3236 = vmul.f32 %v640, %v3157
    %v3237 = vmul.f32 %v644, %v3157
    %v3238 = vmul.f32 %v939, %v3157
    %v3239 = vmul.f32 %v649, %v3157
    %v3240 = vmul.f32 %v653, %v3157
    %v3241 = vmul.f32 %v944, %v3157
    %v3242 = vmul.f32 %v658, %v3157
    %v3243 = vmul.f32 %v662, %v3157
    %v3244 = vmul.f32 %v949, %v3157
    %v3245 = vmul.f32 %v667, %v3157
    %v3246 = vmul.f32 %v671, %v3157
    %v3247 = vmul.f32 %v954, %v3157
    %v3248 = vmul.f32 %v1908, %v3157
    %v3249 = vmul.f32 %v1912, %v3157
    %v3250 = vmul.f32 %v2054, %v3157
    %v3344 = vrot.slane %v3158, 1
    %v3345 = vrot.slane %v3159, 1
    %v3346 = vsel %vm1146, %v3344, %v3345
    %v3347 = vrot.slane %v3160, 1
    %v3348 = vsel %vm1146, %v3345, %v3347
    %v3349 = vrot.slane %v3161, 1
    %v3350 = vrot.slane %v3162, 1
    %v3351 = vsel %vm1146, %v3349, %v3350
    %v3352 = vrot.slane %v3163, 1
    %v3353 = vsel %vm1146, %v3350, %v3352
    %v3354 = vrot.slane %v3164, 1
    %v3355 = vrot.slane %v3165, 1
    %v3356 = vsel %vm1146, %v3354, %v3355
    %v3357 = vrot.slane %v3166, 1
    %v3358 = vsel %vm1146, %v3355, %v3357
    %v3359 = vrot.slane %v3167, 1
    %v3360 = vrot.slane %v3168, 1
    %v3361 = vsel %vm1146, %v3359, %v3360
    %v3362 = vrot.slane %v3169, 1
    %v3363 = vsel %vm1146, %v3360, %v3362
    %v3364 = vrot.slane %v3170, 1
    %v3365 = vrot.slane %v3171, 1
    %v3366 = vsel %vm1146, %v3364, %v3365
    %v3367 = vrot.slane %v3172, 1
    %v3368 = vsel %vm1146, %v3365, %v3367
    %v3369 = vrot.slane %v3173, 1
    %v3370 = vrot.slane %v3174, 1
    %v3371 = vsel %vm1146, %v3369, %v3370
    %v3372 = vrot.slane %v3175, 1
    %v3373 = vsel %vm1146, %v3370, %v3372
    %v3374 = vrot.slane %v3176, 1
    %v3375 = vrot.slane %v3177, 1
    %v3376 = vsel %vm1146, %v3374, %v3375
    %v3377 = vrot.slane %v3178, 1
    %v3378 = vsel %vm1146, %v3375, %v3377
    %v3379 = vrot.slane %v3179, 1
    %v3380 = vrot.slane %v3180, 1
    %v3381 = vsel %vm1146, %v3379, %v3380
    %v3382 = vrot.slane %v3181, 1
    %v3383 = vsel %vm1146, %v3380, %v3382
    %v3384 = vrot.slane %v3182, 1
    %v3385 = vrot.slane %v3183, 1
    %v3386 = vsel %vm1146, %v3384, %v3385
    %v3387 = vrot.slane %v3184, 1
    %v3388 = vsel %vm1146, %v3385, %v3387
    %v3389 = vrot.slane %v3185, 1
    %v3390 = vrot.slane %v3186, 1
    %v3391 = vsel %vm1146, %v3389, %v3390
    %v3392 = vrot.slane %v3187, 1
    %v3393 = vsel %vm1146, %v3390, %v3392
    %v3394 = vrot.slane %v3188, 1
    %v3395 = vrot.slane %v3189, 1
    %v3396 = vsel %vm1146, %v3394, %v3395
    %v3397 = vrot.slane %v3190, 1
    %v3398 = vsel %vm1146, %v3395, %v3397
    %v3399 = vrot.slane %v3191, 1
    %v3400 = vrot.slane %v3192, 1
    %v3401 = vsel %vm1146, %v3399, %v3400
    %v3402 = vrot.slane %v3193, 1
    %v3403 = vsel %vm1146, %v3400, %v3402
    %v3404 = vrot.slane %v3194, 1
    %v3405 = vrot.slane %v3195, 1
    %v3406 = vsel %vm1146, %v3404, %v3405
    %v3407 = vrot.slane %v3196, 1
    %v3408 = vsel %vm1146, %v3405, %v3407
    %v3409 = vrot.slane %v3197, 1
    %v3410 = vrot.slane %v3198, 1
    %v3411 = vsel %vm1146, %v3409, %v3410
    %v3412 = vrot.slane %v3199, 1
    %v3413 = vsel %vm1146, %v3410, %v3412
    %v3414 = vrot.slane %v3200, 1
    %v3415 = vrot.slane %v3201, 1
    %v3416 = vsel %vm1146, %v3414, %v3415
    %v3417 = vrot.slane %v3202, 1
    %v3418 = vsel %vm1146, %v3415, %v3417
    %v3419 = vrot.slane %v3203, 1
    %v3420 = vrot.slane %v3204, 1
    %v3421 = vsel %vm1146, %v3419, %v3420
    %v3422 = vrot.slane %v3205, 1
    %v3423 = vsel %vm1146, %v3420, %v3422
    %v3424 = vrot.slane %v3206, 1
    %v3425 = vrot.slane %v3207, 1
    %v3426 = vsel %vm1146, %v3424, %v3425
    %v3427 = vrot.slane %v3208, 1
    %v3428 = vsel %vm1146, %v3425, %v3427
    %v3429 = vrot.slane %v3209, 1
    %v3430 = vrot.slane %v3210, 1
    %v3431 = vsel %vm1146, %v3429, %v3430
    %v3432 = vrot.slane %v3211, 1
    %v3433 = vsel %vm1146, %v3430, %v3432
    %v3434 = vrot.slane %v3212, 1
    %v3435 = vrot.slane %v3213, 1
    %v3436 = vsel %vm1146, %v3434, %v3435
    %v3437 = vrot.slane %v3214, 1
    %v3438 = vsel %vm1146, %v3435, %v3437
    %v3439 = vrot.slane %v3215, 1
    %v3440 = vrot.slane %v3216, 1
    %v3441 = vsel %vm1146, %v3439, %v3440
    %v3442 = vrot.slane %v3217, 1
    %v3443 = vsel %vm1146, %v3440, %v3442
    %v3444 = vrot.slane %v3218, 1
    %v3445 = vrot.slane %v3219, 1
    %v3446 = vsel %vm1146, %v3444, %v3445
    %v3447 = vrot.slane %v3220, 1
    %v3448 = vsel %vm1146, %v3445, %v3447
    %v3449 = vrot.slane %v3221, 1
    %v3450 = vrot.slane %v3222, 1
    %v3451 = vsel %vm1146, %v3449, %v3450
    %v3452 = vrot.slane %v3223, 1
    %v3453 = vsel %vm1146, %v3450, %v3452
    %v3454 = vrot.slane %v3224, 1
    %v3455 = vrot.slane %v3225, 1
    %v3456 = vsel %vm1146, %v3454, %v3455
    %v3457 = vrot.slane %v3226, 1
    %v3458 = vsel %vm1146, %v3455, %v3457
    %v3459 = vrot.slane %v3227, 1
    %v3460 = vrot.slane %v3228, 1
    %v3461 = vsel %vm1146, %v3459, %v3460
    %v3462 = vrot.slane %v3229, 1
    %v3463 = vsel %vm1146, %v3460, %v3462
    %v3464 = vrot.slane %v3230, 1
    %v3465 = vrot.slane %v3231, 1
    %v3466 = vsel %vm1146, %v3464, %v3465
    %v3467 = vrot.slane %v3232, 1
    %v3468 = vsel %vm1146, %v3465, %v3467
    %v3469 = vrot.slane %v3233, 1
    %v3470 = vrot.slane %v3234, 1
    %v3471 = vsel %vm1146, %v3469, %v3470
    %v3472 = vrot.slane %v3235, 1
    %v3473 = vsel %vm1146, %v3470, %v3472
    %v3474 = vrot.slane %v3236, 1
    %v3475 = vrot.slane %v3237, 1
    %v3476 = vsel %vm1146, %v3474, %v3475
    %v3477 = vrot.slane %v3238, 1
    %v3478 = vsel %vm1146, %v3475, %v3477
    %v3479 = vrot.slane %v3239, 1
    %v3480 = vrot.slane %v3240, 1
    %v3481 = vsel %vm1146, %v3479, %v3480
    %v3482 = vrot.slane %v3241, 1
    %v3483 = vsel %vm1146, %v3480, %v3482
    %v3484 = vrot.slane %v3242, 1
    %v3485 = vrot.slane %v3243, 1
    %v3486 = vsel %vm1146, %v3484, %v3485
    %v3487 = vrot.slane %v3244, 1
    %v3488 = vsel %vm1146, %v3485, %v3487
    %v3489 = vrot.slane %v3245, 1
    %v3490 = vrot.slane %v3246, 1
    %v3491 = vsel %vm1146, %v3489, %v3490
    %v3492 = vrot.slane %v3247, 1
    %v3493 = vsel %vm1146, %v3490, %v3492
    %v3494 = vrot.slane %v3248, 1
    %v3495 = vrot.slane %v3249, 1
    %v3496 = vsel %vm1146, %v3494, %v3495
    %v3497 = vrot.slane %v3250, 1
    %v3498 = vsel %vm1146, %v3495, %v3497
    %v3561 = vadd.f32 %v3090, %v3346
    %v3562 = vadd.f32 %v3091, %v3348
    %v3563 = vadd.f32 %v3092, %v3351
    %v3564 = vadd.f32 %v3093, %v3353
    %v3565 = vadd.f32 %v3094, %v3356
    %v3566 = vadd.f32 %v3095, %v3358
    %v3567 = vadd.f32 %v3096, %v3361
    %v3568 = vadd.f32 %v3097, %v3363
    %v3569 = vadd.f32 %v3098, %v3366
    %v3570 = vadd.f32 %v3099, %v3368
    %v3571 = vadd.f32 %v3100, %v3371
    %v3572 = vadd.f32 %v3101, %v3373
    %v3573 = vadd.f32 %v3102, %v3376
    %v3574 = vadd.f32 %v3103, %v3378
    %v3575 = vadd.f32 %v3104, %v3381
    %v3576 = vadd.f32 %v3105, %v3383
    %v3577 = vadd.f32 %v3106, %v3386
    %v3578 = vadd.f32 %v3107, %v3388
    %v3579 = vadd.f32 %v3108, %v3391
    %v3580 = vadd.f32 %v3109, %v3393
    %v3581 = vadd.f32 %v3110, %v3396
    %v3582 = vadd.f32 %v3111, %v3398
    %v3583 = vadd.f32 %v3112, %v3401
    %v3584 = vadd.f32 %v3113, %v3403
    %v3585 = vadd.f32 %v3114, %v3406
    %v3586 = vadd.f32 %v3115, %v3408
    %v3587 = vadd.f32 %v3116, %v3411
    %v3588 = vadd.f32 %v3117, %v3413
    %v3589 = vadd.f32 %v3118, %v3416
    %v3590 = vadd.f32 %v3119, %v3418
    %v3591 = vadd.f32 %v3120, %v3421
    %v3592 = vadd.f32 %v3121, %v3423
    %v3593 = vadd.f32 %v3122, %v3426
    %v3594 = vadd.f32 %v3123, %v3428
    %v3595 = vadd.f32 %v3124, %v3431
    %v3596 = vadd.f32 %v3125, %v3433
    %v3597 = vadd.f32 %v3126, %v3436
    %v3598 = vadd.f32 %v3127, %v3438
    %v3599 = vadd.f32 %v3128, %v3441
    %v3600 = vadd.f32 %v3129, %v3443
    %v3601 = vadd.f32 %v3130, %v3446
    %v3602 = vadd.f32 %v3131, %v3448
    %v3603 = vadd.f32 %v3132, %v3451
    %v3604 = vadd.f32 %v3133, %v3453
    %v3605 = vadd.f32 %v3134, %v3456
    %v3606 = vadd.f32 %v3135, %v3458
    %v3607 = vadd.f32 %v3136, %v3461
    %v3608 = vadd.f32 %v3137, %v3463
    %v3609 = vadd.f32 %v3138, %v3466
    %v3610 = vadd.f32 %v3139, %v3468
    %v3611 = vadd.f32 %v3140, %v3471
    %v3612 = vadd.f32 %v3141, %v3473
    %v3613 = vadd.f32 %v3142, %v3476
    %v3614 = vadd.f32 %v3143, %v3478
    %v3615 = vadd.f32 %v3144, %v3481
    %v3616 = vadd.f32 %v3145, %v3483
    %v3617 = vadd.f32 %v3146, %v3486
    %v3618 = vadd.f32 %v3147, %v3488
    %v3619 = vadd.f32 %v3148, %v3491
    %v3620 = vadd.f32 %v3149, %v3493
    %v3621 = vadd.f32 %v3150, %v3496
    %v3622 = vadd.f32 %v3151, %v3498
    %v3623 = vadd.f32 %v3152, %v3421
    %v3624 = vadd.f32 %v3153, %v3423
    %v3625 = vlaneseq
    %v3626 = vshrl.u32 %v3625, 7
    %v3627 = vsub.s32 0, %v3626
    %v3628 = vrot.slane %v393, %v3627
    %v3629 = vmul.f32 %v415, %v3628
    %v3630 = vmul.f32 %v419, %v3628
    %v3631 = vmul.f32 %v814, %v3628
    %v3632 = vmul.f32 %v424, %v3628
    %v3633 = vmul.f32 %v428, %v3628
    %v3634 = vmul.f32 %v819, %v3628
    %v3635 = vmul.f32 %v433, %v3628
    %v3636 = vmul.f32 %v437, %v3628
    %v3637 = vmul.f32 %v824, %v3628
    %v3638 = vmul.f32 %v442, %v3628
    %v3639 = vmul.f32 %v446, %v3628
    %v3640 = vmul.f32 %v829, %v3628
    %v3641 = vmul.f32 %v451, %v3628
    %v3642 = vmul.f32 %v455, %v3628
    %v3643 = vmul.f32 %v834, %v3628
    %v3644 = vmul.f32 %v460, %v3628
    %v3645 = vmul.f32 %v464, %v3628
    %v3646 = vmul.f32 %v839, %v3628
    %v3647 = vmul.f32 %v469, %v3628
    %v3648 = vmul.f32 %v473, %v3628
    %v3649 = vmul.f32 %v844, %v3628
    %v3650 = vmul.f32 %v478, %v3628
    %v3651 = vmul.f32 %v482, %v3628
    %v3652 = vmul.f32 %v849, %v3628
    %v3653 = vmul.f32 %v487, %v3628
    %v3654 = vmul.f32 %v491, %v3628
    %v3655 = vmul.f32 %v854, %v3628
    %v3656 = vmul.f32 %v496, %v3628
    %v3657 = vmul.f32 %v500, %v3628
    %v3658 = vmul.f32 %v859, %v3628
    %v3659 = vmul.f32 %v505, %v3628
    %v3660 = vmul.f32 %v509, %v3628
    %v3661 = vmul.f32 %v864, %v3628
    %v3662 = vmul.f32 %v514, %v3628
    %v3663 = vmul.f32 %v518, %v3628
    %v3664 = vmul.f32 %v869, %v3628
    %v3665 = vmul.f32 %v523, %v3628
    %v3666 = vmul.f32 %v527, %v3628
    %v3667 = vmul.f32 %v874, %v3628
    %v3668 = vmul.f32 %v532, %v3628
    %v3669 = vmul.f32 %v536, %v3628
    %v3670 = vmul.f32 %v879, %v3628
    %v3671 = vmul.f32 %v1899, %v3628
    %v3672 = vmul.f32 %v1903, %v3628
    %v3673 = vmul.f32 %v2049, %v3628
    %v3674 = vmul.f32 %v397, %v3628
    %v3675 = vmul.f32 %v401, %v3628
    %v3676 = vmul.f32 %v804, %v3628
    %v3677 = vmul.f32 %v550, %v3628
    %v3678 = vmul.f32 %v554, %v3628
    %v3679 = vmul.f32 %v889, %v3628
    %v3680 = vmul.f32 %v559, %v3628
    %v3681 = vmul.f32 %v563, %v3628
    %v3682 = vmul.f32 %v894, %v3628
    %v3683 = vmul.f32 %v568, %v3628
    %v3684 = vmul.f32 %v572, %v3628
    %v3685 = vmul.f32 %v899, %v3628
    %v3686 = vmul.f32 %v577, %v3628
    %v3687 = vmul.f32 %v581, %v3628
    %v3688 = vmul.f32 %v904, %v3628
    %v3689 = vmul.f32 %v586, %v3628
    %v3690 = vmul.f32 %v590, %v3628
    %v3691 = vmul.f32 %v909, %v3628
    %v3692 = vmul.f32 %v595, %v3628
    %v3693 = vmul.f32 %v599, %v3628
    %v3694 = vmul.f32 %v914, %v3628
    %v3695 = vmul.f32 %v604, %v3628
    %v3696 = vmul.f32 %v608, %v3628
    %v3697 = vmul.f32 %v919, %v3628
    %v3698 = vmul.f32 %v613, %v3628
    %v3699 = vmul.f32 %v617, %v3628
    %v3700 = vmul.f32 %v924, %v3628
    %v3701 = vmul.f32 %v622, %v3628
    %v3702 = vmul.f32 %v626, %v3628
    %v3703 = vmul.f32 %v929, %v3628
    %v3704 = vmul.f32 %v631, %v3628
    %v3705 = vmul.f32 %v635, %v3628
    %v3706 = vmul.f32 %v934, %v3628
    %v3707 = vmul.f32 %v640, %v3628
    %v3708 = vmul.f32 %v644, %v3628
    %v3709 = vmul.f32 %v939, %v3628
    %v3710 = vmul.f32 %v649, %v3628
    %v3711 = vmul.f32 %v653, %v3628
    %v3712 = vmul.f32 %v944, %v3628
    %v3713 = vmul.f32 %v658, %v3628
    %v3714 = vmul.f32 %v662, %v3628
    %v3715 = vmul.f32 %v949, %v3628
    %v3716 = vmul.f32 %v667, %v3628
    %v3717 = vmul.f32 %v671, %v3628
    %v3718 = vmul.f32 %v954, %v3628
    %v3719 = vmul.f32 %v1908, %v3628
    %v3720 = vmul.f32 %v1912, %v3628
    %v3721 = vmul.f32 %v2054, %v3628
    %v3815 = vrot.slane %v3629, 2
    %v3816 = vrot.slane %v3630, 2
    %v3817 = vsel %vm1616, %v3815, %v3816
    %v3818 = vrot.slane %v3631, 2
    %v3819 = vsel %vm1616, %v3816, %v3818
    %v3820 = vrot.slane %v3632, 2
    %v3821 = vrot.slane %v3633, 2
    %v3822 = vsel %vm1616, %v3820, %v3821
    %v3823 = vrot.slane %v3634, 2
    %v3824 = vsel %vm1616, %v3821, %v3823
    %v3825 = vrot.slane %v3635, 2
    %v3826 = vrot.slane %v3636, 2
    %v3827 = vsel %vm1616, %v3825, %v3826
    %v3828 = vrot.slane %v3637, 2
    %v3829 = vsel %vm1616, %v3826, %v3828
    %v3830 = vrot.slane %v3638, 2
    %v3831 = vrot.slane %v3639, 2
    %v3832 = vsel %vm1616, %v3830, %v3831
    %v3833 = vrot.slane %v3640, 2
    %v3834 = vsel %vm1616, %v3831, %v3833
    %v3835 = vrot.slane %v3641, 2
    %v3836 = vrot.slane %v3642, 2
    %v3837 = vsel %vm1616, %v3835, %v3836
    %v3838 = vrot.slane %v3643, 2
    %v3839 = vsel %vm1616, %v3836, %v3838
    %v3840 = vrot.slane %v3644, 2
    %v3841 = vrot.slane %v3645, 2
    %v3842 = vsel %vm1616, %v3840, %v3841
    %v3843 = vrot.slane %v3646, 2
    %v3844 = vsel %vm1616, %v3841, %v3843
    %v3845 = vrot.slane %v3647, 2
    %v3846 = vrot.slane %v3648, 2
    %v3847 = vsel %vm1616, %v3845, %v3846
    %v3848 = vrot.slane %v3649, 2
    %v3849 = vsel %vm1616, %v3846, %v3848
    %v3850 = vrot.slane %v3650, 2
    %v3851 = vrot.slane %v3651, 2
    %v3852 = vsel %vm1616, %v3850, %v3851
    %v3853 = vrot.slane %v3652, 2
    %v3854 = vsel %vm1616, %v3851, %v3853
    %v3855 = vrot.slane %v3653, 2
    %v3856 = vrot.slane %v3654, 2
    %v3857 = vsel %vm1616, %v3855, %v3856
    %v3858 = vrot.slane %v3655, 2
    %v3859 = vsel %vm1616, %v3856, %v3858
    %v3860 = vrot.slane %v3656, 2
    %v3861 = vrot.slane %v3657, 2
    %v3862 = vsel %vm1616, %v3860, %v3861
    %v3863 = vrot.slane %v3658, 2
    %v3864 = vsel %vm1616, %v3861, %v3863
    %v3865 = vrot.slane %v3659, 2
    %v3866 = vrot.slane %v3660, 2
    %v3867 = vsel %vm1616, %v3865, %v3866
    %v3868 = vrot.slane %v3661, 2
    %v3869 = vsel %vm1616, %v3866, %v3868
    %v3870 = vrot.slane %v3662, 2
    %v3871 = vrot.slane %v3663, 2
    %v3872 = vsel %vm1616, %v3870, %v3871
    %v3873 = vrot.slane %v3664, 2
    %v3874 = vsel %vm1616, %v3871, %v3873
    %v3875 = vrot.slane %v3665, 2
    %v3876 = vrot.slane %v3666, 2
    %v3877 = vsel %vm1616, %v3875, %v3876
    %v3878 = vrot.slane %v3667, 2
    %v3879 = vsel %vm1616, %v3876, %v3878
    %v3880 = vrot.slane %v3668, 2
    %v3881 = vrot.slane %v3669, 2
    %v3882 = vsel %vm1616, %v3880, %v3881
    %v3883 = vrot.slane %v3670, 2
    %v3884 = vsel %vm1616, %v3881, %v3883
    %v3885 = vrot.slane %v3671, 2
    %v3886 = vrot.slane %v3672, 2
    %v3887 = vsel %vm1616, %v3885, %v3886
    %v3888 = vrot.slane %v3673, 2
    %v3889 = vsel %vm1616, %v3886, %v3888
    %v3890 = vrot.slane %v3674, 2
    %v3891 = vrot.slane %v3675, 2
    %v3892 = vsel %vm1616, %v3890, %v3891
    %v3893 = vrot.slane %v3676, 2
    %v3894 = vsel %vm1616, %v3891, %v3893
    %v3895 = vrot.slane %v3677, 2
    %v3896 = vrot.slane %v3678, 2
    %v3897 = vsel %vm1616, %v3895, %v3896
    %v3898 = vrot.slane %v3679, 2
    %v3899 = vsel %vm1616, %v3896, %v3898
    %v3900 = vrot.slane %v3680, 2
    %v3901 = vrot.slane %v3681, 2
    %v3902 = vsel %vm1616, %v3900, %v3901
    %v3903 = vrot.slane %v3682, 2
    %v3904 = vsel %vm1616, %v3901, %v3903
    %v3905 = vrot.slane %v3683, 2
    %v3906 = vrot.slane %v3684, 2
    %v3907 = vsel %vm1616, %v3905, %v3906
    %v3908 = vrot.slane %v3685, 2
    %v3909 = vsel %vm1616, %v3906, %v3908
    %v3910 = vrot.slane %v3686, 2
    %v3911 = vrot.slane %v3687, 2
    %v3912 = vsel %vm1616, %v3910, %v3911
    %v3913 = vrot.slane %v3688, 2
    %v3914 = vsel %vm1616, %v3911, %v3913
    %v3915 = vrot.slane %v3689, 2
    %v3916 = vrot.slane %v3690, 2
    %v3917 = vsel %vm1616, %v3915, %v3916
    %v3918 = vrot.slane %v3691, 2
    %v3919 = vsel %vm1616, %v3916, %v3918
    %v3920 = vrot.slane %v3692, 2
    %v3921 = vrot.slane %v3693, 2
    %v3922 = vsel %vm1616, %v3920, %v3921
    %v3923 = vrot.slane %v3694, 2
    %v3924 = vsel %vm1616, %v3921, %v3923
    %v3925 = vrot.slane %v3695, 2
    %v3926 = vrot.slane %v3696, 2
    %v3927 = vsel %vm1616, %v3925, %v3926
    %v3928 = vrot.slane %v3697, 2
    %v3929 = vsel %vm1616, %v3926, %v3928
    %v3930 = vrot.slane %v3698, 2
    %v3931 = vrot.slane %v3699, 2
    %v3932 = vsel %vm1616, %v3930, %v3931
    %v3933 = vrot.slane %v3700, 2
    %v3934 = vsel %vm1616, %v3931, %v3933
    %v3935 = vrot.slane %v3701, 2
    %v3936 = vrot.slane %v3702, 2
    %v3937 = vsel %vm1616, %v3935, %v3936
    %v3938 = vrot.slane %v3703, 2
    %v3939 = vsel %vm1616, %v3936, %v3938
    %v3940 = vrot.slane %v3704, 2
    %v3941 = vrot.slane %v3705, 2
    %v3942 = vsel %vm1616, %v3940, %v3941
    %v3943 = vrot.slane %v3706, 2
    %v3944 = vsel %vm1616, %v3941, %v3943
    %v3945 = vrot.slane %v3707, 2
    %v3946 = vrot.slane %v3708, 2
    %v3947 = vsel %vm1616, %v3945, %v3946
    %v3948 = vrot.slane %v3709, 2
    %v3949 = vsel %vm1616, %v3946, %v3948
    %v3950 = vrot.slane %v3710, 2
    %v3951 = vrot.slane %v3711, 2
    %v3952 = vsel %vm1616, %v3950, %v3951
    %v3953 = vrot.slane %v3712, 2
    %v3954 = vsel %vm1616, %v3951, %v3953
    %v3955 = vrot.slane %v3713, 2
    %v3956 = vrot.slane %v3714, 2
    %v3957 = vsel %vm1616, %v3955, %v3956
    %v3958 = vrot.slane %v3715, 2
    %v3959 = vsel %vm1616, %v3956, %v3958
    %v3960 = vrot.slane %v3716, 2
    %v3961 = vrot.slane %v3717, 2
    %v3962 = vsel %vm1616, %v3960, %v3961
    %v3963 = vrot.slane %v3718, 2
    %v3964 = vsel %vm1616, %v3961, %v3963
    %v3965 = vrot.slane %v3719, 2
    %v3966 = vrot.slane %v3720, 2
    %v3967 = vsel %vm1616, %v3965, %v3966
    %v3968 = vrot.slane %v3721, 2
    %v3969 = vsel %vm1616, %v3966, %v3968
    %v4032 = vadd.f32 %v3561, %v3817
    %v4033 = vadd.f32 %v3562, %v3819
    %v4034 = vadd.f32 %v3563, %v3822
    %v4035 = vadd.f32 %v3564, %v3824
    %v4036 = vadd.f32 %v3565, %v3827
    %v4037 = vadd.f32 %v3566, %v3829
    %v4038 = vadd.f32 %v3567, %v3832
    %v4039 = vadd.f32 %v3568, %v3834
    %v4040 = vadd.f32 %v3569, %v3837
    %v4041 = vadd.f32 %v3570, %v3839
    %v4042 = vadd.f32 %v3571, %v3842
    %v4043 = vadd.f32 %v3572, %v3844
    %v4044 = vadd.f32 %v3573, %v3847
    %v4045 = vadd.f32 %v3574, %v3849
    %v4046 = vadd.f32 %v3575, %v3852
    %v4047 = vadd.f32 %v3576, %v3854
    %v4048 = vadd.f32 %v3577, %v3857
    %v4049 = vadd.f32 %v3578, %v3859
    %v4050 = vadd.f32 %v3579, %v3862
    %v4051 = vadd.f32 %v3580, %v3864
    %v4052 = vadd.f32 %v3581, %v3867
    %v4053 = vadd.f32 %v3582, %v3869
    %v4054 = vadd.f32 %v3583, %v3872
    %v4055 = vadd.f32 %v3584, %v3874
    %v4056 = vadd.f32 %v3585, %v3877
    %v4057 = vadd.f32 %v3586, %v3879
    %v4058 = vadd.f32 %v3587, %v3882
    %v4059 = vadd.f32 %v3588, %v3884
    %v4060 = vadd.f32 %v3589, %v3887
    %v4061 = vadd.f32 %v3590, %v3889
    %v4062 = vadd.f32 %v3591, %v3892
    %v4063 = vadd.f32 %v3592, %v3894
    %v4064 = vadd.f32 %v3593, %v3897
    %v4065 = vadd.f32 %v3594, %v3899
    %v4066 = vadd.f32 %v3595, %v3902
    %v4067 = vadd.f32 %v3596, %v3904
    %v4068 = vadd.f32 %v3597, %v3907
    %v4069 = vadd.f32 %v3598, %v3909
    %v4070 = vadd.f32 %v3599, %v3912
    %v4071 = vadd.f32 %v3600, %v3914
    %v4072 = vadd.f32 %v3601, %v3917
    %v4073 = vadd.f32 %v3602, %v3919
    %v4074 = vadd.f32 %v3603, %v3922
    %v4075 = vadd.f32 %v3604, %v3924
    %v4076 = vadd.f32 %v3605, %v3927
    %v4077 = vadd.f32 %v3606, %v3929
    %v4078 = vadd.f32 %v3607, %v3932
    %v4079 = vadd.f32 %v3608, %v3934
    %v4080 = vadd.f32 %v3609, %v3937
    %v4081 = vadd.f32 %v3610, %v3939
    %v4082 = vadd.f32 %v3611, %v3942
    %v4083 = vadd.f32 %v3612, %v3944
    %v4084 = vadd.f32 %v3613, %v3947
    %v4085 = vadd.f32 %v3614, %v3949
    %v4086 = vadd.f32 %v3615, %v3952
    %v4087 = vadd.f32 %v3616, %v3954
    %v4088 = vadd.f32 %v3617, %v3957
    %v4089 = vadd.f32 %v3618, %v3959
    %v4090 = vadd.f32 %v3619, %v3962
    %v4091 = vadd.f32 %v3620, %v3964
    %v4092 = vadd.f32 %v3621, %v3967
    %v4093 = vadd.f32 %v3622, %v3969
    %v4094 = vadd.f32 %v3623, %v3892
    %v4095 = vadd.f32 %v3624, %v3894
    %v4096 = vld [vmem:[%s2] sm:$0x1]
    %v4098 = vlaneseq
    %v4099 = vshrl.u32 %v4098, 7
    %v4100 = vsub.s32 0, %v4099
    %v4101 = vrot.slane %v4096, %v4100
    %v4103 = vadd.f32 %v4032, %v4101
    %v4104 = vadd.f32 %v4033, %v4101
    %v4105 = vadd.f32 %v4034, %v4101
    %v4106 = vadd.f32 %v4035, %v4101
    %v4107 = vadd.f32 %v4036, %v4101
    %v4108 = vadd.f32 %v4037, %v4101
    %v4109 = vadd.f32 %v4038, %v4101
    %v4110 = vadd.f32 %v4039, %v4101
    %v4111 = vadd.f32 %v4040, %v4101
    %v4112 = vadd.f32 %v4041, %v4101
    %v4113 = vadd.f32 %v4042, %v4101
    %v4114 = vadd.f32 %v4043, %v4101
    %v4115 = vadd.f32 %v4044, %v4101
    %v4116 = vadd.f32 %v4045, %v4101
    %v4117 = vadd.f32 %v4046, %v4101
    %v4118 = vadd.f32 %v4047, %v4101
    %v4119 = vadd.f32 %v4048, %v4101
    %v4120 = vadd.f32 %v4049, %v4101
    %v4121 = vadd.f32 %v4050, %v4101
    %v4122 = vadd.f32 %v4051, %v4101
    %v4123 = vadd.f32 %v4052, %v4101
    %v4124 = vadd.f32 %v4053, %v4101
    %v4125 = vadd.f32 %v4054, %v4101
    %v4126 = vadd.f32 %v4055, %v4101
    %v4127 = vadd.f32 %v4056, %v4101
    %v4128 = vadd.f32 %v4057, %v4101
    %v4129 = vadd.f32 %v4058, %v4101
    %v4130 = vadd.f32 %v4059, %v4101
    %v4131 = vadd.f32 %v4060, %v4101
    %v4132 = vadd.f32 %v4061, %v4101
    %v4133 = vadd.f32 %v4062, %v4101
    %v4134 = vadd.f32 %v4063, %v4101
    %v4135 = vadd.f32 %v4064, %v4101
    %v4136 = vadd.f32 %v4065, %v4101
    %v4137 = vadd.f32 %v4066, %v4101
    %v4138 = vadd.f32 %v4067, %v4101
    %v4139 = vadd.f32 %v4068, %v4101
    %v4140 = vadd.f32 %v4069, %v4101
    %v4141 = vadd.f32 %v4070, %v4101
    %v4142 = vadd.f32 %v4071, %v4101
    %v4143 = vadd.f32 %v4072, %v4101
    %v4144 = vadd.f32 %v4073, %v4101
    %v4145 = vadd.f32 %v4074, %v4101
    %v4146 = vadd.f32 %v4075, %v4101
    %v4147 = vadd.f32 %v4076, %v4101
    %v4148 = vadd.f32 %v4077, %v4101
    %v4149 = vadd.f32 %v4078, %v4101
    %v4150 = vadd.f32 %v4079, %v4101
    %v4151 = vadd.f32 %v4080, %v4101
    %v4152 = vadd.f32 %v4081, %v4101
    %v4153 = vadd.f32 %v4082, %v4101
    %v4154 = vadd.f32 %v4083, %v4101
    %v4155 = vadd.f32 %v4084, %v4101
    %v4156 = vadd.f32 %v4085, %v4101
    %v4157 = vadd.f32 %v4086, %v4101
    %v4158 = vadd.f32 %v4087, %v4101
    %v4159 = vadd.f32 %v4088, %v4101
    %v4160 = vadd.f32 %v4089, %v4101
    %v4161 = vadd.f32 %v4090, %v4101
    %v4162 = vadd.f32 %v4091, %v4101
    %v4163 = vadd.f32 %v4092, %v4101
    %v4164 = vadd.f32 %v4093, %v4101
    %v4165 = vadd.f32 %v4094, %v4101
    %v4166 = vadd.f32 %v4095, %v4101
    %v4167 = vmax.f32 %v4103, 0.0
    %v4168 = vmax.f32 %v4104, 0.0
    %v4169 = vmax.f32 %v4105, 0.0
    %v4170 = vmax.f32 %v4106, 0.0
    %v4171 = vmax.f32 %v4107, 0.0
    %v4172 = vmax.f32 %v4108, 0.0
    %v4173 = vmax.f32 %v4109, 0.0
    %v4174 = vmax.f32 %v4110, 0.0
    %v4175 = vmax.f32 %v4111, 0.0
    %v4176 = vmax.f32 %v4112, 0.0
    %v4177 = vmax.f32 %v4113, 0.0
    %v4178 = vmax.f32 %v4114, 0.0
    %v4179 = vmax.f32 %v4115, 0.0
    %v4180 = vmax.f32 %v4116, 0.0
    %v4181 = vmax.f32 %v4117, 0.0
    %v4182 = vmax.f32 %v4118, 0.0
    %v4183 = vmax.f32 %v4119, 0.0
    %v4184 = vmax.f32 %v4120, 0.0
    %v4185 = vmax.f32 %v4121, 0.0
    %v4186 = vmax.f32 %v4122, 0.0
    %v4187 = vmax.f32 %v4123, 0.0
    %v4188 = vmax.f32 %v4124, 0.0
    %v4189 = vmax.f32 %v4125, 0.0
    %v4190 = vmax.f32 %v4126, 0.0
    %v4191 = vmax.f32 %v4127, 0.0
    %v4192 = vmax.f32 %v4128, 0.0
    %v4193 = vmax.f32 %v4129, 0.0
    %v4194 = vmax.f32 %v4130, 0.0
    %v4195 = vmax.f32 %v4131, 0.0
    %v4196 = vmax.f32 %v4132, 0.0
    %v4197 = vmax.f32 %v4133, 0.0
    %v4198 = vmax.f32 %v4134, 0.0
    %v4199 = vmax.f32 %v4135, 0.0
    %v4200 = vmax.f32 %v4136, 0.0
    %v4201 = vmax.f32 %v4137, 0.0
    %v4202 = vmax.f32 %v4138, 0.0
    %v4203 = vmax.f32 %v4139, 0.0
    %v4204 = vmax.f32 %v4140, 0.0
    %v4205 = vmax.f32 %v4141, 0.0
    %v4206 = vmax.f32 %v4142, 0.0
    %v4207 = vmax.f32 %v4143, 0.0
    %v4208 = vmax.f32 %v4144, 0.0
    %v4209 = vmax.f32 %v4145, 0.0
    %v4210 = vmax.f32 %v4146, 0.0
    %v4211 = vmax.f32 %v4147, 0.0
    %v4212 = vmax.f32 %v4148, 0.0
    %v4213 = vmax.f32 %v4149, 0.0
    %v4214 = vmax.f32 %v4150, 0.0
    %v4215 = vmax.f32 %v4151, 0.0
    %v4216 = vmax.f32 %v4152, 0.0
    %v4217 = vmax.f32 %v4153, 0.0
    %v4218 = vmax.f32 %v4154, 0.0
    %v4219 = vmax.f32 %v4155, 0.0
    %v4220 = vmax.f32 %v4156, 0.0
    %v4221 = vmax.f32 %v4157, 0.0
    %v4222 = vmax.f32 %v4158, 0.0
    %v4223 = vmax.f32 %v4159, 0.0
    %v4224 = vmax.f32 %v4160, 0.0
    %v4225 = vmax.f32 %v4161, 0.0
    %v4226 = vmax.f32 %v4162, 0.0
    %v4227 = vmax.f32 %v4163, 0.0
    %v4228 = vmax.f32 %v4164, 0.0
    %v4229 = vmax.f32 %v4165, 0.0
    %v4230 = vmax.f32 %v4166, 0.0
    %v4231 = vmax.f32 %v4167, %v4169
    %v4232 = vmax.f32 %v4168, %v4170
    %v4233 = vmax.f32 %v4171, %v4173
    %v4234 = vmax.f32 %v4172, %v4174
    %v4235 = vmax.f32 %v4175, %v4177
    %v4236 = vmax.f32 %v4176, %v4178
    %v4237 = vmax.f32 %v4179, %v4181
    %v4238 = vmax.f32 %v4180, %v4182
    %v4239 = vmax.f32 %v4183, %v4185
    %v4240 = vmax.f32 %v4184, %v4186
    %v4241 = vmax.f32 %v4187, %v4189
    %v4242 = vmax.f32 %v4188, %v4190
    %v4243 = vmax.f32 %v4191, %v4193
    %v4244 = vmax.f32 %v4192, %v4194
    %v4245 = vmax.f32 %v4195, %v4197
    %v4246 = vmax.f32 %v4196, %v4198
    %v4247 = vmax.f32 %v4199, %v4201
    %v4248 = vmax.f32 %v4200, %v4202
    %v4249 = vmax.f32 %v4203, %v4205
    %v4250 = vmax.f32 %v4204, %v4206
    %v4251 = vmax.f32 %v4207, %v4209
    %v4252 = vmax.f32 %v4208, %v4210
    %v4253 = vmax.f32 %v4211, %v4213
    %v4254 = vmax.f32 %v4212, %v4214
    %v4255 = vmax.f32 %v4215, %v4217
    %v4256 = vmax.f32 %v4216, %v4218
    %v4257 = vmax.f32 %v4219, %v4221
    %v4258 = vmax.f32 %v4220, %v4222
    %v4259 = vmax.f32 %v4223, %v4225
    %v4260 = vmax.f32 %v4224, %v4226
    %v4261 = vmax.f32 %v4227, %v4229
    %v4262 = vmax.f32 %v4228, %v4230
    %v4295 = vcombine.high %v4231, %v4231
    %v4297 = vunpack.c.l.s4 1983009808
    %v4298 = vunpack.c.0.s8 %v4297
    %v4299 = vlaneseq
    %v4300 = vshrl.u32 %v4299, 7
    %v4301 = vsub.s32 %v4298, %v4300
    %v4302 = vrot.slane %v4231, %v4301
    %v4304 = vunpack.c.l.s4 1983009808
    %v4305 = vunpack.c.0.s8 %v4304
    %v4306 = vlaneseq
    %v4307 = vshrl.u32 %v4306, 7
    %v4308 = vsub.s32 %v4305, %v4307
    %v4309 = vrot.slane %v4295, %v4308
    %v4310 = vcombine.high %v4302, %v4302
    %v4311 = vcombine.high %v4309, %v4309
    %v4312 = vcombine.high %v4232, %v4232
    %v4314 = vunpack.c.l.s4 1983009808
    %v4315 = vunpack.c.0.s8 %v4314
    %v4316 = vlaneseq
    %v4317 = vshrl.u32 %v4316, 7
    %v4318 = vsub.s32 %v4315, %v4317
    %v4319 = vrot.slane %v4232, %v4318
    %v4321 = vunpack.c.l.s4 1983009808
    %v4322 = vunpack.c.0.s8 %v4321
    %v4323 = vlaneseq
    %v4324 = vshrl.u32 %v4323, 7
    %v4325 = vsub.s32 %v4322, %v4324
    %v4326 = vrot.slane %v4312, %v4325
    %v4327 = vcombine.high %v4319, %v4319
    %v4328 = vcombine.high %v4326, %v4326
    %v4329 = vcombine.high %v4233, %v4233
    %v4331 = vunpack.c.l.s4 1983009808
    %v4332 = vunpack.c.0.s8 %v4331
    %v4333 = vlaneseq
    %v4334 = vshrl.u32 %v4333, 7
    %v4335 = vsub.s32 %v4332, %v4334
    %v4336 = vrot.slane %v4233, %v4335
    %v4338 = vunpack.c.l.s4 1983009808
    %v4339 = vunpack.c.0.s8 %v4338
    %v4340 = vlaneseq
    %v4341 = vshrl.u32 %v4340, 7
    %v4342 = vsub.s32 %v4339, %v4341
    %v4343 = vrot.slane %v4329, %v4342
    %v4344 = vcombine.high %v4336, %v4336
    %v4345 = vcombine.high %v4343, %v4343
    %v4346 = vcombine.high %v4234, %v4234
    %v4348 = vunpack.c.l.s4 1983009808
    %v4349 = vunpack.c.0.s8 %v4348
    %v4350 = vlaneseq
    %v4351 = vshrl.u32 %v4350, 7
    %v4352 = vsub.s32 %v4349, %v4351
    %v4353 = vrot.slane %v4234, %v4352
    %v4355 = vunpack.c.l.s4 1983009808
    %v4356 = vunpack.c.0.s8 %v4355
    %v4357 = vlaneseq
    %v4358 = vshrl.u32 %v4357, 7
    %v4359 = vsub.s32 %v4356, %v4358
    %v4360 = vrot.slane %v4346, %v4359
    %v4361 = vcombine.high %v4353, %v4353
    %v4362 = vcombine.high %v4360, %v4360
    %v4363 = vcombine.high %v4235, %v4235
    %v4365 = vunpack.c.l.s4 1983009808
    %v4366 = vunpack.c.0.s8 %v4365
    %v4367 = vlaneseq
    %v4368 = vshrl.u32 %v4367, 7
    %v4369 = vsub.s32 %v4366, %v4368
    %v4370 = vrot.slane %v4235, %v4369
    %v4372 = vunpack.c.l.s4 1983009808
    %v4373 = vunpack.c.0.s8 %v4372
    %v4374 = vlaneseq
    %v4375 = vshrl.u32 %v4374, 7
    %v4376 = vsub.s32 %v4373, %v4375
    %v4377 = vrot.slane %v4363, %v4376
    %v4378 = vcombine.high %v4370, %v4370
    %v4379 = vcombine.high %v4377, %v4377
    %v4380 = vcombine.high %v4236, %v4236
    %v4382 = vunpack.c.l.s4 1983009808
    %v4383 = vunpack.c.0.s8 %v4382
    %v4384 = vlaneseq
    %v4385 = vshrl.u32 %v4384, 7
    %v4386 = vsub.s32 %v4383, %v4385
    %v4387 = vrot.slane %v4236, %v4386
    %v4389 = vunpack.c.l.s4 1983009808
    %v4390 = vunpack.c.0.s8 %v4389
    %v4391 = vlaneseq
    %v4392 = vshrl.u32 %v4391, 7
    %v4393 = vsub.s32 %v4390, %v4392
    %v4394 = vrot.slane %v4380, %v4393
    %v4395 = vcombine.high %v4387, %v4387
    %v4396 = vcombine.high %v4394, %v4394
    %v4397 = vcombine.high %v4237, %v4237
    %v4399 = vunpack.c.l.s4 1983009808
    %v4400 = vunpack.c.0.s8 %v4399
    %v4401 = vlaneseq
    %v4402 = vshrl.u32 %v4401, 7
    %v4403 = vsub.s32 %v4400, %v4402
    %v4404 = vrot.slane %v4237, %v4403
    %v4406 = vunpack.c.l.s4 1983009808
    %v4407 = vunpack.c.0.s8 %v4406
    %v4408 = vlaneseq
    %v4409 = vshrl.u32 %v4408, 7
    %v4410 = vsub.s32 %v4407, %v4409
    %v4411 = vrot.slane %v4397, %v4410
    %v4412 = vcombine.high %v4404, %v4404
    %v4413 = vcombine.high %v4411, %v4411
    %v4414 = vcombine.high %v4238, %v4238
    %v4416 = vunpack.c.l.s4 1983009808
    %v4417 = vunpack.c.0.s8 %v4416
    %v4418 = vlaneseq
    %v4419 = vshrl.u32 %v4418, 7
    %v4420 = vsub.s32 %v4417, %v4419
    %v4421 = vrot.slane %v4238, %v4420
    %v4423 = vunpack.c.l.s4 1983009808
    %v4424 = vunpack.c.0.s8 %v4423
    %v4425 = vlaneseq
    %v4426 = vshrl.u32 %v4425, 7
    %v4427 = vsub.s32 %v4424, %v4426
    %v4428 = vrot.slane %v4414, %v4427
    %v4429 = vcombine.high %v4421, %v4421
    %v4430 = vcombine.high %v4428, %v4428
    %v4431 = vcombine.high %v4239, %v4239
    %v4433 = vunpack.c.l.s4 1983009808
    %v4434 = vunpack.c.0.s8 %v4433
    %v4435 = vlaneseq
    %v4436 = vshrl.u32 %v4435, 7
    %v4437 = vsub.s32 %v4434, %v4436
    %v4438 = vrot.slane %v4239, %v4437
    %v4440 = vunpack.c.l.s4 1983009808
    %v4441 = vunpack.c.0.s8 %v4440
    %v4442 = vlaneseq
    %v4443 = vshrl.u32 %v4442, 7
    %v4444 = vsub.s32 %v4441, %v4443
    %v4445 = vrot.slane %v4431, %v4444
    %v4446 = vcombine.high %v4438, %v4438
    %v4447 = vcombine.high %v4445, %v4445
    %v4448 = vcombine.high %v4240, %v4240
    %v4450 = vunpack.c.l.s4 1983009808
    %v4451 = vunpack.c.0.s8 %v4450
    %v4452 = vlaneseq
    %v4453 = vshrl.u32 %v4452, 7
    %v4454 = vsub.s32 %v4451, %v4453
    %v4455 = vrot.slane %v4240, %v4454
    %v4457 = vunpack.c.l.s4 1983009808
    %v4458 = vunpack.c.0.s8 %v4457
    %v4459 = vlaneseq
    %v4460 = vshrl.u32 %v4459, 7
    %v4461 = vsub.s32 %v4458, %v4460
    %v4462 = vrot.slane %v4448, %v4461
    %v4463 = vcombine.high %v4455, %v4455
    %v4464 = vcombine.high %v4462, %v4462
    %v4465 = vcombine.high %v4241, %v4241
    %v4467 = vunpack.c.l.s4 1983009808
    %v4468 = vunpack.c.0.s8 %v4467
    %v4469 = vlaneseq
    %v4470 = vshrl.u32 %v4469, 7
    %v4471 = vsub.s32 %v4468, %v4470
    %v4472 = vrot.slane %v4241, %v4471
    %v4474 = vunpack.c.l.s4 1983009808
    %v4475 = vunpack.c.0.s8 %v4474
    %v4476 = vlaneseq
    %v4477 = vshrl.u32 %v4476, 7
    %v4478 = vsub.s32 %v4475, %v4477
    %v4479 = vrot.slane %v4465, %v4478
    %v4480 = vcombine.high %v4472, %v4472
    %v4481 = vcombine.high %v4479, %v4479
    %v4482 = vcombine.high %v4242, %v4242
    %v4484 = vunpack.c.l.s4 1983009808
    %v4485 = vunpack.c.0.s8 %v4484
    %v4486 = vlaneseq
    %v4487 = vshrl.u32 %v4486, 7
    %v4488 = vsub.s32 %v4485, %v4487
    %v4489 = vrot.slane %v4242, %v4488
    %v4491 = vunpack.c.l.s4 1983009808
    %v4492 = vunpack.c.0.s8 %v4491
    %v4493 = vlaneseq
    %v4494 = vshrl.u32 %v4493, 7
    %v4495 = vsub.s32 %v4492, %v4494
    %v4496 = vrot.slane %v4482, %v4495
    %v4497 = vcombine.high %v4489, %v4489
    %v4498 = vcombine.high %v4496, %v4496
    %v4499 = vcombine.high %v4243, %v4243
    %v4501 = vunpack.c.l.s4 1983009808
    %v4502 = vunpack.c.0.s8 %v4501
    %v4503 = vlaneseq
    %v4504 = vshrl.u32 %v4503, 7
    %v4505 = vsub.s32 %v4502, %v4504
    %v4506 = vrot.slane %v4243, %v4505
    %v4508 = vunpack.c.l.s4 1983009808
    %v4509 = vunpack.c.0.s8 %v4508
    %v4510 = vlaneseq
    %v4511 = vshrl.u32 %v4510, 7
    %v4512 = vsub.s32 %v4509, %v4511
    %v4513 = vrot.slane %v4499, %v4512
    %v4514 = vcombine.high %v4506, %v4506
    %v4515 = vcombine.high %v4513, %v4513
    %v4516 = vcombine.high %v4244, %v4244
    %v4518 = vunpack.c.l.s4 1983009808
    %v4519 = vunpack.c.0.s8 %v4518
    %v4520 = vlaneseq
    %v4521 = vshrl.u32 %v4520, 7
    %v4522 = vsub.s32 %v4519, %v4521
    %v4523 = vrot.slane %v4244, %v4522
    %v4525 = vunpack.c.l.s4 1983009808
    %v4526 = vunpack.c.0.s8 %v4525
    %v4527 = vlaneseq
    %v4528 = vshrl.u32 %v4527, 7
    %v4529 = vsub.s32 %v4526, %v4528
    %v4530 = vrot.slane %v4516, %v4529
    %v4531 = vcombine.high %v4523, %v4523
    %v4532 = vcombine.high %v4530, %v4530
    %v4533 = vcombine.high %v4245, %v4245
    %v4535 = vunpack.c.l.s4 1983009808
    %v4536 = vunpack.c.0.s8 %v4535
    %v4537 = vlaneseq
    %v4538 = vshrl.u32 %v4537, 7
    %v4539 = vsub.s32 %v4536, %v4538
    %v4540 = vrot.slane %v4245, %v4539
    %v4542 = vunpack.c.l.s4 1983009808
    %v4543 = vunpack.c.0.s8 %v4542
    %v4544 = vlaneseq
    %v4545 = vshrl.u32 %v4544, 7
    %v4546 = vsub.s32 %v4543, %v4545
    %v4547 = vrot.slane %v4533, %v4546
    %v4548 = vcombine.high %v4540, %v4540
    %v4549 = vcombine.high %v4547, %v4547
    %v4550 = vcombine.high %v4246, %v4246
    %v4552 = vunpack.c.l.s4 1983009808
    %v4553 = vunpack.c.0.s8 %v4552
    %v4554 = vlaneseq
    %v4555 = vshrl.u32 %v4554, 7
    %v4556 = vsub.s32 %v4553, %v4555
    %v4557 = vrot.slane %v4246, %v4556
    %v4559 = vunpack.c.l.s4 1983009808
    %v4560 = vunpack.c.0.s8 %v4559
    %v4561 = vlaneseq
    %v4562 = vshrl.u32 %v4561, 7
    %v4563 = vsub.s32 %v4560, %v4562
    %v4564 = vrot.slane %v4550, %v4563
    %v4565 = vcombine.high %v4557, %v4557
    %v4566 = vcombine.high %v4564, %v4564
    %v4567 = vcombine.high %v4247, %v4247
    %v4569 = vunpack.c.l.s4 1983009808
    %v4570 = vunpack.c.0.s8 %v4569
    %v4571 = vlaneseq
    %v4572 = vshrl.u32 %v4571, 7
    %v4573 = vsub.s32 %v4570, %v4572
    %v4574 = vrot.slane %v4247, %v4573
    %v4576 = vunpack.c.l.s4 1983009808
    %v4577 = vunpack.c.0.s8 %v4576
    %v4578 = vlaneseq
    %v4579 = vshrl.u32 %v4578, 7
    %v4580 = vsub.s32 %v4577, %v4579
    %v4581 = vrot.slane %v4567, %v4580
    %v4582 = vcombine.high %v4574, %v4574
    %v4583 = vcombine.high %v4581, %v4581
    %v4584 = vcombine.high %v4248, %v4248
    %v4586 = vunpack.c.l.s4 1983009808
    %v4587 = vunpack.c.0.s8 %v4586
    %v4588 = vlaneseq
    %v4589 = vshrl.u32 %v4588, 7
    %v4590 = vsub.s32 %v4587, %v4589
    %v4591 = vrot.slane %v4248, %v4590
    %v4593 = vunpack.c.l.s4 1983009808
    %v4594 = vunpack.c.0.s8 %v4593
    %v4595 = vlaneseq
    %v4596 = vshrl.u32 %v4595, 7
    %v4597 = vsub.s32 %v4594, %v4596
    %v4598 = vrot.slane %v4584, %v4597
    %v4599 = vcombine.high %v4591, %v4591
    %v4600 = vcombine.high %v4598, %v4598
    %v4601 = vcombine.high %v4249, %v4249
    %v4603 = vunpack.c.l.s4 1983009808
    %v4604 = vunpack.c.0.s8 %v4603
    %v4605 = vlaneseq
    %v4606 = vshrl.u32 %v4605, 7
    %v4607 = vsub.s32 %v4604, %v4606
    %v4608 = vrot.slane %v4249, %v4607
    %v4610 = vunpack.c.l.s4 1983009808
    %v4611 = vunpack.c.0.s8 %v4610
    %v4612 = vlaneseq
    %v4613 = vshrl.u32 %v4612, 7
    %v4614 = vsub.s32 %v4611, %v4613
    %v4615 = vrot.slane %v4601, %v4614
    %v4616 = vcombine.high %v4608, %v4608
    %v4617 = vcombine.high %v4615, %v4615
    %v4618 = vcombine.high %v4250, %v4250
    %v4620 = vunpack.c.l.s4 1983009808
    %v4621 = vunpack.c.0.s8 %v4620
    %v4622 = vlaneseq
    %v4623 = vshrl.u32 %v4622, 7
    %v4624 = vsub.s32 %v4621, %v4623
    %v4625 = vrot.slane %v4250, %v4624
    %v4627 = vunpack.c.l.s4 1983009808
    %v4628 = vunpack.c.0.s8 %v4627
    %v4629 = vlaneseq
    %v4630 = vshrl.u32 %v4629, 7
    %v4631 = vsub.s32 %v4628, %v4630
    %v4632 = vrot.slane %v4618, %v4631
    %v4633 = vcombine.high %v4625, %v4625
    %v4634 = vcombine.high %v4632, %v4632
    %v4635 = vcombine.high %v4251, %v4251
    %v4637 = vunpack.c.l.s4 1983009808
    %v4638 = vunpack.c.0.s8 %v4637
    %v4639 = vlaneseq
    %v4640 = vshrl.u32 %v4639, 7
    %v4641 = vsub.s32 %v4638, %v4640
    %v4642 = vrot.slane %v4251, %v4641
    %v4644 = vunpack.c.l.s4 1983009808
    %v4645 = vunpack.c.0.s8 %v4644
    %v4646 = vlaneseq
    %v4647 = vshrl.u32 %v4646, 7
    %v4648 = vsub.s32 %v4645, %v4647
    %v4649 = vrot.slane %v4635, %v4648
    %v4650 = vcombine.high %v4642, %v4642
    %v4651 = vcombine.high %v4649, %v4649
    %v4652 = vcombine.high %v4252, %v4252
    %v4654 = vunpack.c.l.s4 1983009808
    %v4655 = vunpack.c.0.s8 %v4654
    %v4656 = vlaneseq
    %v4657 = vshrl.u32 %v4656, 7
    %v4658 = vsub.s32 %v4655, %v4657
    %v4659 = vrot.slane %v4252, %v4658
    %v4661 = vunpack.c.l.s4 1983009808
    %v4662 = vunpack.c.0.s8 %v4661
    %v4663 = vlaneseq
    %v4664 = vshrl.u32 %v4663, 7
    %v4665 = vsub.s32 %v4662, %v4664
    %v4666 = vrot.slane %v4652, %v4665
    %v4667 = vcombine.high %v4659, %v4659
    %v4668 = vcombine.high %v4666, %v4666
    %v4669 = vcombine.high %v4253, %v4253
    %v4671 = vunpack.c.l.s4 1983009808
    %v4672 = vunpack.c.0.s8 %v4671
    %v4673 = vlaneseq
    %v4674 = vshrl.u32 %v4673, 7
    %v4675 = vsub.s32 %v4672, %v4674
    %v4676 = vrot.slane %v4253, %v4675
    %v4678 = vunpack.c.l.s4 1983009808
    %v4679 = vunpack.c.0.s8 %v4678
    %v4680 = vlaneseq
    %v4681 = vshrl.u32 %v4680, 7
    %v4682 = vsub.s32 %v4679, %v4681
    %v4683 = vrot.slane %v4669, %v4682
    %v4684 = vcombine.high %v4676, %v4676
    %v4685 = vcombine.high %v4683, %v4683
    %v4686 = vcombine.high %v4254, %v4254
    %v4688 = vunpack.c.l.s4 1983009808
    %v4689 = vunpack.c.0.s8 %v4688
    %v4690 = vlaneseq
    %v4691 = vshrl.u32 %v4690, 7
    %v4692 = vsub.s32 %v4689, %v4691
    %v4693 = vrot.slane %v4254, %v4692
    %v4695 = vunpack.c.l.s4 1983009808
    %v4696 = vunpack.c.0.s8 %v4695
    %v4697 = vlaneseq
    %v4698 = vshrl.u32 %v4697, 7
    %v4699 = vsub.s32 %v4696, %v4698
    %v4700 = vrot.slane %v4686, %v4699
    %v4701 = vcombine.high %v4693, %v4693
    %v4702 = vcombine.high %v4700, %v4700
    %v4703 = vcombine.high %v4255, %v4255
    %v4705 = vunpack.c.l.s4 1983009808
    %v4706 = vunpack.c.0.s8 %v4705
    %v4707 = vlaneseq
    %v4708 = vshrl.u32 %v4707, 7
    %v4709 = vsub.s32 %v4706, %v4708
    %v4710 = vrot.slane %v4255, %v4709
    %v4712 = vunpack.c.l.s4 1983009808
    %v4713 = vunpack.c.0.s8 %v4712
    %v4714 = vlaneseq
    %v4715 = vshrl.u32 %v4714, 7
    %v4716 = vsub.s32 %v4713, %v4715
    %v4717 = vrot.slane %v4703, %v4716
    %v4718 = vcombine.high %v4710, %v4710
    %v4719 = vcombine.high %v4717, %v4717
    %v4720 = vcombine.high %v4256, %v4256
    %v4722 = vunpack.c.l.s4 1983009808
    %v4723 = vunpack.c.0.s8 %v4722
    %v4724 = vlaneseq
    %v4725 = vshrl.u32 %v4724, 7
    %v4726 = vsub.s32 %v4723, %v4725
    %v4727 = vrot.slane %v4256, %v4726
    %v4729 = vunpack.c.l.s4 1983009808
    %v4730 = vunpack.c.0.s8 %v4729
    %v4731 = vlaneseq
    %v4732 = vshrl.u32 %v4731, 7
    %v4733 = vsub.s32 %v4730, %v4732
    %v4734 = vrot.slane %v4720, %v4733
    %v4735 = vcombine.high %v4727, %v4727
    %v4736 = vcombine.high %v4734, %v4734
    %v4737 = vcombine.high %v4257, %v4257
    %v4739 = vunpack.c.l.s4 1983009808
    %v4740 = vunpack.c.0.s8 %v4739
    %v4741 = vlaneseq
    %v4742 = vshrl.u32 %v4741, 7
    %v4743 = vsub.s32 %v4740, %v4742
    %v4744 = vrot.slane %v4257, %v4743
    %v4746 = vunpack.c.l.s4 1983009808
    %v4747 = vunpack.c.0.s8 %v4746
    %v4748 = vlaneseq
    %v4749 = vshrl.u32 %v4748, 7
    %v4750 = vsub.s32 %v4747, %v4749
    %v4751 = vrot.slane %v4737, %v4750
    %v4752 = vcombine.high %v4744, %v4744
    %v4753 = vcombine.high %v4751, %v4751
    %v4754 = vcombine.high %v4258, %v4258
    %v4756 = vunpack.c.l.s4 1983009808
    %v4757 = vunpack.c.0.s8 %v4756
    %v4758 = vlaneseq
    %v4759 = vshrl.u32 %v4758, 7
    %v4760 = vsub.s32 %v4757, %v4759
    %v4761 = vrot.slane %v4258, %v4760
    %v4763 = vunpack.c.l.s4 1983009808
    %v4764 = vunpack.c.0.s8 %v4763
    %v4765 = vlaneseq
    %v4766 = vshrl.u32 %v4765, 7
    %v4767 = vsub.s32 %v4764, %v4766
    %v4768 = vrot.slane %v4754, %v4767
    %v4769 = vcombine.high %v4761, %v4761
    %v4770 = vcombine.high %v4768, %v4768
    %v4771 = vcombine.high %v4259, %v4259
    %v4773 = vunpack.c.l.s4 1983009808
    %v4774 = vunpack.c.0.s8 %v4773
    %v4775 = vlaneseq
    %v4776 = vshrl.u32 %v4775, 7
    %v4777 = vsub.s32 %v4774, %v4776
    %v4778 = vrot.slane %v4259, %v4777
    %v4780 = vunpack.c.l.s4 1983009808
    %v4781 = vunpack.c.0.s8 %v4780
    %v4782 = vlaneseq
    %v4783 = vshrl.u32 %v4782, 7
    %v4784 = vsub.s32 %v4781, %v4783
    %v4785 = vrot.slane %v4771, %v4784
    %v4786 = vcombine.high %v4778, %v4778
    %v4787 = vcombine.high %v4785, %v4785
    %v4788 = vcombine.high %v4260, %v4260
    %v4790 = vunpack.c.l.s4 1983009808
    %v4791 = vunpack.c.0.s8 %v4790
    %v4792 = vlaneseq
    %v4793 = vshrl.u32 %v4792, 7
    %v4794 = vsub.s32 %v4791, %v4793
    %v4795 = vrot.slane %v4260, %v4794
    %v4797 = vunpack.c.l.s4 1983009808
    %v4798 = vunpack.c.0.s8 %v4797
    %v4799 = vlaneseq
    %v4800 = vshrl.u32 %v4799, 7
    %v4801 = vsub.s32 %v4798, %v4800
    %v4802 = vrot.slane %v4788, %v4801
    %v4803 = vcombine.high %v4795, %v4795
    %v4804 = vcombine.high %v4802, %v4802
    %v4805 = vcombine.high %v4261, %v4261
    %v4807 = vunpack.c.l.s4 1983009808
    %v4808 = vunpack.c.0.s8 %v4807
    %v4809 = vlaneseq
    %v4810 = vshrl.u32 %v4809, 7
    %v4811 = vsub.s32 %v4808, %v4810
    %v4812 = vrot.slane %v4261, %v4811
    %v4814 = vunpack.c.l.s4 1983009808
    %v4815 = vunpack.c.0.s8 %v4814
    %v4816 = vlaneseq
    %v4817 = vshrl.u32 %v4816, 7
    %v4818 = vsub.s32 %v4815, %v4817
    %v4819 = vrot.slane %v4805, %v4818
    %v4820 = vcombine.high %v4812, %v4812
    %v4821 = vcombine.high %v4819, %v4819
    %v4822 = vcombine.high %v4262, %v4262
    %v4824 = vunpack.c.l.s4 1983009808
    %v4825 = vunpack.c.0.s8 %v4824
    %v4826 = vlaneseq
    %v4827 = vshrl.u32 %v4826, 7
    %v4828 = vsub.s32 %v4825, %v4827
    %v4829 = vrot.slane %v4262, %v4828
    %v4831 = vunpack.c.l.s4 1983009808
    %v4832 = vunpack.c.0.s8 %v4831
    %v4833 = vlaneseq
    %v4834 = vshrl.u32 %v4833, 7
    %v4835 = vsub.s32 %v4832, %v4834
    %v4836 = vrot.slane %v4822, %v4835
    %v4837 = vcombine.high %v4829, %v4829
    %v4838 = vcombine.high %v4836, %v4836
    %v4967 = vrot.slane %v4302, 7
    %v4968 = vrot.slane %v4967, 2
    %v4969 = vrot.slane %v4310, 7
    %v4970 = vrot.slane %v4969, 2
    %v4971 = vrot.slane %v4309, 7
    %v4972 = vrot.slane %v4971, 2
    %v4973 = vrot.slane %v4311, 7
    %v4974 = vrot.slane %v4973, 2
    %v4975 = vrot.slane %v4319, 7
    %v4976 = vrot.slane %v4975, 2
    %v4977 = vrot.slane %v4327, 7
    %v4978 = vrot.slane %v4977, 2
    %v4979 = vrot.slane %v4326, 7
    %v4980 = vrot.slane %v4979, 2
    %v4981 = vrot.slane %v4328, 7
    %v4982 = vrot.slane %v4981, 2
    %v4983 = vrot.slane %v4336, 7
    %v4984 = vrot.slane %v4983, 2
    %v4985 = vrot.slane %v4344, 7
    %v4986 = vrot.slane %v4985, 2
    %v4987 = vrot.slane %v4343, 7
    %v4988 = vrot.slane %v4987, 2
    %v4989 = vrot.slane %v4345, 7
    %v4990 = vrot.slane %v4989, 2
    %v4991 = vrot.slane %v4353, 7
    %v4992 = vrot.slane %v4991, 2
    %v4993 = vrot.slane %v4361, 7
    %v4994 = vrot.slane %v4993, 2
    %v4995 = vrot.slane %v4360, 7
    %v4996 = vrot.slane %v4995, 2
    %v4997 = vrot.slane %v4362, 7
    %v4998 = vrot.slane %v4997, 2
    %v4999 = vrot.slane %v4370, 7
    %v5000 = vrot.slane %v4999, 2
    %v5001 = vrot.slane %v4378, 7
    %v5002 = vrot.slane %v5001, 2
    %v5003 = vrot.slane %v4377, 7
    %v5004 = vrot.slane %v5003, 2
    %v5005 = vrot.slane %v4379, 7
    %v5006 = vrot.slane %v5005, 2
    %v5007 = vrot.slane %v4387, 7
    %v5008 = vrot.slane %v5007, 2
    %v5009 = vrot.slane %v4395, 7
    %v5010 = vrot.slane %v5009, 2
    %v5011 = vrot.slane %v4394, 7
    %v5012 = vrot.slane %v5011, 2
    %v5013 = vrot.slane %v4396, 7
    %v5014 = vrot.slane %v5013, 2
    %v5015 = vrot.slane %v4404, 7
    %v5016 = vrot.slane %v5015, 2
    %v5017 = vrot.slane %v4412, 7
    %v5018 = vrot.slane %v5017, 2
    %v5019 = vrot.slane %v4411, 7
    %v5020 = vrot.slane %v5019, 2
    %v5021 = vrot.slane %v4413, 7
    %v5022 = vrot.slane %v5021, 2
    %v5023 = vrot.slane %v4421, 7
    %v5024 = vrot.slane %v5023, 2
    %v5025 = vrot.slane %v4429, 7
    %v5026 = vrot.slane %v5025, 2
    %v5027 = vrot.slane %v4428, 7
    %v5028 = vrot.slane %v5027, 2
    %v5029 = vrot.slane %v4430, 7
    %v5030 = vrot.slane %v5029, 2
    %v5031 = vrot.slane %v4438, 7
    %v5032 = vrot.slane %v5031, 2
    %v5033 = vrot.slane %v4446, 7
    %v5034 = vrot.slane %v5033, 2
    %v5035 = vrot.slane %v4445, 7
    %v5036 = vrot.slane %v5035, 2
    %v5037 = vrot.slane %v4447, 7
    %v5038 = vrot.slane %v5037, 2
    %v5039 = vrot.slane %v4455, 7
    %v5040 = vrot.slane %v5039, 2
    %v5041 = vrot.slane %v4463, 7
    %v5042 = vrot.slane %v5041, 2
    %v5043 = vrot.slane %v4462, 7
    %v5044 = vrot.slane %v5043, 2
    %v5045 = vrot.slane %v4464, 7
    %v5046 = vrot.slane %v5045, 2
    %v5047 = vrot.slane %v4472, 7
    %v5048 = vrot.slane %v5047, 2
    %v5049 = vrot.slane %v4480, 7
    %v5050 = vrot.slane %v5049, 2
    %v5051 = vrot.slane %v4479, 7
    %v5052 = vrot.slane %v5051, 2
    %v5053 = vrot.slane %v4481, 7
    %v5054 = vrot.slane %v5053, 2
    %v5055 = vrot.slane %v4489, 7
    %v5056 = vrot.slane %v5055, 2
    %v5057 = vrot.slane %v4497, 7
    %v5058 = vrot.slane %v5057, 2
    %v5059 = vrot.slane %v4496, 7
    %v5060 = vrot.slane %v5059, 2
    %v5061 = vrot.slane %v4498, 7
    %v5062 = vrot.slane %v5061, 2
    %v5063 = vrot.slane %v4506, 7
    %v5064 = vrot.slane %v5063, 2
    %v5065 = vrot.slane %v4514, 7
    %v5066 = vrot.slane %v5065, 2
    %v5067 = vrot.slane %v4513, 7
    %v5068 = vrot.slane %v5067, 2
    %v5069 = vrot.slane %v4515, 7
    %v5070 = vrot.slane %v5069, 2
    %v5071 = vrot.slane %v4523, 7
    %v5072 = vrot.slane %v5071, 2
    %v5073 = vrot.slane %v4531, 7
    %v5074 = vrot.slane %v5073, 2
    %v5075 = vrot.slane %v4530, 7
    %v5076 = vrot.slane %v5075, 2
    %v5077 = vrot.slane %v4532, 7
    %v5078 = vrot.slane %v5077, 2
    %v5079 = vrot.slane %v4540, 7
    %v5080 = vrot.slane %v5079, 2
    %v5081 = vrot.slane %v4548, 7
    %v5082 = vrot.slane %v5081, 2
    %v5083 = vrot.slane %v4547, 7
    %v5084 = vrot.slane %v5083, 2
    %v5085 = vrot.slane %v4549, 7
    %v5086 = vrot.slane %v5085, 2
    %v5087 = vrot.slane %v4557, 7
    %v5088 = vrot.slane %v5087, 2
    %v5089 = vrot.slane %v4565, 7
    %v5090 = vrot.slane %v5089, 2
    %v5091 = vrot.slane %v4564, 7
    %v5092 = vrot.slane %v5091, 2
    %v5093 = vrot.slane %v4566, 7
    %v5094 = vrot.slane %v5093, 2
    %v5095 = vrot.slane %v4574, 7
    %v5096 = vrot.slane %v5095, 2
    %v5097 = vrot.slane %v4582, 7
    %v5098 = vrot.slane %v5097, 2
    %v5099 = vrot.slane %v4581, 7
    %v5100 = vrot.slane %v5099, 2
    %v5101 = vrot.slane %v4583, 7
    %v5102 = vrot.slane %v5101, 2
    %v5103 = vrot.slane %v4591, 7
    %v5104 = vrot.slane %v5103, 2
    %v5105 = vrot.slane %v4599, 7
    %v5106 = vrot.slane %v5105, 2
    %v5107 = vrot.slane %v4598, 7
    %v5108 = vrot.slane %v5107, 2
    %v5109 = vrot.slane %v4600, 7
    %v5110 = vrot.slane %v5109, 2
    %v5111 = vrot.slane %v4608, 7
    %v5112 = vrot.slane %v5111, 2
    %v5113 = vrot.slane %v4616, 7
    %v5114 = vrot.slane %v5113, 2
    %v5115 = vrot.slane %v4615, 7
    %v5116 = vrot.slane %v5115, 2
    %v5117 = vrot.slane %v4617, 7
    %v5118 = vrot.slane %v5117, 2
    %v5119 = vrot.slane %v4625, 7
    %v5120 = vrot.slane %v5119, 2
    %v5121 = vrot.slane %v4633, 7
    %v5122 = vrot.slane %v5121, 2
    %v5123 = vrot.slane %v4632, 7
    %v5124 = vrot.slane %v5123, 2
    %v5125 = vrot.slane %v4634, 7
    %v5126 = vrot.slane %v5125, 2
    %v5127 = vrot.slane %v4642, 7
    %v5128 = vrot.slane %v5127, 2
    %v5129 = vrot.slane %v4650, 7
    %v5130 = vrot.slane %v5129, 2
    %v5131 = vrot.slane %v4649, 7
    %v5132 = vrot.slane %v5131, 2
    %v5133 = vrot.slane %v4651, 7
    %v5134 = vrot.slane %v5133, 2
    %v5135 = vrot.slane %v4659, 7
    %v5136 = vrot.slane %v5135, 2
    %v5137 = vrot.slane %v4667, 7
    %v5138 = vrot.slane %v5137, 2
    %v5139 = vrot.slane %v4666, 7
    %v5140 = vrot.slane %v5139, 2
    %v5141 = vrot.slane %v4668, 7
    %v5142 = vrot.slane %v5141, 2
    %v5143 = vrot.slane %v4676, 7
    %v5144 = vrot.slane %v5143, 2
    %v5145 = vrot.slane %v4684, 7
    %v5146 = vrot.slane %v5145, 2
    %v5147 = vrot.slane %v4683, 7
    %v5148 = vrot.slane %v5147, 2
    %v5149 = vrot.slane %v4685, 7
    %v5150 = vrot.slane %v5149, 2
    %v5151 = vrot.slane %v4693, 7
    %v5152 = vrot.slane %v5151, 2
    %v5153 = vrot.slane %v4701, 7
    %v5154 = vrot.slane %v5153, 2
    %v5155 = vrot.slane %v4700, 7
    %v5156 = vrot.slane %v5155, 2
    %v5157 = vrot.slane %v4702, 7
    %v5158 = vrot.slane %v5157, 2
    %v5159 = vrot.slane %v4710, 7
    %v5160 = vrot.slane %v5159, 2
    %v5161 = vrot.slane %v4718, 7
    %v5162 = vrot.slane %v5161, 2
    %v5163 = vrot.slane %v4717, 7
    %v5164 = vrot.slane %v5163, 2
    %v5165 = vrot.slane %v4719, 7
    %v5166 = vrot.slane %v5165, 2
    %v5167 = vrot.slane %v4727, 7
    %v5168 = vrot.slane %v5167, 2
    %v5169 = vrot.slane %v4735, 7
    %v5170 = vrot.slane %v5169, 2
    %v5171 = vrot.slane %v4734, 7
    %v5172 = vrot.slane %v5171, 2
    %v5173 = vrot.slane %v4736, 7
    %v5174 = vrot.slane %v5173, 2
    %v5175 = vrot.slane %v4744, 7
    %v5176 = vrot.slane %v5175, 2
    %v5177 = vrot.slane %v4752, 7
    %v5178 = vrot.slane %v5177, 2
    %v5179 = vrot.slane %v4751, 7
    %v5180 = vrot.slane %v5179, 2
    %v5181 = vrot.slane %v4753, 7
    %v5182 = vrot.slane %v5181, 2
    %v5183 = vrot.slane %v4761, 7
    %v5184 = vrot.slane %v5183, 2
    %v5185 = vrot.slane %v4769, 7
    %v5186 = vrot.slane %v5185, 2
    %v5187 = vrot.slane %v4768, 7
    %v5188 = vrot.slane %v5187, 2
    %v5189 = vrot.slane %v4770, 7
    %v5190 = vrot.slane %v5189, 2
    %v5191 = vrot.slane %v4778, 7
    %v5192 = vrot.slane %v5191, 2
    %v5193 = vrot.slane %v4786, 7
    %v5194 = vrot.slane %v5193, 2
    %v5195 = vrot.slane %v4785, 7
    %v5196 = vrot.slane %v5195, 2
    %v5197 = vrot.slane %v4787, 7
    %v5198 = vrot.slane %v5197, 2
    %v5199 = vrot.slane %v4795, 7
    %v5200 = vrot.slane %v5199, 2
    %v5201 = vrot.slane %v4803, 7
    %v5202 = vrot.slane %v5201, 2
    %v5203 = vrot.slane %v4802, 7
    %v5204 = vrot.slane %v5203, 2
    %v5205 = vrot.slane %v4804, 7
    %v5206 = vrot.slane %v5205, 2
    %v5207 = vrot.slane %v4812, 7
    %v5208 = vrot.slane %v5207, 2
    %v5209 = vrot.slane %v4820, 7
    %v5210 = vrot.slane %v5209, 2
    %v5211 = vrot.slane %v4819, 7
    %v5212 = vrot.slane %v5211, 2
    %v5213 = vrot.slane %v4821, 7
    %v5214 = vrot.slane %v5213, 2
    %v5215 = vrot.slane %v4829, 7
    %v5216 = vrot.slane %v5215, 2
    %v5217 = vrot.slane %v4837, 7
    %v5218 = vrot.slane %v5217, 2
    %v5219 = vrot.slane %v4836, 7
    %v5220 = vrot.slane %v5219, 2
    %v5221 = vrot.slane %v4838, 7
    %v5222 = vrot.slane %v5221, 2
    %v5351 = vmax.f32 %v4302, %v4968
    %v5352 = vmax.f32 %v4310, %v4970
    %v5353 = vmax.f32 %v4309, %v4972
    %v5354 = vmax.f32 %v4311, %v4974
    %v5355 = vmax.f32 %v4319, %v4976
    %v5356 = vmax.f32 %v4327, %v4978
    %v5357 = vmax.f32 %v4326, %v4980
    %v5358 = vmax.f32 %v4328, %v4982
    %v5359 = vmax.f32 %v4336, %v4984
    %v5360 = vmax.f32 %v4344, %v4986
    %v5361 = vmax.f32 %v4343, %v4988
    %v5362 = vmax.f32 %v4345, %v4990
    %v5363 = vmax.f32 %v4353, %v4992
    %v5364 = vmax.f32 %v4361, %v4994
    %v5365 = vmax.f32 %v4360, %v4996
    %v5366 = vmax.f32 %v4362, %v4998
    %v5367 = vmax.f32 %v4370, %v5000
    %v5368 = vmax.f32 %v4378, %v5002
    %v5369 = vmax.f32 %v4377, %v5004
    %v5370 = vmax.f32 %v4379, %v5006
    %v5371 = vmax.f32 %v4387, %v5008
    %v5372 = vmax.f32 %v4395, %v5010
    %v5373 = vmax.f32 %v4394, %v5012
    %v5374 = vmax.f32 %v4396, %v5014
    %v5375 = vmax.f32 %v4404, %v5016
    %v5376 = vmax.f32 %v4412, %v5018
    %v5377 = vmax.f32 %v4411, %v5020
    %v5378 = vmax.f32 %v4413, %v5022
    %v5379 = vmax.f32 %v4421, %v5024
    %v5380 = vmax.f32 %v4429, %v5026
    %v5381 = vmax.f32 %v4428, %v5028
    %v5382 = vmax.f32 %v4430, %v5030
    %v5383 = vmax.f32 %v4438, %v5032
    %v5384 = vmax.f32 %v4446, %v5034
    %v5385 = vmax.f32 %v4445, %v5036
    %v5386 = vmax.f32 %v4447, %v5038
    %v5387 = vmax.f32 %v4455, %v5040
    %v5388 = vmax.f32 %v4463, %v5042
    %v5389 = vmax.f32 %v4462, %v5044
    %v5390 = vmax.f32 %v4464, %v5046
    %v5391 = vmax.f32 %v4472, %v5048
    %v5392 = vmax.f32 %v4480, %v5050
    %v5393 = vmax.f32 %v4479, %v5052
    %v5394 = vmax.f32 %v4481, %v5054
    %v5395 = vmax.f32 %v4489, %v5056
    %v5396 = vmax.f32 %v4497, %v5058
    %v5397 = vmax.f32 %v4496, %v5060
    %v5398 = vmax.f32 %v4498, %v5062
    %v5399 = vmax.f32 %v4506, %v5064
    %v5400 = vmax.f32 %v4514, %v5066
    %v5401 = vmax.f32 %v4513, %v5068
    %v5402 = vmax.f32 %v4515, %v5070
    %v5403 = vmax.f32 %v4523, %v5072
    %v5404 = vmax.f32 %v4531, %v5074
    %v5405 = vmax.f32 %v4530, %v5076
    %v5406 = vmax.f32 %v4532, %v5078
    %v5407 = vmax.f32 %v4540, %v5080
    %v5408 = vmax.f32 %v4548, %v5082
    %v5409 = vmax.f32 %v4547, %v5084
    %v5410 = vmax.f32 %v4549, %v5086
    %v5411 = vmax.f32 %v4557, %v5088
    %v5412 = vmax.f32 %v4565, %v5090
    %v5413 = vmax.f32 %v4564, %v5092
    %v5414 = vmax.f32 %v4566, %v5094
    %v5415 = vmax.f32 %v4574, %v5096
    %v5416 = vmax.f32 %v4582, %v5098
    %v5417 = vmax.f32 %v4581, %v5100
    %v5418 = vmax.f32 %v4583, %v5102
    %v5419 = vmax.f32 %v4591, %v5104
    %v5420 = vmax.f32 %v4599, %v5106
    %v5421 = vmax.f32 %v4598, %v5108
    %v5422 = vmax.f32 %v4600, %v5110
    %v5423 = vmax.f32 %v4608, %v5112
    %v5424 = vmax.f32 %v4616, %v5114
    %v5425 = vmax.f32 %v4615, %v5116
    %v5426 = vmax.f32 %v4617, %v5118
    %v5427 = vmax.f32 %v4625, %v5120
    %v5428 = vmax.f32 %v4633, %v5122
    %v5429 = vmax.f32 %v4632, %v5124
    %v5430 = vmax.f32 %v4634, %v5126
    %v5431 = vmax.f32 %v4642, %v5128
    %v5432 = vmax.f32 %v4650, %v5130
    %v5433 = vmax.f32 %v4649, %v5132
    %v5434 = vmax.f32 %v4651, %v5134
    %v5435 = vmax.f32 %v4659, %v5136
    %v5436 = vmax.f32 %v4667, %v5138
    %v5437 = vmax.f32 %v4666, %v5140
    %v5438 = vmax.f32 %v4668, %v5142
    %v5439 = vmax.f32 %v4676, %v5144
    %v5440 = vmax.f32 %v4684, %v5146
    %v5441 = vmax.f32 %v4683, %v5148
    %v5442 = vmax.f32 %v4685, %v5150
    %v5443 = vmax.f32 %v4693, %v5152
    %v5444 = vmax.f32 %v4701, %v5154
    %v5445 = vmax.f32 %v4700, %v5156
    %v5446 = vmax.f32 %v4702, %v5158
    %v5447 = vmax.f32 %v4710, %v5160
    %v5448 = vmax.f32 %v4718, %v5162
    %v5449 = vmax.f32 %v4717, %v5164
    %v5450 = vmax.f32 %v4719, %v5166
    %v5451 = vmax.f32 %v4727, %v5168
    %v5452 = vmax.f32 %v4735, %v5170
    %v5453 = vmax.f32 %v4734, %v5172
    %v5454 = vmax.f32 %v4736, %v5174
    %v5455 = vmax.f32 %v4744, %v5176
    %v5456 = vmax.f32 %v4752, %v5178
    %v5457 = vmax.f32 %v4751, %v5180
    %v5458 = vmax.f32 %v4753, %v5182
    %v5459 = vmax.f32 %v4761, %v5184
    %v5460 = vmax.f32 %v4769, %v5186
    %v5461 = vmax.f32 %v4768, %v5188
    %v5462 = vmax.f32 %v4770, %v5190
    %v5463 = vmax.f32 %v4778, %v5192
    %v5464 = vmax.f32 %v4786, %v5194
    %v5465 = vmax.f32 %v4785, %v5196
    %v5466 = vmax.f32 %v4787, %v5198
    %v5467 = vmax.f32 %v4795, %v5200
    %v5468 = vmax.f32 %v4803, %v5202
    %v5469 = vmax.f32 %v4802, %v5204
    %v5470 = vmax.f32 %v4804, %v5206
    %v5471 = vmax.f32 %v4812, %v5208
    %v5472 = vmax.f32 %v4820, %v5210
    %v5473 = vmax.f32 %v4819, %v5212
    %v5474 = vmax.f32 %v4821, %v5214
    %v5475 = vmax.f32 %v4829, %v5216
    %v5476 = vmax.f32 %v4837, %v5218
    %v5477 = vmax.f32 %v4836, %v5220
    %v5478 = vmax.f32 %v4838, %v5222
    %v5607 = vlaneseq
    %v5608 = vshrl.u32 %v5607, 7
    %v5609 = vsub.s32 0, %v5608
    %v5610 = vrot.slane %v5351, %v5609
    %v5611 = vlaneseq
    %v5612 = vshrl.u32 %v5611, 7
    %v5613 = vsub.s32 0, %v5612
    %v5614 = vrot.slane %v5352, %v5613
    %v5615 = vlaneseq
    %v5616 = vshrl.u32 %v5615, 7
    %v5617 = vsub.s32 0, %v5616
    %v5618 = vrot.slane %v5353, %v5617
    %v5619 = vlaneseq
    %v5620 = vshrl.u32 %v5619, 7
    %v5621 = vsub.s32 0, %v5620
    %v5622 = vrot.slane %v5354, %v5621
    %v5623 = vlaneseq
    %v5624 = vshrl.u32 %v5623, 7
    %v5625 = vsub.s32 0, %v5624
    %v5626 = vrot.slane %v5355, %v5625
    %v5627 = vlaneseq
    %v5628 = vshrl.u32 %v5627, 7
    %v5629 = vsub.s32 0, %v5628
    %v5630 = vrot.slane %v5356, %v5629
    %v5631 = vlaneseq
    %v5632 = vshrl.u32 %v5631, 7
    %v5633 = vsub.s32 0, %v5632
    %v5634 = vrot.slane %v5357, %v5633
    %v5635 = vlaneseq
    %v5636 = vshrl.u32 %v5635, 7
    %v5637 = vsub.s32 0, %v5636
    %v5638 = vrot.slane %v5358, %v5637
    %v5639 = vlaneseq
    %v5640 = vshrl.u32 %v5639, 7
    %v5641 = vsub.s32 0, %v5640
    %v5642 = vrot.slane %v5359, %v5641
    %v5643 = vlaneseq
    %v5644 = vshrl.u32 %v5643, 7
    %v5645 = vsub.s32 0, %v5644
    %v5646 = vrot.slane %v5360, %v5645
    %v5647 = vlaneseq
    %v5648 = vshrl.u32 %v5647, 7
    %v5649 = vsub.s32 0, %v5648
    %v5650 = vrot.slane %v5361, %v5649
    %v5651 = vlaneseq
    %v5652 = vshrl.u32 %v5651, 7
    %v5653 = vsub.s32 0, %v5652
    %v5654 = vrot.slane %v5362, %v5653
    %v5655 = vlaneseq
    %v5656 = vshrl.u32 %v5655, 7
    %v5657 = vsub.s32 0, %v5656
    %v5658 = vrot.slane %v5363, %v5657
    %v5659 = vlaneseq
    %v5660 = vshrl.u32 %v5659, 7
    %v5661 = vsub.s32 0, %v5660
    %v5662 = vrot.slane %v5364, %v5661
    %v5663 = vlaneseq
    %v5664 = vshrl.u32 %v5663, 7
    %v5665 = vsub.s32 0, %v5664
    %v5666 = vrot.slane %v5365, %v5665
    %v5667 = vlaneseq
    %v5668 = vshrl.u32 %v5667, 7
    %v5669 = vsub.s32 0, %v5668
    %v5670 = vrot.slane %v5366, %v5669
    %v5671 = vlaneseq
    %v5672 = vshrl.u32 %v5671, 7
    %v5673 = vsub.s32 0, %v5672
    %v5674 = vrot.slane %v5367, %v5673
    %v5675 = vlaneseq
    %v5676 = vshrl.u32 %v5675, 7
    %v5677 = vsub.s32 0, %v5676
    %v5678 = vrot.slane %v5368, %v5677
    %v5679 = vlaneseq
    %v5680 = vshrl.u32 %v5679, 7
    %v5681 = vsub.s32 0, %v5680
    %v5682 = vrot.slane %v5369, %v5681
    %v5683 = vlaneseq
    %v5684 = vshrl.u32 %v5683, 7
    %v5685 = vsub.s32 0, %v5684
    %v5686 = vrot.slane %v5370, %v5685
    %v5687 = vlaneseq
    %v5688 = vshrl.u32 %v5687, 7
    %v5689 = vsub.s32 0, %v5688
    %v5690 = vrot.slane %v5371, %v5689
    %v5691 = vlaneseq
    %v5692 = vshrl.u32 %v5691, 7
    %v5693 = vsub.s32 0, %v5692
    %v5694 = vrot.slane %v5372, %v5693
    %v5695 = vlaneseq
    %v5696 = vshrl.u32 %v5695, 7
    %v5697 = vsub.s32 0, %v5696
    %v5698 = vrot.slane %v5373, %v5697
    %v5699 = vlaneseq
    %v5700 = vshrl.u32 %v5699, 7
    %v5701 = vsub.s32 0, %v5700
    %v5702 = vrot.slane %v5374, %v5701
    %v5703 = vlaneseq
    %v5704 = vshrl.u32 %v5703, 7
    %v5705 = vsub.s32 0, %v5704
    %v5706 = vrot.slane %v5375, %v5705
    %v5707 = vlaneseq
    %v5708 = vshrl.u32 %v5707, 7
    %v5709 = vsub.s32 0, %v5708
    %v5710 = vrot.slane %v5376, %v5709
    %v5711 = vlaneseq
    %v5712 = vshrl.u32 %v5711, 7
    %v5713 = vsub.s32 0, %v5712
    %v5714 = vrot.slane %v5377, %v5713
    %v5715 = vlaneseq
    %v5716 = vshrl.u32 %v5715, 7
    %v5717 = vsub.s32 0, %v5716
    %v5718 = vrot.slane %v5378, %v5717
    %v5719 = vlaneseq
    %v5720 = vshrl.u32 %v5719, 7
    %v5721 = vsub.s32 0, %v5720
    %v5722 = vrot.slane %v5379, %v5721
    %v5723 = vlaneseq
    %v5724 = vshrl.u32 %v5723, 7
    %v5725 = vsub.s32 0, %v5724
    %v5726 = vrot.slane %v5380, %v5725
    %v5727 = vlaneseq
    %v5728 = vshrl.u32 %v5727, 7
    %v5729 = vsub.s32 0, %v5728
    %v5730 = vrot.slane %v5381, %v5729
    %v5731 = vlaneseq
    %v5732 = vshrl.u32 %v5731, 7
    %v5733 = vsub.s32 0, %v5732
    %v5734 = vrot.slane %v5382, %v5733
    %v5735 = vlaneseq
    %v5736 = vshrl.u32 %v5735, 7
    %v5737 = vsub.s32 0, %v5736
    %v5738 = vrot.slane %v5383, %v5737
    %v5739 = vlaneseq
    %v5740 = vshrl.u32 %v5739, 7
    %v5741 = vsub.s32 0, %v5740
    %v5742 = vrot.slane %v5384, %v5741
    %v5743 = vlaneseq
    %v5744 = vshrl.u32 %v5743, 7
    %v5745 = vsub.s32 0, %v5744
    %v5746 = vrot.slane %v5385, %v5745
    %v5747 = vlaneseq
    %v5748 = vshrl.u32 %v5747, 7
    %v5749 = vsub.s32 0, %v5748
    %v5750 = vrot.slane %v5386, %v5749
    %v5751 = vlaneseq
    %v5752 = vshrl.u32 %v5751, 7
    %v5753 = vsub.s32 0, %v5752
    %v5754 = vrot.slane %v5387, %v5753
    %v5755 = vlaneseq
    %v5756 = vshrl.u32 %v5755, 7
    %v5757 = vsub.s32 0, %v5756
    %v5758 = vrot.slane %v5388, %v5757
    %v5759 = vlaneseq
    %v5760 = vshrl.u32 %v5759, 7
    %v5761 = vsub.s32 0, %v5760
    %v5762 = vrot.slane %v5389, %v5761
    %v5763 = vlaneseq
    %v5764 = vshrl.u32 %v5763, 7
    %v5765 = vsub.s32 0, %v5764
    %v5766 = vrot.slane %v5390, %v5765
    %v5767 = vlaneseq
    %v5768 = vshrl.u32 %v5767, 7
    %v5769 = vsub.s32 0, %v5768
    %v5770 = vrot.slane %v5391, %v5769
    %v5771 = vlaneseq
    %v5772 = vshrl.u32 %v5771, 7
    %v5773 = vsub.s32 0, %v5772
    %v5774 = vrot.slane %v5392, %v5773
    %v5775 = vlaneseq
    %v5776 = vshrl.u32 %v5775, 7
    %v5777 = vsub.s32 0, %v5776
    %v5778 = vrot.slane %v5393, %v5777
    %v5779 = vlaneseq
    %v5780 = vshrl.u32 %v5779, 7
    %v5781 = vsub.s32 0, %v5780
    %v5782 = vrot.slane %v5394, %v5781
    %v5783 = vlaneseq
    %v5784 = vshrl.u32 %v5783, 7
    %v5785 = vsub.s32 0, %v5784
    %v5786 = vrot.slane %v5395, %v5785
    %v5787 = vlaneseq
    %v5788 = vshrl.u32 %v5787, 7
    %v5789 = vsub.s32 0, %v5788
    %v5790 = vrot.slane %v5396, %v5789
    %v5791 = vlaneseq
    %v5792 = vshrl.u32 %v5791, 7
    %v5793 = vsub.s32 0, %v5792
    %v5794 = vrot.slane %v5397, %v5793
    %v5795 = vlaneseq
    %v5796 = vshrl.u32 %v5795, 7
    %v5797 = vsub.s32 0, %v5796
    %v5798 = vrot.slane %v5398, %v5797
    %v5799 = vlaneseq
    %v5800 = vshrl.u32 %v5799, 7
    %v5801 = vsub.s32 0, %v5800
    %v5802 = vrot.slane %v5399, %v5801
    %v5803 = vlaneseq
    %v5804 = vshrl.u32 %v5803, 7
    %v5805 = vsub.s32 0, %v5804
    %v5806 = vrot.slane %v5400, %v5805
    %v5807 = vlaneseq
    %v5808 = vshrl.u32 %v5807, 7
    %v5809 = vsub.s32 0, %v5808
    %v5810 = vrot.slane %v5401, %v5809
    %v5811 = vlaneseq
    %v5812 = vshrl.u32 %v5811, 7
    %v5813 = vsub.s32 0, %v5812
    %v5814 = vrot.slane %v5402, %v5813
    %v5815 = vlaneseq
    %v5816 = vshrl.u32 %v5815, 7
    %v5817 = vsub.s32 0, %v5816
    %v5818 = vrot.slane %v5403, %v5817
    %v5819 = vlaneseq
    %v5820 = vshrl.u32 %v5819, 7
    %v5821 = vsub.s32 0, %v5820
    %v5822 = vrot.slane %v5404, %v5821
    %v5823 = vlaneseq
    %v5824 = vshrl.u32 %v5823, 7
    %v5825 = vsub.s32 0, %v5824
    %v5826 = vrot.slane %v5405, %v5825
    %v5827 = vlaneseq
    %v5828 = vshrl.u32 %v5827, 7
    %v5829 = vsub.s32 0, %v5828
    %v5830 = vrot.slane %v5406, %v5829
    %v5831 = vlaneseq
    %v5832 = vshrl.u32 %v5831, 7
    %v5833 = vsub.s32 0, %v5832
    %v5834 = vrot.slane %v5407, %v5833
    %v5835 = vlaneseq
    %v5836 = vshrl.u32 %v5835, 7
    %v5837 = vsub.s32 0, %v5836
    %v5838 = vrot.slane %v5408, %v5837
    %v5839 = vlaneseq
    %v5840 = vshrl.u32 %v5839, 7
    %v5841 = vsub.s32 0, %v5840
    %v5842 = vrot.slane %v5409, %v5841
    %v5843 = vlaneseq
    %v5844 = vshrl.u32 %v5843, 7
    %v5845 = vsub.s32 0, %v5844
    %v5846 = vrot.slane %v5410, %v5845
    %v5847 = vlaneseq
    %v5848 = vshrl.u32 %v5847, 7
    %v5849 = vsub.s32 0, %v5848
    %v5850 = vrot.slane %v5411, %v5849
    %v5851 = vlaneseq
    %v5852 = vshrl.u32 %v5851, 7
    %v5853 = vsub.s32 0, %v5852
    %v5854 = vrot.slane %v5412, %v5853
    %v5855 = vlaneseq
    %v5856 = vshrl.u32 %v5855, 7
    %v5857 = vsub.s32 0, %v5856
    %v5858 = vrot.slane %v5413, %v5857
    %v5859 = vlaneseq
    %v5860 = vshrl.u32 %v5859, 7
    %v5861 = vsub.s32 0, %v5860
    %v5862 = vrot.slane %v5414, %v5861
    %v5863 = vlaneseq
    %v5864 = vshrl.u32 %v5863, 7
    %v5865 = vsub.s32 0, %v5864
    %v5866 = vrot.slane %v5415, %v5865
    %v5867 = vlaneseq
    %v5868 = vshrl.u32 %v5867, 7
    %v5869 = vsub.s32 0, %v5868
    %v5870 = vrot.slane %v5416, %v5869
    %v5871 = vlaneseq
    %v5872 = vshrl.u32 %v5871, 7
    %v5873 = vsub.s32 0, %v5872
    %v5874 = vrot.slane %v5417, %v5873
    %v5875 = vlaneseq
    %v5876 = vshrl.u32 %v5875, 7
    %v5877 = vsub.s32 0, %v5876
    %v5878 = vrot.slane %v5418, %v5877
    %v5879 = vlaneseq
    %v5880 = vshrl.u32 %v5879, 7
    %v5881 = vsub.s32 0, %v5880
    %v5882 = vrot.slane %v5419, %v5881
    %v5883 = vlaneseq
    %v5884 = vshrl.u32 %v5883, 7
    %v5885 = vsub.s32 0, %v5884
    %v5886 = vrot.slane %v5420, %v5885
    %v5887 = vlaneseq
    %v5888 = vshrl.u32 %v5887, 7
    %v5889 = vsub.s32 0, %v5888
    %v5890 = vrot.slane %v5421, %v5889
    %v5891 = vlaneseq
    %v5892 = vshrl.u32 %v5891, 7
    %v5893 = vsub.s32 0, %v5892
    %v5894 = vrot.slane %v5422, %v5893
    %v5895 = vlaneseq
    %v5896 = vshrl.u32 %v5895, 7
    %v5897 = vsub.s32 0, %v5896
    %v5898 = vrot.slane %v5423, %v5897
    %v5899 = vlaneseq
    %v5900 = vshrl.u32 %v5899, 7
    %v5901 = vsub.s32 0, %v5900
    %v5902 = vrot.slane %v5424, %v5901
    %v5903 = vlaneseq
    %v5904 = vshrl.u32 %v5903, 7
    %v5905 = vsub.s32 0, %v5904
    %v5906 = vrot.slane %v5425, %v5905
    %v5907 = vlaneseq
    %v5908 = vshrl.u32 %v5907, 7
    %v5909 = vsub.s32 0, %v5908
    %v5910 = vrot.slane %v5426, %v5909
    %v5911 = vlaneseq
    %v5912 = vshrl.u32 %v5911, 7
    %v5913 = vsub.s32 0, %v5912
    %v5914 = vrot.slane %v5427, %v5913
    %v5915 = vlaneseq
    %v5916 = vshrl.u32 %v5915, 7
    %v5917 = vsub.s32 0, %v5916
    %v5918 = vrot.slane %v5428, %v5917
    %v5919 = vlaneseq
    %v5920 = vshrl.u32 %v5919, 7
    %v5921 = vsub.s32 0, %v5920
    %v5922 = vrot.slane %v5429, %v5921
    %v5923 = vlaneseq
    %v5924 = vshrl.u32 %v5923, 7
    %v5925 = vsub.s32 0, %v5924
    %v5926 = vrot.slane %v5430, %v5925
    %v5927 = vlaneseq
    %v5928 = vshrl.u32 %v5927, 7
    %v5929 = vsub.s32 0, %v5928
    %v5930 = vrot.slane %v5431, %v5929
    %v5931 = vlaneseq
    %v5932 = vshrl.u32 %v5931, 7
    %v5933 = vsub.s32 0, %v5932
    %v5934 = vrot.slane %v5432, %v5933
    %v5935 = vlaneseq
    %v5936 = vshrl.u32 %v5935, 7
    %v5937 = vsub.s32 0, %v5936
    %v5938 = vrot.slane %v5433, %v5937
    %v5939 = vlaneseq
    %v5940 = vshrl.u32 %v5939, 7
    %v5941 = vsub.s32 0, %v5940
    %v5942 = vrot.slane %v5434, %v5941
    %v5943 = vlaneseq
    %v5944 = vshrl.u32 %v5943, 7
    %v5945 = vsub.s32 0, %v5944
    %v5946 = vrot.slane %v5435, %v5945
    %v5947 = vlaneseq
    %v5948 = vshrl.u32 %v5947, 7
    %v5949 = vsub.s32 0, %v5948
    %v5950 = vrot.slane %v5436, %v5949
    %v5951 = vlaneseq
    %v5952 = vshrl.u32 %v5951, 7
    %v5953 = vsub.s32 0, %v5952
    %v5954 = vrot.slane %v5437, %v5953
    %v5955 = vlaneseq
    %v5956 = vshrl.u32 %v5955, 7
    %v5957 = vsub.s32 0, %v5956
    %v5958 = vrot.slane %v5438, %v5957
    %v5959 = vlaneseq
    %v5960 = vshrl.u32 %v5959, 7
    %v5961 = vsub.s32 0, %v5960
    %v5962 = vrot.slane %v5439, %v5961
    %v5963 = vlaneseq
    %v5964 = vshrl.u32 %v5963, 7
    %v5965 = vsub.s32 0, %v5964
    %v5966 = vrot.slane %v5440, %v5965
    %v5967 = vlaneseq
    %v5968 = vshrl.u32 %v5967, 7
    %v5969 = vsub.s32 0, %v5968
    %v5970 = vrot.slane %v5441, %v5969
    %v5971 = vlaneseq
    %v5972 = vshrl.u32 %v5971, 7
    %v5973 = vsub.s32 0, %v5972
    %v5974 = vrot.slane %v5442, %v5973
    %v5975 = vlaneseq
    %v5976 = vshrl.u32 %v5975, 7
    %v5977 = vsub.s32 0, %v5976
    %v5978 = vrot.slane %v5443, %v5977
    %v5979 = vlaneseq
    %v5980 = vshrl.u32 %v5979, 7
    %v5981 = vsub.s32 0, %v5980
    %v5982 = vrot.slane %v5444, %v5981
    %v5983 = vlaneseq
    %v5984 = vshrl.u32 %v5983, 7
    %v5985 = vsub.s32 0, %v5984
    %v5986 = vrot.slane %v5445, %v5985
    %v5987 = vlaneseq
    %v5988 = vshrl.u32 %v5987, 7
    %v5989 = vsub.s32 0, %v5988
    %v5990 = vrot.slane %v5446, %v5989
    %v5991 = vlaneseq
    %v5992 = vshrl.u32 %v5991, 7
    %v5993 = vsub.s32 0, %v5992
    %v5994 = vrot.slane %v5447, %v5993
    %v5995 = vlaneseq
    %v5996 = vshrl.u32 %v5995, 7
    %v5997 = vsub.s32 0, %v5996
    %v5998 = vrot.slane %v5448, %v5997
    %v5999 = vlaneseq
    %v6000 = vshrl.u32 %v5999, 7
    %v6001 = vsub.s32 0, %v6000
    %v6002 = vrot.slane %v5449, %v6001
    %v6003 = vlaneseq
    %v6004 = vshrl.u32 %v6003, 7
    %v6005 = vsub.s32 0, %v6004
    %v6006 = vrot.slane %v5450, %v6005
    %v6007 = vlaneseq
    %v6008 = vshrl.u32 %v6007, 7
    %v6009 = vsub.s32 0, %v6008
    %v6010 = vrot.slane %v5451, %v6009
    %v6011 = vlaneseq
    %v6012 = vshrl.u32 %v6011, 7
    %v6013 = vsub.s32 0, %v6012
    %v6014 = vrot.slane %v5452, %v6013
    %v6015 = vlaneseq
    %v6016 = vshrl.u32 %v6015, 7
    %v6017 = vsub.s32 0, %v6016
    %v6018 = vrot.slane %v5453, %v6017
    %v6019 = vlaneseq
    %v6020 = vshrl.u32 %v6019, 7
    %v6021 = vsub.s32 0, %v6020
    %v6022 = vrot.slane %v5454, %v6021
    %v6023 = vlaneseq
    %v6024 = vshrl.u32 %v6023, 7
    %v6025 = vsub.s32 0, %v6024
    %v6026 = vrot.slane %v5455, %v6025
    %v6027 = vlaneseq
    %v6028 = vshrl.u32 %v6027, 7
    %v6029 = vsub.s32 0, %v6028
    %v6030 = vrot.slane %v5456, %v6029
    %v6031 = vlaneseq
    %v6032 = vshrl.u32 %v6031, 7
    %v6033 = vsub.s32 0, %v6032
    %v6034 = vrot.slane %v5457, %v6033
    %v6035 = vlaneseq
    %v6036 = vshrl.u32 %v6035, 7
    %v6037 = vsub.s32 0, %v6036
    %v6038 = vrot.slane %v5458, %v6037
    %v6039 = vlaneseq
    %v6040 = vshrl.u32 %v6039, 7
    %v6041 = vsub.s32 0, %v6040
    %v6042 = vrot.slane %v5459, %v6041
    %v6043 = vlaneseq
    %v6044 = vshrl.u32 %v6043, 7
    %v6045 = vsub.s32 0, %v6044
    %v6046 = vrot.slane %v5460, %v6045
    %v6047 = vlaneseq
    %v6048 = vshrl.u32 %v6047, 7
    %v6049 = vsub.s32 0, %v6048
    %v6050 = vrot.slane %v5461, %v6049
    %v6051 = vlaneseq
    %v6052 = vshrl.u32 %v6051, 7
    %v6053 = vsub.s32 0, %v6052
    %v6054 = vrot.slane %v5462, %v6053
    %v6055 = vlaneseq
    %v6056 = vshrl.u32 %v6055, 7
    %v6057 = vsub.s32 0, %v6056
    %v6058 = vrot.slane %v5463, %v6057
    %v6059 = vlaneseq
    %v6060 = vshrl.u32 %v6059, 7
    %v6061 = vsub.s32 0, %v6060
    %v6062 = vrot.slane %v5464, %v6061
    %v6063 = vlaneseq
    %v6064 = vshrl.u32 %v6063, 7
    %v6065 = vsub.s32 0, %v6064
    %v6066 = vrot.slane %v5465, %v6065
    %v6067 = vlaneseq
    %v6068 = vshrl.u32 %v6067, 7
    %v6069 = vsub.s32 0, %v6068
    %v6070 = vrot.slane %v5466, %v6069
    %v6071 = vlaneseq
    %v6072 = vshrl.u32 %v6071, 7
    %v6073 = vsub.s32 0, %v6072
    %v6074 = vrot.slane %v5467, %v6073
    %v6075 = vlaneseq
    %v6076 = vshrl.u32 %v6075, 7
    %v6077 = vsub.s32 0, %v6076
    %v6078 = vrot.slane %v5468, %v6077
    %v6079 = vlaneseq
    %v6080 = vshrl.u32 %v6079, 7
    %v6081 = vsub.s32 0, %v6080
    %v6082 = vrot.slane %v5469, %v6081
    %v6083 = vlaneseq
    %v6084 = vshrl.u32 %v6083, 7
    %v6085 = vsub.s32 0, %v6084
    %v6086 = vrot.slane %v5470, %v6085
    %v6087 = vlaneseq
    %v6088 = vshrl.u32 %v6087, 7
    %v6089 = vsub.s32 0, %v6088
    %v6090 = vrot.slane %v5471, %v6089
    %v6091 = vlaneseq
    %v6092 = vshrl.u32 %v6091, 7
    %v6093 = vsub.s32 0, %v6092
    %v6094 = vrot.slane %v5472, %v6093
    %v6095 = vlaneseq
    %v6096 = vshrl.u32 %v6095, 7
    %v6097 = vsub.s32 0, %v6096
    %v6098 = vrot.slane %v5473, %v6097
    %v6099 = vlaneseq
    %v6100 = vshrl.u32 %v6099, 7
    %v6101 = vsub.s32 0, %v6100
    %v6102 = vrot.slane %v5474, %v6101
    %v6103 = vlaneseq
    %v6104 = vshrl.u32 %v6103, 7
    %v6105 = vsub.s32 0, %v6104
    %v6106 = vrot.slane %v5475, %v6105
    %v6107 = vlaneseq
    %v6108 = vshrl.u32 %v6107, 7
    %v6109 = vsub.s32 0, %v6108
    %v6110 = vrot.slane %v5476, %v6109
    %v6111 = vlaneseq
    %v6112 = vshrl.u32 %v6111, 7
    %v6113 = vsub.s32 0, %v6112
    %v6114 = vrot.slane %v5477, %v6113
    %v6115 = vlaneseq
    %v6116 = vshrl.u32 %v6115, 7
    %v6117 = vsub.s32 0, %v6116
    %v6118 = vrot.slane %v5478, %v6117
    %vm6119 = vcmask 1041409
    %v6120 = vsel %vm6119, %v5614, %v5610
    %vm6121 = vcmask 1042434
    %v6122 = vsel %vm6121, %v5618, %v6120
    %vm6123 = vcmask 1043459
    %v6124 = vsel %vm6123, %v5622, %v6122
    %vm6125 = vcmask 1044484
    %v6126 = vsel %vm6125, %v5626, %v6124
    %vm6127 = vcmask 1045509
    %v6128 = vsel %vm6127, %v5630, %v6126
    %vm6129 = vcmask 1046534
    %v6130 = vsel %vm6129, %v5634, %v6128
    %vm6131 = vcmask 1047559
    %v6132 = vsel %vm6131, %v5638, %v6130
    %v6133 = vsel %vm6119, %v5646, %v5642
    %v6134 = vsel %vm6121, %v5650, %v6133
    %v6135 = vsel %vm6123, %v5654, %v6134
    %v6136 = vsel %vm6125, %v5658, %v6135
    %v6137 = vsel %vm6127, %v5662, %v6136
    %v6138 = vsel %vm6129, %v5666, %v6137
    %v6139 = vsel %vm6131, %v5670, %v6138
    %v6140 = vsel %vm6119, %v5678, %v5674
    %v6141 = vsel %vm6121, %v5682, %v6140
    %v6142 = vsel %vm6123, %v5686, %v6141
    %v6143 = vsel %vm6125, %v5690, %v6142
    %v6144 = vsel %vm6127, %v5694, %v6143
    %v6145 = vsel %vm6129, %v5698, %v6144
    %v6146 = vsel %vm6131, %v5702, %v6145
    %v6147 = vsel %vm6119, %v5710, %v5706
    %v6148 = vsel %vm6121, %v5714, %v6147
    %v6149 = vsel %vm6123, %v5718, %v6148
    %v6150 = vsel %vm6125, %v5722, %v6149
    %v6151 = vsel %vm6127, %v5726, %v6150
    %v6152 = vsel %vm6129, %v5730, %v6151
    %v6153 = vsel %vm6131, %v5734, %v6152
    %v6154 = vsel %vm6119, %v5742, %v5738
    %v6155 = vsel %vm6121, %v5746, %v6154
    %v6156 = vsel %vm6123, %v5750, %v6155
    %v6157 = vsel %vm6125, %v5754, %v6156
    %v6158 = vsel %vm6127, %v5758, %v6157
    %v6159 = vsel %vm6129, %v5762, %v6158
    %v6160 = vsel %vm6131, %v5766, %v6159
    %v6161 = vsel %vm6119, %v5774, %v5770
    %v6162 = vsel %vm6121, %v5778, %v6161
    %v6163 = vsel %vm6123, %v5782, %v6162
    %v6164 = vsel %vm6125, %v5786, %v6163
    %v6165 = vsel %vm6127, %v5790, %v6164
    %v6166 = vsel %vm6129, %v5794, %v6165
    %v6167 = vsel %vm6131, %v5798, %v6166
    %v6168 = vsel %vm6119, %v5806, %v5802
    %v6169 = vsel %vm6121, %v5810, %v6168
    %v6170 = vsel %vm6123, %v5814, %v6169
    %v6171 = vsel %vm6125, %v5818, %v6170
    %v6172 = vsel %vm6127, %v5822, %v6171
    %v6173 = vsel %vm6129, %v5826, %v6172
    %v6174 = vsel %vm6131, %v5830, %v6173
    %v6175 = vsel %vm6119, %v5838, %v5834
    %v6176 = vsel %vm6121, %v5842, %v6175
    %v6177 = vsel %vm6123, %v5846, %v6176
    %v6178 = vsel %vm6125, %v5850, %v6177
    %v6179 = vsel %vm6127, %v5854, %v6178
    %v6180 = vsel %vm6129, %v5858, %v6179
    %v6181 = vsel %vm6131, %v5862, %v6180
    %v6182 = vsel %vm6119, %v5870, %v5866
    %v6183 = vsel %vm6121, %v5874, %v6182
    %v6184 = vsel %vm6123, %v5878, %v6183
    %v6185 = vsel %vm6125, %v5882, %v6184
    %v6186 = vsel %vm6127, %v5886, %v6185
    %v6187 = vsel %vm6129, %v5890, %v6186
    %v6188 = vsel %vm6131, %v5894, %v6187
    %v6189 = vsel %vm6119, %v5902, %v5898
    %v6190 = vsel %vm6121, %v5906, %v6189
    %v6191 = vsel %vm6123, %v5910, %v6190
    %v6192 = vsel %vm6125, %v5914, %v6191
    %v6193 = vsel %vm6127, %v5918, %v6192
    %v6194 = vsel %vm6129, %v5922, %v6193
    %v6195 = vsel %vm6131, %v5926, %v6194
    %v6196 = vsel %vm6119, %v5934, %v5930
    %v6197 = vsel %vm6121, %v5938, %v6196
    %v6198 = vsel %vm6123, %v5942, %v6197
    %v6199 = vsel %vm6125, %v5946, %v6198
    %v6200 = vsel %vm6127, %v5950, %v6199
    %v6201 = vsel %vm6129, %v5954, %v6200
    %v6202 = vsel %vm6131, %v5958, %v6201
    %v6203 = vsel %vm6119, %v5966, %v5962
    %v6204 = vsel %vm6121, %v5970, %v6203
    %v6205 = vsel %vm6123, %v5974, %v6204
    %v6206 = vsel %vm6125, %v5978, %v6205
    %v6207 = vsel %vm6127, %v5982, %v6206
    %v6208 = vsel %vm6129, %v5986, %v6207
    %v6209 = vsel %vm6131, %v5990, %v6208
    %v6210 = vsel %vm6119, %v5998, %v5994
    %v6211 = vsel %vm6121, %v6002, %v6210
    %v6212 = vsel %vm6123, %v6006, %v6211
    %v6213 = vsel %vm6125, %v6010, %v6212
    %v6214 = vsel %vm6127, %v6014, %v6213
    %v6215 = vsel %vm6129, %v6018, %v6214
    %v6216 = vsel %vm6131, %v6022, %v6215
    %v6217 = vsel %vm6119, %v6030, %v6026
    %v6218 = vsel %vm6121, %v6034, %v6217
    %v6219 = vsel %vm6123, %v6038, %v6218
    %v6220 = vsel %vm6125, %v6042, %v6219
    %v6221 = vsel %vm6127, %v6046, %v6220
    %v6222 = vsel %vm6129, %v6050, %v6221
    %v6223 = vsel %vm6131, %v6054, %v6222
    %v6224 = vsel %vm6119, %v6062, %v6058
    %v6225 = vsel %vm6121, %v6066, %v6224
    %v6226 = vsel %vm6123, %v6070, %v6225
    %v6227 = vsel %vm6125, %v6074, %v6226
    %v6228 = vsel %vm6127, %v6078, %v6227
    %v6229 = vsel %vm6129, %v6082, %v6228
    %v6230 = vsel %vm6131, %v6086, %v6229
    %v6231 = vsel %vm6119, %v6094, %v6090
    %v6232 = vsel %vm6121, %v6098, %v6231
    %v6233 = vsel %vm6123, %v6102, %v6232
    %v6234 = vsel %vm6125, %v6106, %v6233
    %v6235 = vsel %vm6127, %v6110, %v6234
    %v6236 = vsel %vm6129, %v6114, %v6235
    %v6237 = vsel %vm6131, %v6118, %v6236
    %v6238 = vrot.slane %v6132, 7
    %v6239 = vrot.slane %v6139, 7
    %v6240 = vrot.slane %v6146, 7
    %v6241 = vrot.slane %v6153, 7
    %v6242 = vrot.slane %v6160, 7
    %v6243 = vrot.slane %v6167, 7
    %v6244 = vrot.slane %v6174, 7
    %v6245 = vrot.slane %v6181, 7
    %v6246 = vrot.slane %v6188, 7
    %v6247 = vrot.slane %v6195, 7
    %v6248 = vrot.slane %v6202, 7
    %v6249 = vrot.slane %v6209, 7
    %v6250 = vrot.slane %v6216, 7
    %v6251 = vrot.slane %v6223, 7
    %v6252 = vrot.slane %v6230, 7
    %v6253 = vrot.slane %v6237, 7
    %v6270 = vsel %vm162, 0.0, %v6238
    %v6271 = vsel %vm162, 0.0, %v6239
    %v6272 = vsel %vm162, 0.0, %v6240
    %v6273 = vsel %vm162, 0.0, %v6241
    %v6274 = vsel %vm162, 0.0, %v6242
    %v6275 = vsel %vm162, 0.0, %v6243
    %v6276 = vsel %vm162, 0.0, %v6244
    %v6277 = vsel %vm162, 0.0, %v6245
    %v6278 = vsel %vm162, 0.0, %v6246
    %v6279 = vsel %vm162, 0.0, %v6247
    %v6280 = vsel %vm162, 0.0, %v6248
    %v6281 = vsel %vm162, 0.0, %v6249
    %v6282 = vsel %vm162, 0.0, %v6250
    %v6283 = vsel %vm162, 0.0, %v6251
    %v6284 = vsel %vm162, 0.0, %v6252
    %v6285 = vsel %vm162, 0.0, %v6253
    %v6286 = vsel %vm162, %v6238, 0.0
    %v6287 = vsel %vm162, %v6239, 0.0
    %v6288 = vsel %vm162, %v6240, 0.0
    %v6289 = vsel %vm162, %v6241, 0.0
    %v6290 = vsel %vm162, %v6242, 0.0
    %v6291 = vsel %vm162, %v6243, 0.0
    %v6292 = vsel %vm162, %v6244, 0.0
    %v6293 = vsel %vm162, %v6245, 0.0
    %v6294 = vsel %vm162, %v6246, 0.0
    %v6295 = vsel %vm162, %v6247, 0.0
    %v6296 = vsel %vm162, %v6248, 0.0
    %v6297 = vsel %vm162, %v6249, 0.0
    %v6298 = vsel %vm162, %v6250, 0.0
    %v6299 = vsel %vm162, %v6251, 0.0
    %v6300 = vsel %vm162, %v6252, 0.0
    %v6301 = vsel %vm162, %v6253, 0.0
    %v6330 = vrot.slane %v326, 1
    %v6331 = vrot.slane %v359, 1
    %v6332 = vsel %vm1146, %v6330, %v6331
    %v6333 = vrot.slane %v6270, 1
    %v6334 = vrot.slane %v6286, 1
    %v6335 = vsel %vm1146, %v6333, %v6334
    %v6336 = vrot.slane %v6271, 1
    %v6337 = vrot.slane %v6287, 1
    %v6338 = vsel %vm1146, %v6336, %v6337
    %v6339 = vrot.slane %v6272, 1
    %v6340 = vrot.slane %v6288, 1
    %v6341 = vsel %vm1146, %v6339, %v6340
    %v6342 = vrot.slane %v6273, 1
    %v6343 = vrot.slane %v6289, 1
    %v6344 = vsel %vm1146, %v6342, %v6343
    %v6345 = vrot.slane %v6274, 1
    %v6346 = vrot.slane %v6290, 1
    %v6347 = vsel %vm1146, %v6345, %v6346
    %v6348 = vrot.slane %v6275, 1
    %v6349 = vrot.slane %v6291, 1
    %v6350 = vsel %vm1146, %v6348, %v6349
    %v6351 = vrot.slane %v6276, 1
    %v6352 = vrot.slane %v6292, 1
    %v6353 = vsel %vm1146, %v6351, %v6352
    %v6354 = vrot.slane %v6278, 1
    %v6355 = vrot.slane %v6294, 1
    %v6356 = vsel %vm1146, %v6354, %v6355
    %v6357 = vrot.slane %v6279, 1
    %v6358 = vrot.slane %v6295, 1
    %v6359 = vsel %vm1146, %v6357, %v6358
    %v6360 = vrot.slane %v6280, 1
    %v6361 = vrot.slane %v6296, 1
    %v6362 = vsel %vm1146, %v6360, %v6361
    %v6363 = vrot.slane %v6281, 1
    %v6364 = vrot.slane %v6297, 1
    %v6365 = vsel %vm1146, %v6363, %v6364
    %v6366 = vrot.slane %v6282, 1
    %v6367 = vrot.slane %v6298, 1
    %v6368 = vsel %vm1146, %v6366, %v6367
    %v6369 = vrot.slane %v6283, 1
    %v6370 = vrot.slane %v6299, 1
    %v6371 = vsel %vm1146, %v6369, %v6370
    %v6372 = vrot.slane %v6284, 1
    %v6373 = vrot.slane %v6300, 1
    %v6374 = vsel %vm1146, %v6372, %v6373
    %6375 = vrot.lane.b32.xlu0 %v6332, 16
    %v6376 = vpop.permute.xlu0 %6375
    %6377 = vrot.lane.b32.xlu0 %v6335, 16
    %v6378 = vpop.permute.xlu0 %6377
    %6379 = vrot.lane.b32.xlu0 %v6338, 16
    %v6380 = vpop.permute.xlu0 %6379
    %6381 = vrot.lane.b32.xlu0 %v6341, 16
    %v6382 = vpop.permute.xlu0 %6381
    %6383 = vrot.lane.b32.xlu0 %v6344, 16
    %v6384 = vpop.permute.xlu0 %6383
    %6385 = vrot.lane.b32.xlu0 %v6347, 16
    %v6386 = vpop.permute.xlu0 %6385
    %6387 = vrot.lane.b32.xlu0 %v6350, 16
    %v6388 = vpop.permute.xlu0 %6387
    %6389 = vrot.lane.b32.xlu0 %v6353, 16
    %v6390 = vpop.permute.xlu0 %6389
    %6391 = vrot.lane.b32.xlu0 %v6356, 16
    %v6392 = vpop.permute.xlu0 %6391
    %6393 = vrot.lane.b32.xlu0 %v6359, 16
    %v6394 = vpop.permute.xlu0 %6393
    %6395 = vrot.lane.b32.xlu0 %v6362, 16
    %v6396 = vpop.permute.xlu0 %6395
    %6397 = vrot.lane.b32.xlu0 %v6365, 16
    %v6398 = vpop.permute.xlu0 %6397
    %6399 = vrot.lane.b32.xlu0 %v6368, 16
    %v6400 = vpop.permute.xlu0 %6399
    %6401 = vrot.lane.b32.xlu0 %v6371, 16
    %v6402 = vpop.permute.xlu0 %6401
    %6403 = vrot.lane.b32.xlu0 %v6374, 16
    %v6404 = vpop.permute.xlu0 %6403
    %v6420 = vrot.slane %v326, 2
    %v6421 = vrot.slane %v359, 2
    %v6422 = vsel %vm1616, %v6420, %v6421
    %v6423 = vrot.slane %v6270, 2
    %v6424 = vrot.slane %v6286, 2
    %v6425 = vsel %vm1616, %v6423, %v6424
    %v6426 = vrot.slane %v6271, 2
    %v6427 = vrot.slane %v6287, 2
    %v6428 = vsel %vm1616, %v6426, %v6427
    %v6429 = vrot.slane %v6272, 2
    %v6430 = vrot.slane %v6288, 2
    %v6431 = vsel %vm1616, %v6429, %v6430
    %v6432 = vrot.slane %v6273, 2
    %v6433 = vrot.slane %v6289, 2
    %v6434 = vsel %vm1616, %v6432, %v6433
    %v6435 = vrot.slane %v6274, 2
    %v6436 = vrot.slane %v6290, 2
    %v6437 = vsel %vm1616, %v6435, %v6436
    %v6438 = vrot.slane %v6275, 2
    %v6439 = vrot.slane %v6291, 2
    %v6440 = vsel %vm1616, %v6438, %v6439
    %v6441 = vrot.slane %v6276, 2
    %v6442 = vrot.slane %v6292, 2
    %v6443 = vsel %vm1616, %v6441, %v6442
    %v6444 = vrot.slane %v6278, 2
    %v6445 = vrot.slane %v6294, 2
    %v6446 = vsel %vm1616, %v6444, %v6445
    %v6447 = vrot.slane %v6279, 2
    %v6448 = vrot.slane %v6295, 2
    %v6449 = vsel %vm1616, %v6447, %v6448
    %v6450 = vrot.slane %v6280, 2
    %v6451 = vrot.slane %v6296, 2
    %v6452 = vsel %vm1616, %v6450, %v6451
    %v6453 = vrot.slane %v6281, 2
    %v6454 = vrot.slane %v6297, 2
    %v6455 = vsel %vm1616, %v6453, %v6454
    %v6456 = vrot.slane %v6282, 2
    %v6457 = vrot.slane %v6298, 2
    %v6458 = vsel %vm1616, %v6456, %v6457
    %v6459 = vrot.slane %v6283, 2
    %v6460 = vrot.slane %v6299, 2
    %v6461 = vsel %vm1616, %v6459, %v6460
    %v6462 = vrot.slane %v6284, 2
    %v6463 = vrot.slane %v6300, 2
    %v6464 = vsel %vm1616, %v6462, %v6463
    %6465 = vrot.lane.b32.xlu0 %v6422, 32
    %v6466 = vpop.permute.xlu0 %6465
    %6467 = vrot.lane.b32.xlu0 %v6425, 32
    %v6468 = vpop.permute.xlu0 %6467
    %6469 = vrot.lane.b32.xlu0 %v6428, 32
    %v6470 = vpop.permute.xlu0 %6469
    %6471 = vrot.lane.b32.xlu0 %v6431, 32
    %v6472 = vpop.permute.xlu0 %6471
    %6473 = vrot.lane.b32.xlu0 %v6434, 32
    %v6474 = vpop.permute.xlu0 %6473
    %6475 = vrot.lane.b32.xlu0 %v6437, 32
    %v6476 = vpop.permute.xlu0 %6475
    %6477 = vrot.lane.b32.xlu0 %v6440, 32
    %v6478 = vpop.permute.xlu0 %6477
    %6479 = vrot.lane.b32.xlu0 %v6443, 32
    %v6480 = vpop.permute.xlu0 %6479
    %6481 = vrot.lane.b32.xlu0 %v6446, 32
    %v6482 = vpop.permute.xlu0 %6481
    %6483 = vrot.lane.b32.xlu0 %v6449, 32
    %v6484 = vpop.permute.xlu0 %6483
    %6485 = vrot.lane.b32.xlu0 %v6452, 32
    %v6486 = vpop.permute.xlu0 %6485
    %6487 = vrot.lane.b32.xlu0 %v6455, 32
    %v6488 = vpop.permute.xlu0 %6487
    %6489 = vrot.lane.b32.xlu0 %v6458, 32
    %v6490 = vpop.permute.xlu0 %6489
    %6491 = vrot.lane.b32.xlu0 %v6461, 32
    %v6492 = vpop.permute.xlu0 %6491
    %6493 = vrot.lane.b32.xlu0 %v6464, 32
    %v6494 = vpop.permute.xlu0 %6493
    %6512 = vrot.lane.b32.xlu0 %v6270, 48
    %v6513 = vpop.permute.xlu0 %6512
    %6514 = vrot.lane.b32.xlu0 %v6271, 48
    %v6515 = vpop.permute.xlu0 %6514
    %6516 = vrot.lane.b32.xlu0 %v6272, 48
    %v6517 = vpop.permute.xlu0 %6516
    %6518 = vrot.lane.b32.xlu0 %v6273, 48
    %v6519 = vpop.permute.xlu0 %6518
    %6520 = vrot.lane.b32.xlu0 %v6274, 48
    %v6521 = vpop.permute.xlu0 %6520
    %6522 = vrot.lane.b32.xlu0 %v6275, 48
    %v6523 = vpop.permute.xlu0 %6522
    %6524 = vrot.lane.b32.xlu0 %v6276, 48
    %v6525 = vpop.permute.xlu0 %6524
    %6526 = vrot.lane.b32.xlu0 %v6277, 48
    %v6527 = vpop.permute.xlu0 %6526
    %6528 = vrot.lane.b32.xlu0 %v6278, 48
    %v6529 = vpop.permute.xlu0 %6528
    %6530 = vrot.lane.b32.xlu0 %v6279, 48
    %v6531 = vpop.permute.xlu0 %6530
    %6532 = vrot.lane.b32.xlu0 %v6280, 48
    %v6533 = vpop.permute.xlu0 %6532
    %6534 = vrot.lane.b32.xlu0 %v6281, 48
    %v6535 = vpop.permute.xlu0 %6534
    %6536 = vrot.lane.b32.xlu0 %v6282, 48
    %v6537 = vpop.permute.xlu0 %6536
    %6538 = vrot.lane.b32.xlu0 %v6283, 48
    %v6539 = vpop.permute.xlu0 %6538
    %6540 = vrot.lane.b32.xlu0 %v6284, 48
    %v6541 = vpop.permute.xlu0 %6540
    %6542 = vrot.lane.b32.xlu0 %v6285, 48
    %v6543 = vpop.permute.xlu0 %6542
    %v6562 = vrot.slane %v6277, 1
    %v6563 = vrot.slane %v6293, 1
    %v6564 = vsel %vm1146, %v6562, %v6563
    %v6565 = vrot.slane %v6285, 1
    %v6566 = vrot.slane %v6301, 1
    %v6567 = vsel %vm1146, %v6565, %v6566
    %6568 = vrot.lane.b32.xlu0 %v6335, 64
    %v6569 = vpop.permute.xlu0 %6568
    %6570 = vrot.lane.b32.xlu0 %v6338, 64
    %v6571 = vpop.permute.xlu0 %6570
    %6572 = vrot.lane.b32.xlu0 %v6341, 64
    %v6573 = vpop.permute.xlu0 %6572
    %6574 = vrot.lane.b32.xlu0 %v6344, 64
    %v6575 = vpop.permute.xlu0 %6574
    %6576 = vrot.lane.b32.xlu0 %v6347, 64
    %v6577 = vpop.permute.xlu0 %6576
    %6578 = vrot.lane.b32.xlu0 %v6350, 64
    %v6579 = vpop.permute.xlu0 %6578
    %6580 = vrot.lane.b32.xlu0 %v6353, 64
    %v6581 = vpop.permute.xlu0 %6580
    %6582 = vrot.lane.b32.xlu0 %v6564, 64
    %v6583 = vpop.permute.xlu0 %6582
    %6584 = vrot.lane.b32.xlu0 %v6356, 64
    %v6585 = vpop.permute.xlu0 %6584
    %6586 = vrot.lane.b32.xlu0 %v6359, 64
    %v6587 = vpop.permute.xlu0 %6586
    %6588 = vrot.lane.b32.xlu0 %v6362, 64
    %v6589 = vpop.permute.xlu0 %6588
    %6590 = vrot.lane.b32.xlu0 %v6365, 64
    %v6591 = vpop.permute.xlu0 %6590
    %6592 = vrot.lane.b32.xlu0 %v6368, 64
    %v6593 = vpop.permute.xlu0 %6592
    %6594 = vrot.lane.b32.xlu0 %v6371, 64
    %v6595 = vpop.permute.xlu0 %6594
    %6596 = vrot.lane.b32.xlu0 %v6374, 64
    %v6597 = vpop.permute.xlu0 %6596
    %6598 = vrot.lane.b32.xlu0 %v6567, 64
    %v6599 = vpop.permute.xlu0 %6598
    %v6616 = vrot.slane %v6277, 2
    %v6617 = vrot.slane %v6293, 2
    %v6618 = vsel %vm1616, %v6616, %v6617
    %v6619 = vrot.slane %v6285, 2
    %v6620 = vrot.slane %v6301, 2
    %v6621 = vsel %vm1616, %v6619, %v6620
    %6622 = vrot.lane.b32.xlu0 %v6425, 80
    %v6623 = vpop.permute.xlu0 %6622
    %6624 = vrot.lane.b32.xlu0 %v6428, 80
    %v6625 = vpop.permute.xlu0 %6624
    %6626 = vrot.lane.b32.xlu0 %v6431, 80
    %v6627 = vpop.permute.xlu0 %6626
    %6628 = vrot.lane.b32.xlu0 %v6434, 80
    %v6629 = vpop.permute.xlu0 %6628
    %6630 = vrot.lane.b32.xlu0 %v6437, 80
    %v6631 = vpop.permute.xlu0 %6630
    %6632 = vrot.lane.b32.xlu0 %v6440, 80
    %v6633 = vpop.permute.xlu0 %6632
    %6634 = vrot.lane.b32.xlu0 %v6443, 80
    %v6635 = vpop.permute.xlu0 %6634
    %6636 = vrot.lane.b32.xlu0 %v6618, 80
    %v6637 = vpop.permute.xlu0 %6636
    %6638 = vrot.lane.b32.xlu0 %v6446, 80
    %v6639 = vpop.permute.xlu0 %6638
    %6640 = vrot.lane.b32.xlu0 %v6449, 80
    %v6641 = vpop.permute.xlu0 %6640
    %6642 = vrot.lane.b32.xlu0 %v6452, 80
    %v6643 = vpop.permute.xlu0 %6642
    %6644 = vrot.lane.b32.xlu0 %v6455, 80
    %v6645 = vpop.permute.xlu0 %6644
    %6646 = vrot.lane.b32.xlu0 %v6458, 80
    %v6647 = vpop.permute.xlu0 %6646
    %6648 = vrot.lane.b32.xlu0 %v6461, 80
    %v6649 = vpop.permute.xlu0 %6648
    %6650 = vrot.lane.b32.xlu0 %v6464, 80
    %v6651 = vpop.permute.xlu0 %6650
    %6652 = vrot.lane.b32.xlu0 %v6621, 80
    %v6653 = vpop.permute.xlu0 %6652
    %6670 = vrot.lane.b32.xlu0 %v6271, 96
    %v6671 = vpop.permute.xlu0 %6670
    %6672 = vrot.lane.b32.xlu0 %v6272, 96
    %v6673 = vpop.permute.xlu0 %6672
    %6674 = vrot.lane.b32.xlu0 %v6273, 96
    %v6675 = vpop.permute.xlu0 %6674
    %6676 = vrot.lane.b32.xlu0 %v6274, 96
    %v6677 = vpop.permute.xlu0 %6676
    %6678 = vrot.lane.b32.xlu0 %v6275, 96
    %v6679 = vpop.permute.xlu0 %6678
    %6680 = vrot.lane.b32.xlu0 %v6276, 96
    %v6681 = vpop.permute.xlu0 %6680
    %6682 = vrot.lane.b32.xlu0 %v6277, 96
    %v6683 = vpop.permute.xlu0 %6682
    %6684 = vrot.lane.b32.xlu0 %v326, 96
    %v6685 = vpop.permute.xlu0 %6684
    %6686 = vrot.lane.b32.xlu0 %v6279, 96
    %v6687 = vpop.permute.xlu0 %6686
    %6688 = vrot.lane.b32.xlu0 %v6280, 96
    %v6689 = vpop.permute.xlu0 %6688
    %6690 = vrot.lane.b32.xlu0 %v6281, 96
    %v6691 = vpop.permute.xlu0 %6690
    %6692 = vrot.lane.b32.xlu0 %v6282, 96
    %v6693 = vpop.permute.xlu0 %6692
    %6694 = vrot.lane.b32.xlu0 %v6283, 96
    %v6695 = vpop.permute.xlu0 %6694
    %6696 = vrot.lane.b32.xlu0 %v6284, 96
    %v6697 = vpop.permute.xlu0 %6696
    %6698 = vrot.lane.b32.xlu0 %v6285, 96
    %v6699 = vpop.permute.xlu0 %6698
    %6715 = vrot.lane.b32.xlu0 %v6338, 112
    %v6716 = vpop.permute.xlu0 %6715
    %6717 = vrot.lane.b32.xlu0 %v6341, 112
    %v6718 = vpop.permute.xlu0 %6717
    %6719 = vrot.lane.b32.xlu0 %v6344, 112
    %v6720 = vpop.permute.xlu0 %6719
    %6721 = vrot.lane.b32.xlu0 %v6347, 112
    %v6722 = vpop.permute.xlu0 %6721
    %6723 = vrot.lane.b32.xlu0 %v6350, 112
    %v6724 = vpop.permute.xlu0 %6723
    %6725 = vrot.lane.b32.xlu0 %v6353, 112
    %v6726 = vpop.permute.xlu0 %6725
    %6727 = vrot.lane.b32.xlu0 %v6564, 112
    %v6728 = vpop.permute.xlu0 %6727
    %6729 = vrot.lane.b32.xlu0 %v6332, 112
    %v6730 = vpop.permute.xlu0 %6729
    %6731 = vrot.lane.b32.xlu0 %v6359, 112
    %v6732 = vpop.permute.xlu0 %6731
    %6733 = vrot.lane.b32.xlu0 %v6362, 112
    %v6734 = vpop.permute.xlu0 %6733
    %6735 = vrot.lane.b32.xlu0 %v6365, 112
    %v6736 = vpop.permute.xlu0 %6735
    %6737 = vrot.lane.b32.xlu0 %v6368, 112
    %v6738 = vpop.permute.xlu0 %6737
    %6739 = vrot.lane.b32.xlu0 %v6371, 112
    %v6740 = vpop.permute.xlu0 %6739
    %6741 = vrot.lane.b32.xlu0 %v6374, 112
    %v6742 = vpop.permute.xlu0 %6741
    %6743 = vrot.lane.b32.xlu0 %v6567, 112
    %v6744 = vpop.permute.xlu0 %6743
    %vm6760 = vcmask 130048
    %v6761 = vsel %vm6760, %v326, %v6376
    %v6762 = vsel %vm6760, %v6270, %v6378
    %v6763 = vsel %vm6760, %v6271, %v6380
    %v6764 = vsel %vm6760, %v6272, %v6382
    %v6765 = vsel %vm6760, %v6273, %v6384
    %v6766 = vsel %vm6760, %v6274, %v6386
    %v6767 = vsel %vm6760, %v6275, %v6388
    %v6768 = vsel %vm6760, %v6276, %v6390
    %v6769 = vsel %vm6760, %v6278, %v6392
    %v6770 = vsel %vm6760, %v6279, %v6394
    %v6771 = vsel %vm6760, %v6280, %v6396
    %v6772 = vsel %vm6760, %v6281, %v6398
    %v6773 = vsel %vm6760, %v6282, %v6400
    %v6774 = vsel %vm6760, %v6283, %v6402
    %v6775 = vsel %vm6760, %v6284, %v6404
    %vm6776 = vcmask 261120
    %v6777 = vsel %vm6776, %v6761, %v6466
    %v6778 = vsel %vm6776, %v6762, %v6468
    %v6779 = vsel %vm6776, %v6763, %v6470
    %v6780 = vsel %vm6776, %v6764, %v6472
    %v6781 = vsel %vm6776, %v6765, %v6474
    %v6782 = vsel %vm6776, %v6766, %v6476
    %v6783 = vsel %vm6776, %v6767, %v6478
    %v6784 = vsel %vm6776, %v6768, %v6480
    %v6785 = vsel %vm6776, %v6769, %v6482
    %v6786 = vsel %vm6776, %v6770, %v6484
    %v6787 = vsel %vm6776, %v6771, %v6486
    %v6788 = vsel %vm6776, %v6772, %v6488
    %v6789 = vsel %vm6776, %v6773, %v6490
    %v6790 = vsel %vm6776, %v6774, %v6492
    %v6791 = vsel %vm6776, %v6775, %v6494
    %vm6792 = vcmask 392192
    %v6793 = vsel %vm6792, %v6777, %v6513
    %v6794 = vsel %vm6792, %v6778, %v6515
    %v6795 = vsel %vm6792, %v6779, %v6517
    %v6796 = vsel %vm6792, %v6780, %v6519
    %v6797 = vsel %vm6792, %v6781, %v6521
    %v6798 = vsel %vm6792, %v6782, %v6523
    %v6799 = vsel %vm6792, %v6783, %v6525
    %v6800 = vsel %vm6792, %v6784, %v6527
    %v6801 = vsel %vm6792, %v6777, %v6529
    %v6802 = vsel %vm6792, %v6785, %v6531
    %v6803 = vsel %vm6792, %v6786, %v6533
    %v6804 = vsel %vm6792, %v6787, %v6535
    %v6805 = vsel %vm6792, %v6788, %v6537
    %v6806 = vsel %vm6792, %v6789, %v6539
    %v6807 = vsel %vm6792, %v6790, %v6541
    %v6808 = vsel %vm6792, %v6791, %v6543
    %vm6809 = vcmask 523264
    %v6810 = vsel %vm6809, %v6793, %v6569
    %v6811 = vsel %vm6809, %v6794, %v6571
    %v6812 = vsel %vm6809, %v6795, %v6573
    %v6813 = vsel %vm6809, %v6796, %v6575
    %v6814 = vsel %vm6809, %v6797, %v6577
    %v6815 = vsel %vm6809, %v6798, %v6579
    %v6816 = vsel %vm6809, %v6799, %v6581
    %v6817 = vsel %vm6809, %v6800, %v6583
    %v6818 = vsel %vm6809, %v6801, %v6585
    %v6819 = vsel %vm6809, %v6802, %v6587
    %v6820 = vsel %vm6809, %v6803, %v6589
    %v6821 = vsel %vm6809, %v6804, %v6591
    %v6822 = vsel %vm6809, %v6805, %v6593
    %v6823 = vsel %vm6809, %v6806, %v6595
    %v6824 = vsel %vm6809, %v6807, %v6597
    %v6825 = vsel %vm6809, %v6808, %v6599
    %vm6826 = vcmask 654336
    %v6827 = vsel %vm6826, %v6810, %v6623
    %v6828 = vsel %vm6826, %v6811, %v6625
    %v6829 = vsel %vm6826, %v6812, %v6627
    %v6830 = vsel %vm6826, %v6813, %v6629
    %v6831 = vsel %vm6826, %v6814, %v6631
    %v6832 = vsel %vm6826, %v6815, %v6633
    %v6833 = vsel %vm6826, %v6816, %v6635
    %v6834 = vsel %vm6826, %v6817, %v6637
    %v6835 = vsel %vm6826, %v6818, %v6639
    %v6836 = vsel %vm6826, %v6819, %v6641
    %v6837 = vsel %vm6826, %v6820, %v6643
    %v6838 = vsel %vm6826, %v6821, %v6645
    %v6839 = vsel %vm6826, %v6822, %v6647
    %v6840 = vsel %vm6826, %v6823, %v6649
    %v6841 = vsel %vm6826, %v6824, %v6651
    %v6842 = vsel %vm6826, %v6825, %v6653
    %vm6843 = vcmask 785408
    %v6844 = vsel %vm6843, %v6827, %v6671
    %v6845 = vsel %vm6843, %v6828, %v6673
    %v6846 = vsel %vm6843, %v6829, %v6675
    %v6847 = vsel %vm6843, %v6830, %v6677
    %v6848 = vsel %vm6843, %v6831, %v6679
    %v6849 = vsel %vm6843, %v6832, %v6681
    %v6850 = vsel %vm6843, %v6833, %v6683
    %v6851 = vsel %vm6843, %v6834, %v6685
    %v6852 = vsel %vm6843, %v6835, %v6687
    %v6853 = vsel %vm6843, %v6836, %v6689
    %v6854 = vsel %vm6843, %v6837, %v6691
    %v6855 = vsel %vm6843, %v6838, %v6693
    %v6856 = vsel %vm6843, %v6839, %v6695
    %v6857 = vsel %vm6843, %v6840, %v6697
    %v6858 = vsel %vm6843, %v6841, %v6699
    %v6859 = vsel %vm6843, %v6842, %v6685
    %vm6860 = vcmask 916480
    %v6861 = vsel %vm6860, %v6844, %v6716
    %v6862 = vsel %vm6860, %v6845, %v6718
    %v6863 = vsel %vm6860, %v6846, %v6720
    %v6864 = vsel %vm6860, %v6847, %v6722
    %v6865 = vsel %vm6860, %v6848, %v6724
    %v6866 = vsel %vm6860, %v6849, %v6726
    %v6867 = vsel %vm6860, %v6850, %v6728
    %v6868 = vsel %vm6860, %v6851, %v6730
    %v6869 = vsel %vm6860, %v6852, %v6732
    %v6870 = vsel %vm6860, %v6853, %v6734
    %v6871 = vsel %vm6860, %v6854, %v6736
    %v6872 = vsel %vm6860, %v6855, %v6738
    %v6873 = vsel %vm6860, %v6856, %v6740
    %v6874 = vsel %vm6860, %v6857, %v6742
    %v6875 = vsel %vm6860, %v6858, %v6744
    %v6876 = vsel %vm6860, %v6859, %v6730
    %v6877 = vld [vmem:[%s3] sm:$0xff]
    %v6878 = vld [vmem:[%s3 + $0x8] sm:$0xff]
    %v6879 = vld [vmem:[%s3 + $0x10] sm:$0xff]
    %v6880 = vld [vmem:[%s3 + $0x18] sm:$0xff]
    %v6881 = vld [vmem:[%s3 + $0x20] sm:$0xff]
    %v6882 = vld [vmem:[%s3 + $0x28] sm:$0xff]
    %v6883 = vld [vmem:[%s3 + $0x30] sm:$0xff]
    %v6884 = vld [vmem:[%s3 + $0x38] sm:$0xff]
    %v6885 = vld [vmem:[%s3 + $0x40] sm:$0xff]
    %v6886 = vld [vmem:[%s3 + $0x48] sm:$0xff]
    %v6887 = vld [vmem:[%s3 + $0x50] sm:$0xff]
    %v6888 = vld [vmem:[%s3 + $0x58] sm:$0xff]
    %v6889 = vld [vmem:[%s3 + $0x60] sm:$0xff]
    %v6890 = vld [vmem:[%s3 + $0x68] sm:$0xff]
    %v6891 = vld [vmem:[%s3 + $0x70] sm:$0xff]
    %v6892 = vld [vmem:[%s3 + $0x78] sm:$0xff]
    %v6893 = vld [vmem:[%s3 + $0x80] sm:$0xff]
    %v6894 = vld [vmem:[%s3 + $0x88] sm:$0xff]
    %v6895 = vld [vmem:[%s4] sm:$0x1]
    %v6897 = vlaneseq
    %v6898 = vshrl.u32 %v6897, 7
    %v6899 = vsub.s32 0, %v6898
    %v6900 = vrot.slane %v6895, %v6899
    %v6902 = vsel %vm6760, %v6428, 0
    %v6904 = vsel %vm6760, %v6431, 0
    %v6906 = vsel %vm6760, %v6434, 0
    %v6908 = vsel %vm6760, %v6437, 0
    %v6910 = vsel %vm6760, %v6440, 0
    %v6912 = vsel %vm6760, %v6443, 0
    %v6914 = vsel %vm6760, %v6618, 0
    %v6916 = vsel %vm6760, %v6422, 0
    %v6918 = vsel %vm6760, %v6449, 0
    %v6920 = vsel %vm6760, %v6452, 0
    %v6922 = vsel %vm6760, %v6455, 0
    %v6924 = vsel %vm6760, %v6458, 0
    %v6926 = vsel %vm6760, %v6461, 0
    %v6928 = vsel %vm6760, %v6464, 0
    %v6930 = vsel %vm6760, %v6621, 0
    %6932 = vmatprep.subr.mxu0 0.0
    %6933 = vmatpush1.msra.mxu0 %v6877
    %6934 = vmatprep.subr.mxu0 0.0
    %6935 = vmatpush1.msra.mxu0 %v6878
    %6936 = vmatprep.subr.mxu0 0.0
    %6937 = vmatpush1.msra.mxu0 %v6879
    %6938 = vmatprep.subr.mxu0 0.0
    %6939 = vmatpush1.msra.mxu0 %v6880
    %6940 = vmatprep.subr.mxu0 0.0
    %6941 = vmatpush1.msra.mxu0 %v6881
    %6942 = vmatprep.subr.mxu0 0.0
    %6943 = vmatpush1.msra.mxu0 %v6882
    %6944 = vmatprep.subr.mxu0 0.0
    %6945 = vmatpush1.msra.mxu0 %v6883
    %6946 = vmatprep.subr.mxu0 0.0
    %6947 = vmatpush1.msra.mxu0 %v6884
    %6948 = vmatprep.subr.mxu0 0.0
    %6949 = vmatpush1.msra.mxu0 %v6885
    %6950 = vmatprep.subr.mxu0 0.0
    %6951 = vmatpush1.msra.mxu0 %v6886
    %6952 = vmatprep.subr.mxu0 0.0
    %6953 = vmatpush1.msra.mxu0 %v6887
    %6954 = vmatprep.subr.mxu0 0.0
    %6955 = vmatpush1.msra.mxu0 %v6888
    %6956 = vmatprep.subr.mxu0 0.0
    %6957 = vmatpush1.msra.mxu0 %v6889
    %6958 = vmatprep.subr.mxu0 0.0
    %6959 = vmatpush1.msra.mxu0 %v6890
    %6960 = vmatprep.subr.mxu0 0.0
    %6961 = vmatpush1.msra.mxu0 %v6891
    %6962 = vmatprep.subr.mxu0 0.0
    %6963 = vmatpush1.msra.mxu0 %v6892
    %6964 = vmatprep.subr.mxu0 0.0
    %6965 = vmatpush1.msra.mxu0 %v6893
    %6966 = vmatprep.subr.mxu0 0.0
    %6967 = vmatpush1.msra.mxu0 %v6894
    %6968 = vmatprep.subr.mxu0 0.0
    %6969 = vmatpush1.msra.mxu0 0.0
    %6970 = vmatprep.subr.mxu0 0.0
    %6971 = vmatpush1.msra.mxu0 0.0
    %6972 = vmatprep.subr.mxu0 0.0
    %6973 = vmatpush1.msra.mxu0 0.0
    %6974 = vmatprep.subr.mxu0 0.0
    %6975 = vmatpush1.msra.mxu0 0.0
    %6976 = vmatprep.subr.mxu0 0.0
    %6977 = vmatpush1.msra.mxu0 0.0
    %6978 = vmatprep.subr.mxu0 0.0
    %6979 = vmatpush1.msra.mxu0 0.0
    %6980 = vmatprep.subr.mxu0 0.0
    %6981 = vmatpush1.msra.mxu0 0.0
    %6982 = vmatprep.subr.mxu0 0.0
    %6983 = vmatpush1.msra.mxu0 0.0
    %6984 = vmatprep.subr.mxu0 0.0
    %6985 = vmatpush1.msra.mxu0 0.0
    %6986 = vmatprep.subr.mxu0 0.0
    %6987 = vmatpush1.msra.mxu0 0.0
    %6988 = vmatprep.subr.mxu0 0.0
    %6989 = vmatpush1.msra.mxu0 0.0
    %6990 = vmatprep.subr.mxu0 0.0
    %6991 = vmatpush1.msra.mxu0 0.0
    %6992 = vmatprep.subr.mxu0 0.0
    %6993 = vmatpush1.msra.mxu0 0.0
    %6994 = vmatprep.subr.mxu0 0.0
    %6995 = vmatpush1.msra.mxu0 0.0
    %6996 = vmatprep.mubr.f32.mxu0 %v6902
    %6997 = vmatmul.mubr.f32.gmra.mrb[0].mxu0 %v6861
    %v6998 = vpop.f32.mrb[0].mxu0
    %v6999 = vadd.f32 %v6900, %v6998
    %v7000 = vpop.f32.mrb[0].mxu0
    %7001 = vmatprep.mubr.f32.mxu0 %v6904
    %7002 = vmatmul.mubr.f32.gmra.mrb[0].mxu0 %v6862
    %v7003 = vpop.f32.mrb[0].mxu0
    %v7004 = vadd.f32 %v6900, %v7003
    %v7005 = vpop.f32.mrb[0].mxu0
    %7006 = vmatprep.mubr.f32.mxu0 %v6906
    %7007 = vmatmul.mubr.f32.gmra.mrb[0].mxu0 %v6863
    %v7008 = vpop.f32.mrb[0].mxu0
    %v7009 = vadd.f32 %v6900, %v7008
    %v7010 = vpop.f32.mrb[0].mxu0
    %7011 = vmatprep.mubr.f32.mxu0 %v6908
    %7012 = vmatmul.mubr.f32.gmra.mrb[0].mxu0 %v6864
    %v7013 = vpop.f32.mrb[0].mxu0
    %v7014 = vadd.f32 %v6900, %v7013
    %v7015 = vpop.f32.mrb[0].mxu0
    %7016 = vmatprep.mubr.f32.mxu0 %v6910
    %7017 = vmatmul.mubr.f32.gmra.mrb[0].mxu0 %v6865
    %v7018 = vpop.f32.mrb[0].mxu0
    %v7019 = vadd.f32 %v6900, %v7018
    %v7020 = vpop.f32.mrb[0].mxu0
    %7021 = vmatprep.mubr.f32.mxu0 %v6912
    %7022 = vmatmul.mubr.f32.gmra.mrb[0].mxu0 %v6866
    %v7023 = vpop.f32.mrb[0].mxu0
    %v7024 = vadd.f32 %v6900, %v7023
    %v7025 = vpop.f32.mrb[0].mxu0
    %7026 = vmatprep.mubr.f32.mxu0 %v6914
    %7027 = vmatmul.mubr.f32.gmra.mrb[0].mxu0 %v6867
    %v7028 = vpop.f32.mrb[0].mxu0
    %v7029 = vadd.f32 %v6900, %v7028
    %v7030 = vpop.f32.mrb[0].mxu0
    %7031 = vmatprep.mubr.f32.mxu0 %v6916
    %7032 = vmatmul.mubr.f32.gmra.mrb[0].mxu0 %v6868
    %v7033 = vpop.f32.mrb[0].mxu0
    %v7034 = vadd.f32 %v6900, %v7033
    %v7035 = vpop.f32.mrb[0].mxu0
    %7036 = vmatprep.mubr.f32.mxu0 %v6918
    %7037 = vmatmul.mubr.f32.gmra.mrb[0].mxu0 %v6869
    %v7038 = vpop.f32.mrb[0].mxu0
    %v7039 = vadd.f32 %v6900, %v7038
    %v7040 = vpop.f32.mrb[0].mxu0
    %7041 = vmatprep.mubr.f32.mxu0 %v6920
    %7042 = vmatmul.mubr.f32.gmra.mrb[0].mxu0 %v6870
    %v7043 = vpop.f32.mrb[0].mxu0
    %v7044 = vadd.f32 %v6900, %v7043
    %v7045 = vpop.f32.mrb[0].mxu0
    %7046 = vmatprep.mubr.f32.mxu0 %v6922
    %7047 = vmatmul.mubr.f32.gmra.mrb[0].mxu0 %v6871
    %v7048 = vpop.f32.mrb[0].mxu0
    %v7049 = vadd.f32 %v6900, %v7048
    %v7050 = vpop.f32.mrb[0].mxu0
    %7051 = vmatprep.mubr.f32.mxu0 %v6924
    %7052 = vmatmul.mubr.f32.gmra.mrb[0].mxu0 %v6872
    %v7053 = vpop.f32.mrb[0].mxu0
    %v7054 = vadd.f32 %v6900, %v7053
    %v7055 = vpop.f32.mrb[0].mxu0
    %7056 = vmatprep.mubr.f32.mxu0 %v6926
    %7057 = vmatmul.mubr.f32.gmra.mrb[0].mxu0 %v6873
    %v7058 = vpop.f32.mrb[0].mxu0
    %v7059 = vadd.f32 %v6900, %v7058
    %v7060 = vpop.f32.mrb[0].mxu0
    %7061 = vmatprep.mubr.f32.mxu0 %v6928
    %7062 = vmatmul.mubr.f32.gmra.mrb[0].mxu0 %v6874
    %v7063 = vpop.f32.mrb[0].mxu0
    %v7064 = vadd.f32 %v6900, %v7063
    %v7065 = vpop.f32.mrb[0].mxu0
    %7066 = vmatprep.mubr.f32.mxu0 %v6930
    %7067 = vmatmul.mubr.f32.gmra.mrb[0].mxu0 %v6875
    %v7068 = vpop.f32.mrb[0].mxu0
    %v7069 = vadd.f32 %v6900, %v7068
    %v7070 = vpop.f32.mrb[0].mxu0
    %7071 = vmatprep.mubr.f32.mxu0 %v6916
    %7072 = vmatmul.mubr.f32.gmra.mrb[0].mxu0 %v6876
    %v7073 = vpop.f32.mrb[0].mxu0
    %v7074 = vadd.f32 %v6900, %v7073
    %v7075 = vpop.f32.mrb[0].mxu0
    %7076 = vdwg.mxu0
    %v7077 = vmax.f32 %v6999, 0.0
    %v7078 = vmax.f32 %v7004, 0.0
    %v7079 = vmax.f32 %v7009, 0.0
    %v7080 = vmax.f32 %v7014, 0.0
    %v7081 = vmax.f32 %v7019, 0.0
    %v7082 = vmax.f32 %v7024, 0.0
    %v7083 = vmax.f32 %v7029, 0.0
    %v7084 = vmax.f32 %v7034, 0.0
    %v7085 = vmax.f32 %v7039, 0.0
    %v7086 = vmax.f32 %v7044, 0.0
    %v7087 = vmax.f32 %v7049, 0.0
    %v7088 = vmax.f32 %v7054, 0.0
    %v7089 = vmax.f32 %v7059, 0.0
    %v7090 = vmax.f32 %v7064, 0.0
    %v7091 = vmax.f32 %v7069, 0.0
    %v7092 = vmax.f32 %v7074, 0.0
    %v7093 = vmax.f32 %v7077, %v7078
    %v7094 = vmax.f32 %v7079, %v7080
    %v7095 = vmax.f32 %v7081, %v7082
    %v7096 = vmax.f32 %v7083, %v7084
    %v7097 = vmax.f32 %v7085, %v7086
    %v7098 = vmax.f32 %v7087, %v7088
    %v7099 = vmax.f32 %v7089, %v7090
    %v7100 = vmax.f32 %v7091, %v7092
    %v7109 = vcombine.high %v7093, %v7093
    %v7111 = vunpack.c.l.s4 1983009808
    %v7112 = vunpack.c.0.s8 %v7111
    %v7113 = vlaneseq
    %v7114 = vshrl.u32 %v7113, 7
    %v7115 = vsub.s32 %v7112, %v7114
    %v7116 = vrot.slane %v7093, %v7115
    %v7118 = vunpack.c.l.s4 1983009808
    %v7119 = vunpack.c.0.s8 %v7118
    %v7120 = vlaneseq
    %v7121 = vshrl.u32 %v7120, 7
    %v7122 = vsub.s32 %v7119, %v7121
    %v7123 = vrot.slane %v7109, %v7122
    %v7124 = vcombine.high %v7116, %v7116
    %v7125 = vcombine.high %v7123, %v7123
    %v7126 = vcombine.high %v7094, %v7094
    %v7128 = vunpack.c.l.s4 1983009808
    %v7129 = vunpack.c.0.s8 %v7128
    %v7130 = vlaneseq
    %v7131 = vshrl.u32 %v7130, 7
    %v7132 = vsub.s32 %v7129, %v7131
    %v7133 = vrot.slane %v7094, %v7132
    %v7135 = vunpack.c.l.s4 1983009808
    %v7136 = vunpack.c.0.s8 %v7135
    %v7137 = vlaneseq
    %v7138 = vshrl.u32 %v7137, 7
    %v7139 = vsub.s32 %v7136, %v7138
    %v7140 = vrot.slane %v7126, %v7139
    %v7141 = vcombine.high %v7133, %v7133
    %v7142 = vcombine.high %v7140, %v7140
    %v7143 = vcombine.high %v7095, %v7095
    %v7145 = vunpack.c.l.s4 1983009808
    %v7146 = vunpack.c.0.s8 %v7145
    %v7147 = vlaneseq
    %v7148 = vshrl.u32 %v7147, 7
    %v7149 = vsub.s32 %v7146, %v7148
    %v7150 = vrot.slane %v7095, %v7149
    %v7152 = vunpack.c.l.s4 1983009808
    %v7153 = vunpack.c.0.s8 %v7152
    %v7154 = vlaneseq
    %v7155 = vshrl.u32 %v7154, 7
    %v7156 = vsub.s32 %v7153, %v7155
    %v7157 = vrot.slane %v7143, %v7156
    %v7158 = vcombine.high %v7150, %v7150
    %v7159 = vcombine.high %v7157, %v7157
    %v7160 = vcombine.high %v7096, %v7096
    %v7162 = vunpack.c.l.s4 1983009808
    %v7163 = vunpack.c.0.s8 %v7162
    %v7164 = vlaneseq
    %v7165 = vshrl.u32 %v7164, 7
    %v7166 = vsub.s32 %v7163, %v7165
    %v7167 = vrot.slane %v7096, %v7166
    %v7169 = vunpack.c.l.s4 1983009808
    %v7170 = vunpack.c.0.s8 %v7169
    %v7171 = vlaneseq
    %v7172 = vshrl.u32 %v7171, 7
    %v7173 = vsub.s32 %v7170, %v7172
    %v7174 = vrot.slane %v7160, %v7173
    %v7175 = vcombine.high %v7167, %v7167
    %v7176 = vcombine.high %v7174, %v7174
    %v7177 = vcombine.high %v7097, %v7097
    %v7179 = vunpack.c.l.s4 1983009808
    %v7180 = vunpack.c.0.s8 %v7179
    %v7181 = vlaneseq
    %v7182 = vshrl.u32 %v7181, 7
    %v7183 = vsub.s32 %v7180, %v7182
    %v7184 = vrot.slane %v7097, %v7183
    %v7186 = vunpack.c.l.s4 1983009808
    %v7187 = vunpack.c.0.s8 %v7186
    %v7188 = vlaneseq
    %v7189 = vshrl.u32 %v7188, 7
    %v7190 = vsub.s32 %v7187, %v7189
    %v7191 = vrot.slane %v7177, %v7190
    %v7192 = vcombine.high %v7184, %v7184
    %v7193 = vcombine.high %v7191, %v7191
    %v7194 = vcombine.high %v7098, %v7098
    %v7196 = vunpack.c.l.s4 1983009808
    %v7197 = vunpack.c.0.s8 %v7196
    %v7198 = vlaneseq
    %v7199 = vshrl.u32 %v7198, 7
    %v7200 = vsub.s32 %v7197, %v7199
    %v7201 = vrot.slane %v7098, %v7200
    %v7203 = vunpack.c.l.s4 1983009808
    %v7204 = vunpack.c.0.s8 %v7203
    %v7205 = vlaneseq
    %v7206 = vshrl.u32 %v7205, 7
    %v7207 = vsub.s32 %v7204, %v7206
    %v7208 = vrot.slane %v7194, %v7207
    %v7209 = vcombine.high %v7201, %v7201
    %v7210 = vcombine.high %v7208, %v7208
    %v7211 = vcombine.high %v7099, %v7099
    %v7213 = vunpack.c.l.s4 1983009808
    %v7214 = vunpack.c.0.s8 %v7213
    %v7215 = vlaneseq
    %v7216 = vshrl.u32 %v7215, 7
    %v7217 = vsub.s32 %v7214, %v7216
    %v7218 = vrot.slane %v7099, %v7217
    %v7220 = vunpack.c.l.s4 1983009808
    %v7221 = vunpack.c.0.s8 %v7220
    %v7222 = vlaneseq
    %v7223 = vshrl.u32 %v7222, 7
    %v7224 = vsub.s32 %v7221, %v7223
    %v7225 = vrot.slane %v7211, %v7224
    %v7226 = vcombine.high %v7218, %v7218
    %v7227 = vcombine.high %v7225, %v7225
    %v7228 = vcombine.high %v7100, %v7100
    %v7230 = vunpack.c.l.s4 1983009808
    %v7231 = vunpack.c.0.s8 %v7230
    %v7232 = vlaneseq
    %v7233 = vshrl.u32 %v7232, 7
    %v7234 = vsub.s32 %v7231, %v7233
    %v7235 = vrot.slane %v7100, %v7234
    %v7237 = vunpack.c.l.s4 1983009808
    %v7238 = vunpack.c.0.s8 %v7237
    %v7239 = vlaneseq
    %v7240 = vshrl.u32 %v7239, 7
    %v7241 = vsub.s32 %v7238, %v7240
    %v7242 = vrot.slane %v7228, %v7241
    %v7243 = vcombine.high %v7235, %v7235
    %v7244 = vcombine.high %v7242, %v7242
    %v7277 = vrot.slane %v7116, 7
    %v7278 = vrot.slane %v7277, 2
    %v7279 = vrot.slane %v7124, 7
    %v7280 = vrot.slane %v7279, 2
    %v7281 = vrot.slane %v7123, 7
    %v7282 = vrot.slane %v7281, 2
    %v7283 = vrot.slane %v7125, 7
    %v7284 = vrot.slane %v7283, 2
    %v7285 = vrot.slane %v7133, 7
    %v7286 = vrot.slane %v7285, 2
    %v7287 = vrot.slane %v7141, 7
    %v7288 = vrot.slane %v7287, 2
    %v7289 = vrot.slane %v7140, 7
    %v7290 = vrot.slane %v7289, 2
    %v7291 = vrot.slane %v7142, 7
    %v7292 = vrot.slane %v7291, 2
    %v7293 = vrot.slane %v7150, 7
    %v7294 = vrot.slane %v7293, 2
    %v7295 = vrot.slane %v7158, 7
    %v7296 = vrot.slane %v7295, 2
    %v7297 = vrot.slane %v7157, 7
    %v7298 = vrot.slane %v7297, 2
    %v7299 = vrot.slane %v7159, 7
    %v7300 = vrot.slane %v7299, 2
    %v7301 = vrot.slane %v7167, 7
    %v7302 = vrot.slane %v7301, 2
    %v7303 = vrot.slane %v7175, 7
    %v7304 = vrot.slane %v7303, 2
    %v7305 = vrot.slane %v7174, 7
    %v7306 = vrot.slane %v7305, 2
    %v7307 = vrot.slane %v7176, 7
    %v7308 = vrot.slane %v7307, 2
    %v7309 = vrot.slane %v7184, 7
    %v7310 = vrot.slane %v7309, 2
    %v7311 = vrot.slane %v7192, 7
    %v7312 = vrot.slane %v7311, 2
    %v7313 = vrot.slane %v7191, 7
    %v7314 = vrot.slane %v7313, 2
    %v7315 = vrot.slane %v7193, 7
    %v7316 = vrot.slane %v7315, 2
    %v7317 = vrot.slane %v7201, 7
    %v7318 = vrot.slane %v7317, 2
    %v7319 = vrot.slane %v7209, 7
    %v7320 = vrot.slane %v7319, 2
    %v7321 = vrot.slane %v7208, 7
    %v7322 = vrot.slane %v7321, 2
    %v7323 = vrot.slane %v7210, 7
    %v7324 = vrot.slane %v7323, 2
    %v7325 = vrot.slane %v7218, 7
    %v7326 = vrot.slane %v7325, 2
    %v7327 = vrot.slane %v7226, 7
    %v7328 = vrot.slane %v7327, 2
    %v7329 = vrot.slane %v7225, 7
    %v7330 = vrot.slane %v7329, 2
    %v7331 = vrot.slane %v7227, 7
    %v7332 = vrot.slane %v7331, 2
    %v7333 = vrot.slane %v7235, 7
    %v7334 = vrot.slane %v7333, 2
    %v7335 = vrot.slane %v7243, 7
    %v7336 = vrot.slane %v7335, 2
    %v7337 = vrot.slane %v7242, 7
    %v7338 = vrot.slane %v7337, 2
    %v7339 = vrot.slane %v7244, 7
    %v7340 = vrot.slane %v7339, 2
    %v7373 = vmax.f32 %v7116, %v7278
    %v7374 = vmax.f32 %v7124, %v7280
    %v7375 = vmax.f32 %v7123, %v7282
    %v7376 = vmax.f32 %v7125, %v7284
    %v7377 = vmax.f32 %v7133, %v7286
    %v7378 = vmax.f32 %v7141, %v7288
    %v7379 = vmax.f32 %v7140, %v7290
    %v7380 = vmax.f32 %v7142, %v7292
    %v7381 = vmax.f32 %v7150, %v7294
    %v7382 = vmax.f32 %v7158, %v7296
    %v7383 = vmax.f32 %v7157, %v7298
    %v7384 = vmax.f32 %v7159, %v7300
    %v7385 = vmax.f32 %v7167, %v7302
    %v7386 = vmax.f32 %v7175, %v7304
    %v7387 = vmax.f32 %v7174, %v7306
    %v7388 = vmax.f32 %v7176, %v7308
    %v7389 = vmax.f32 %v7184, %v7310
    %v7390 = vmax.f32 %v7192, %v7312
    %v7391 = vmax.f32 %v7191, %v7314
    %v7392 = vmax.f32 %v7193, %v7316
    %v7393 = vmax.f32 %v7201, %v7318
    %v7394 = vmax.f32 %v7209, %v7320
    %v7395 = vmax.f32 %v7208, %v7322
    %v7396 = vmax.f32 %v7210, %v7324
    %v7397 = vmax.f32 %v7218, %v7326
    %v7398 = vmax.f32 %v7226, %v7328
    %v7399 = vmax.f32 %v7225, %v7330
    %v7400 = vmax.f32 %v7227, %v7332
    %v7401 = vmax.f32 %v7235, %v7334
    %v7402 = vmax.f32 %v7243, %v7336
    %v7403 = vmax.f32 %v7242, %v7338
    %v7404 = vmax.f32 %v7244, %v7340
    %v7407 = vlaneseq
    %v7408 = vshrl.u32 %v7407, 7
    %v7409 = vsub.s32 0, %v7408
    %v7410 = vrot.slane %v7373, %v7409
    %v7411 = vlaneseq
    %v7412 = vshrl.u32 %v7411, 7
    %v7413 = vsub.s32 0, %v7412
    %v7414 = vrot.slane %v7389, %v7413
    %v7415 = vsel %vm6119, %v7414, %v7410
    %v7419 = vlaneseq
    %v7420 = vshrl.u32 %v7419, 7
    %v7421 = vsub.s32 0, %v7420
    %v7422 = vrot.slane %v7374, %v7421
    %v7423 = vlaneseq
    %v7424 = vshrl.u32 %v7423, 7
    %v7425 = vsub.s32 0, %v7424
    %v7426 = vrot.slane %v7390, %v7425
    %v7427 = vsel %vm6119, %v7426, %v7422
    %7428 = vrot.lane.b32.xlu0 %v7427, 32
    %v7429 = vpop.permute.xlu0 %7428
    %v7433 = vlaneseq
    %v7434 = vshrl.u32 %v7433, 7
    %v7435 = vsub.s32 0, %v7434
    %v7436 = vrot.slane %v7375, %v7435
    %v7437 = vlaneseq
    %v7438 = vshrl.u32 %v7437, 7
    %v7439 = vsub.s32 0, %v7438
    %v7440 = vrot.slane %v7391, %v7439
    %v7441 = vsel %vm6119, %v7440, %v7436
    %7442 = vrot.lane.b32.xlu0 %v7441, 64
    %v7443 = vpop.permute.xlu0 %7442
    %v7447 = vlaneseq
    %v7448 = vshrl.u32 %v7447, 7
    %v7449 = vsub.s32 0, %v7448
    %v7450 = vrot.slane %v7376, %v7449
    %v7451 = vlaneseq
    %v7452 = vshrl.u32 %v7451, 7
    %v7453 = vsub.s32 0, %v7452
    %v7454 = vrot.slane %v7392, %v7453
    %v7455 = vsel %vm6119, %v7454, %v7450
    %7456 = vrot.lane.b32.xlu0 %v7455, 96
    %v7457 = vpop.permute.xlu0 %7456
    %v7461 = vlaneseq
    %v7462 = vshrl.u32 %v7461, 7
    %v7463 = vsub.s32 0, %v7462
    %v7464 = vrot.slane %v7377, %v7463
    %v7465 = vlaneseq
    %v7466 = vshrl.u32 %v7465, 7
    %v7467 = vsub.s32 0, %v7466
    %v7468 = vrot.slane %v7393, %v7467
    %v7469 = vsel %vm6119, %v7468, %v7464
    %v7473 = vlaneseq
    %v7474 = vshrl.u32 %v7473, 7
    %v7475 = vsub.s32 0, %v7474
    %v7476 = vrot.slane %v7378, %v7475
    %v7477 = vlaneseq
    %v7478 = vshrl.u32 %v7477, 7
    %v7479 = vsub.s32 0, %v7478
    %v7480 = vrot.slane %v7394, %v7479
    %v7481 = vsel %vm6119, %v7480, %v7476
    %7482 = vrot.lane.b32.xlu0 %v7481, 32
    %v7483 = vpop.permute.xlu0 %7482
    %v7487 = vlaneseq
    %v7488 = vshrl.u32 %v7487, 7
    %v7489 = vsub.s32 0, %v7488
    %v7490 = vrot.slane %v7379, %v7489
    %v7491 = vlaneseq
    %v7492 = vshrl.u32 %v7491, 7
    %v7493 = vsub.s32 0, %v7492
    %v7494 = vrot.slane %v7395, %v7493
    %v7495 = vsel %vm6119, %v7494, %v7490
    %7496 = vrot.lane.b32.xlu0 %v7495, 64
    %v7497 = vpop.permute.xlu0 %7496
    %v7501 = vlaneseq
    %v7502 = vshrl.u32 %v7501, 7
    %v7503 = vsub.s32 0, %v7502
    %v7504 = vrot.slane %v7380, %v7503
    %v7505 = vlaneseq
    %v7506 = vshrl.u32 %v7505, 7
    %v7507 = vsub.s32 0, %v7506
    %v7508 = vrot.slane %v7396, %v7507
    %v7509 = vsel %vm6119, %v7508, %v7504
    %7510 = vrot.lane.b32.xlu0 %v7509, 96
    %v7511 = vpop.permute.xlu0 %7510
    %v7515 = vlaneseq
    %v7516 = vshrl.u32 %v7515, 7
    %v7517 = vsub.s32 0, %v7516
    %v7518 = vrot.slane %v7381, %v7517
    %v7519 = vlaneseq
    %v7520 = vshrl.u32 %v7519, 7
    %v7521 = vsub.s32 0, %v7520
    %v7522 = vrot.slane %v7397, %v7521
    %v7523 = vsel %vm6119, %v7522, %v7518
    %v7527 = vlaneseq
    %v7528 = vshrl.u32 %v7527, 7
    %v7529 = vsub.s32 0, %v7528
    %v7530 = vrot.slane %v7382, %v7529
    %v7531 = vlaneseq
    %v7532 = vshrl.u32 %v7531, 7
    %v7533 = vsub.s32 0, %v7532
    %v7534 = vrot.slane %v7398, %v7533
    %v7535 = vsel %vm6119, %v7534, %v7530
    %7536 = vrot.lane.b32.xlu0 %v7535, 32
    %v7537 = vpop.permute.xlu0 %7536
    %v7541 = vlaneseq
    %v7542 = vshrl.u32 %v7541, 7
    %v7543 = vsub.s32 0, %v7542
    %v7544 = vrot.slane %v7383, %v7543
    %v7545 = vlaneseq
    %v7546 = vshrl.u32 %v7545, 7
    %v7547 = vsub.s32 0, %v7546
    %v7548 = vrot.slane %v7399, %v7547
    %v7549 = vsel %vm6119, %v7548, %v7544
    %7550 = vrot.lane.b32.xlu0 %v7549, 64
    %v7551 = vpop.permute.xlu0 %7550
    %v7555 = vlaneseq
    %v7556 = vshrl.u32 %v7555, 7
    %v7557 = vsub.s32 0, %v7556
    %v7558 = vrot.slane %v7384, %v7557
    %v7559 = vlaneseq
    %v7560 = vshrl.u32 %v7559, 7
    %v7561 = vsub.s32 0, %v7560
    %v7562 = vrot.slane %v7400, %v7561
    %v7563 = vsel %vm6119, %v7562, %v7558
    %7564 = vrot.lane.b32.xlu0 %v7563, 96
    %v7565 = vpop.permute.xlu0 %7564
    %v7569 = vlaneseq
    %v7570 = vshrl.u32 %v7569, 7
    %v7571 = vsub.s32 0, %v7570
    %v7572 = vrot.slane %v7385, %v7571
    %v7573 = vlaneseq
    %v7574 = vshrl.u32 %v7573, 7
    %v7575 = vsub.s32 0, %v7574
    %v7576 = vrot.slane %v7401, %v7575
    %v7577 = vsel %vm6119, %v7576, %v7572
    %v7581 = vlaneseq
    %v7582 = vshrl.u32 %v7581, 7
    %v7583 = vsub.s32 0, %v7582
    %v7584 = vrot.slane %v7386, %v7583
    %v7585 = vlaneseq
    %v7586 = vshrl.u32 %v7585, 7
    %v7587 = vsub.s32 0, %v7586
    %v7588 = vrot.slane %v7402, %v7587
    %v7589 = vsel %vm6119, %v7588, %v7584
    %7590 = vrot.lane.b32.xlu0 %v7589, 32
    %v7591 = vpop.permute.xlu0 %7590
    %v7595 = vlaneseq
    %v7596 = vshrl.u32 %v7595, 7
    %v7597 = vsub.s32 0, %v7596
    %v7598 = vrot.slane %v7387, %v7597
    %v7599 = vlaneseq
    %v7600 = vshrl.u32 %v7599, 7
    %v7601 = vsub.s32 0, %v7600
    %v7602 = vrot.slane %v7403, %v7601
    %v7603 = vsel %vm6119, %v7602, %v7598
    %7604 = vrot.lane.b32.xlu0 %v7603, 64
    %v7605 = vpop.permute.xlu0 %7604
    %v7609 = vlaneseq
    %v7610 = vshrl.u32 %v7609, 7
    %v7611 = vsub.s32 0, %v7610
    %v7612 = vrot.slane %v7388, %v7611
    %v7613 = vlaneseq
    %v7614 = vshrl.u32 %v7613, 7
    %v7615 = vsub.s32 0, %v7614
    %v7616 = vrot.slane %v7404, %v7615
    %v7617 = vsel %vm6119, %v7616, %v7612
    %7618 = vrot.lane.b32.xlu0 %v7617, 96
    %v7619 = vpop.permute.xlu0 %7618
    %v7621 = vsel %vm6776, %v7415, %v7429
    %v7622 = vsel %vm6809, %v7621, %v7443
    %v7623 = vsel %vm6843, %v7622, %v7457
    %v7624 = vsel %vm6776, %v7469, %v7483
    %v7625 = vsel %vm6809, %v7624, %v7497
    %v7626 = vsel %vm6843, %v7625, %v7511
    %v7627 = vsel %vm6776, %v7523, %v7537
    %v7628 = vsel %vm6809, %v7627, %v7551
    %v7629 = vsel %vm6843, %v7628, %v7565
    %v7630 = vsel %vm6776, %v7577, %v7591
    %v7631 = vsel %vm6809, %v7630, %v7605
    %v7632 = vsel %vm6843, %v7631, %v7619
    %v7633 = vld [vmem:[%s5] sm:$0xff]
    %v7634 = vld [vmem:[%s5 + $0x8] sm:$0xff]
    %v7635 = vld [vmem:[%s5 + $0x10] sm:$0xff]
    %v7636 = vld [vmem:[%s5 + $0x18] sm:$0xff]
    %v7637 = vld [vmem:[%s5 + $0x20] sm:$0xff]
    %v7638 = vld [vmem:[%s5 + $0x28] sm:$0xff]
    %v7639 = vld [vmem:[%s5 + $0x30] sm:$0xff]
    %v7640 = vld [vmem:[%s5 + $0x38] sm:$0xff]
    %v7641 = vld [vmem:[%s5 + $0x40] sm:$0xff]
    %v7642 = vld [vmem:[%s5 + $0x48] sm:$0xff]
    %v7643 = vld [vmem:[%s5 + $0x50] sm:$0xff]
    %v7644 = vld [vmem:[%s5 + $0x58] sm:$0xff]
    %v7645 = vld [vmem:[%s5 + $0x60] sm:$0xff]
    %v7646 = vld [vmem:[%s5 + $0x68] sm:$0xff]
    %v7647 = vld [vmem:[%s5 + $0x70] sm:$0xff]
    %v7648 = vld [vmem:[%s5 + $0x78] sm:$0xff]
    %v7649 = vld [vmem:[%s5 + $0x80] sm:$0xff]
    %v7650 = vld [vmem:[%s5 + $0x88] sm:$0xff]
    %v7651 = vld [vmem:[%s5 + $0x90] sm:$0xff]
    %v7652 = vld [vmem:[%s5 + $0x98] sm:$0xff]
    %v7653 = vld [vmem:[%s5 + $0xa0] sm:$0xff]
    %v7654 = vld [vmem:[%s5 + $0xa8] sm:$0xff]
    %v7655 = vld [vmem:[%s5 + $0xb0] sm:$0xff]
    %v7656 = vld [vmem:[%s5 + $0xb8] sm:$0xff]
    %v7657 = vld [vmem:[%s5 + $0xc0] sm:$0xff]
    %v7658 = vld [vmem:[%s5 + $0xc8] sm:$0xff]
    %v7659 = vld [vmem:[%s5 + $0xd0] sm:$0xff]
    %v7660 = vld [vmem:[%s5 + $0xd8] sm:$0xff]
    %v7661 = vld [vmem:[%s5 + $0xe0] sm:$0xff]
    %v7662 = vld [vmem:[%s5 + $0xe8] sm:$0xff]
    %v7663 = vld [vmem:[%s5 + $0xf0] sm:$0xff]
    %v7664 = vld [vmem:[%s5 + $0xf8] sm:$0xff]
    %v7665 = vld [vmem:[%s5 + $0x100] sm:$0xff]
    %v7666 = vld [vmem:[%s5 + $0x108] sm:$0xff]
    %v7667 = vld [vmem:[%s5 + $0x110] sm:$0xff]
    %v7668 = vld [vmem:[%s5 + $0x118] sm:$0xff]
    %v7669 = vld [vmem:[%s5 + $0x120] sm:$0xff]
    %v7670 = vld [vmem:[%s5 + $0x128] sm:$0xff]
    %v7671 = vld [vmem:[%s5 + $0x130] sm:$0xff]
    %v7672 = vld [vmem:[%s5 + $0x138] sm:$0xff]
    %v7673 = vld [vmem:[%s5 + $0x140] sm:$0xff]
    %v7674 = vld [vmem:[%s5 + $0x148] sm:$0xff]
    %v7675 = vld [vmem:[%s5 + $0x150] sm:$0xff]
    %v7676 = vld [vmem:[%s5 + $0x158] sm:$0xff]
    %v7677 = vld [vmem:[%s5 + $0x160] sm:$0xff]
    %v7678 = vld [vmem:[%s5 + $0x168] sm:$0xff]
    %v7679 = vld [vmem:[%s5 + $0x170] sm:$0xff]
    %v7680 = vld [vmem:[%s5 + $0x178] sm:$0xff]
    %v7681 = vld [vmem:[%s5 + $0x180] sm:$0xff]
    %v7682 = vld [vmem:[%s5 + $0x188] sm:$0xff]
    %v7683 = vld [vmem:[%s5 + $0x190] sm:$0xff]
    %v7684 = vld [vmem:[%s5 + $0x198] sm:$0xff]
    %v7685 = vld [vmem:[%s5 + $0x1a0] sm:$0xff]
    %v7686 = vld [vmem:[%s5 + $0x1a8] sm:$0xff]
    %v7687 = vld [vmem:[%s5 + $0x1b0] sm:$0xff]
    %v7688 = vld [vmem:[%s5 + $0x1b8] sm:$0xff]
    %v7689 = vld [vmem:[%s5 + $0x1c0] sm:$0xff]
    %v7690 = vld [vmem:[%s5 + $0x1c8] sm:$0xff]
    %v7691 = vld [vmem:[%s5 + $0x1d0] sm:$0xff]
    %v7692 = vld [vmem:[%s5 + $0x1d8] sm:$0xff]
    %v7693 = vld [vmem:[%s5 + $0x1e0] sm:$0xff]
    %v7694 = vld [vmem:[%s5 + $0x1e8] sm:$0xff]
    %v7695 = vld [vmem:[%s5 + $0x1f0] sm:$0xff]
    %v7696 = vld [vmem:[%s5 + $0x1f8] sm:$0xff]
    %v7697 = vld [vmem:[%s6] sm:$0x1]
    %v7699 = vlaneseq
    %v7700 = vshrl.u32 %v7699, 7
    %v7701 = vsub.s32 0, %v7700
    %v7702 = vrot.slane %v7697, %v7701
    %7704 = vmatprep.subr.mxu0 0.0
    %7705 = vmatpush1.msra.mxu0 %v7633
    %7706 = vmatprep.subr.mxu0 0.0
    %7707 = vmatpush1.msra.mxu0 %v7634
    %7708 = vmatprep.subr.mxu0 0.0
    %7709 = vmatpush1.msra.mxu0 %v7635
    %7710 = vmatprep.subr.mxu0 0.0
    %7711 = vmatpush1.msra.mxu0 %v7636
    %7712 = vmatprep.subr.mxu0 0.0
    %7713 = vmatpush1.msra.mxu0 %v7637
    %7714 = vmatprep.subr.mxu0 0.0
    %7715 = vmatpush1.msra.mxu0 %v7638
    %7716 = vmatprep.subr.mxu0 0.0
    %7717 = vmatpush1.msra.mxu0 %v7639
    %7718 = vmatprep.subr.mxu0 0.0
    %7719 = vmatpush1.msra.mxu0 %v7640
    %7720 = vmatprep.subr.mxu0 0.0
    %7721 = vmatpush1.msra.mxu0 %v7641
    %7722 = vmatprep.subr.mxu0 0.0
    %7723 = vmatpush1.msra.mxu0 %v7642
    %7724 = vmatprep.subr.mxu0 0.0
    %7725 = vmatpush1.msra.mxu0 %v7643
    %7726 = vmatprep.subr.mxu0 0.0
    %7727 = vmatpush1.msra.mxu0 %v7644
    %7728 = vmatprep.subr.mxu0 0.0
    %7729 = vmatpush1.msra.mxu0 %v7645
    %7730 = vmatprep.subr.mxu0 0.0
    %7731 = vmatpush1.msra.mxu0 %v7646
    %7732 = vmatprep.subr.mxu0 0.0
    %7733 = vmatpush1.msra.mxu0 %v7647
    %7734 = vmatprep.subr.mxu0 0.0
    %7735 = vmatpush1.msra.mxu0 %v7648
    %7736 = vmatprep.subr.mxu0 0.0
    %7737 = vmatpush1.msra.mxu0 %v7649
    %7738 = vmatprep.subr.mxu0 0.0
    %7739 = vmatpush1.msra.mxu0 %v7650
    %7740 = vmatprep.subr.mxu0 0.0
    %7741 = vmatpush1.msra.mxu0 %v7651
    %7742 = vmatprep.subr.mxu0 0.0
    %7743 = vmatpush1.msra.mxu0 %v7652
    %7744 = vmatprep.subr.mxu0 0.0
    %7745 = vmatpush1.msra.mxu0 %v7653
    %7746 = vmatprep.subr.mxu0 0.0
    %7747 = vmatpush1.msra.mxu0 %v7654
    %7748 = vmatprep.subr.mxu0 0.0
    %7749 = vmatpush1.msra.mxu0 %v7655
    %7750 = vmatprep.subr.mxu0 0.0
    %7751 = vmatpush1.msra.mxu0 %v7656
    %7752 = vmatprep.subr.mxu0 0.0
    %7753 = vmatpush1.msra.mxu0 %v7657
    %7754 = vmatprep.subr.mxu0 0.0
    %7755 = vmatpush1.msra.mxu0 %v7658
    %7756 = vmatprep.subr.mxu0 0.0
    %7757 = vmatpush1.msra.mxu0 %v7659
    %7758 = vmatprep.subr.mxu0 0.0
    %7759 = vmatpush1.msra.mxu0 %v7660
    %7760 = vmatprep.subr.mxu0 0.0
    %7761 = vmatpush1.msra.mxu0 %v7661
    %7762 = vmatprep.subr.mxu0 0.0
    %7763 = vmatpush1.msra.mxu0 %v7662
    %7764 = vmatprep.subr.mxu0 0.0
    %7765 = vmatpush1.msra.mxu0 %v7663
    %7766 = vmatprep.subr.mxu0 0.0
    %7767 = vmatpush1.msra.mxu0 %v7664
    %7768 = vmatprep.mubr.f32.mxu0 %v7626
    %7769 = vmatmul.mubr.f32.gmra.mrb[0].mxu0 %v7623
    %v7770 = vpop.f32.mrb[0].mxu0
    %v7771 = vadd.f32 %v7702, %v7770
    %v7772 = vpop.f32.mrb[0].mxu0
    %7773 = vdwg.mxu0
    %7774 = vmatprep.subr.mxu0 0.0
    %7775 = vmatpush1.msra.mxu0 %v7665
    %7776 = vmatprep.subr.mxu0 0.0
    %7777 = vmatpush1.msra.mxu0 %v7666
    %7778 = vmatprep.subr.mxu0 0.0
    %7779 = vmatpush1.msra.mxu0 %v7667
    %7780 = vmatprep.subr.mxu0 0.0
    %7781 = vmatpush1.msra.mxu0 %v7668
    %7782 = vmatprep.subr.mxu0 0.0
    %7783 = vmatpush1.msra.mxu0 %v7669
    %7784 = vmatprep.subr.mxu0 0.0
    %7785 = vmatpush1.msra.mxu0 %v7670
    %7786 = vmatprep.subr.mxu0 0.0
    %7787 = vmatpush1.msra.mxu0 %v7671
    %7788 = vmatprep.subr.mxu0 0.0
    %7789 = vmatpush1.msra.mxu0 %v7672
    %7790 = vmatprep.subr.mxu0 0.0
    %7791 = vmatpush1.msra.mxu0 %v7673
    %7792 = vmatprep.subr.mxu0 0.0
    %7793 = vmatpush1.msra.mxu0 %v7674
    %7794 = vmatprep.subr.mxu0 0.0
    %7795 = vmatpush1.msra.mxu0 %v7675
    %7796 = vmatprep.subr.mxu0 0.0
    %7797 = vmatpush1.msra.mxu0 %v7676
    %7798 = vmatprep.subr.mxu0 0.0
    %7799 = vmatpush1.msra.mxu0 %v7677
    %7800 = vmatprep.subr.mxu0 0.0
    %7801 = vmatpush1.msra.mxu0 %v7678
    %7802 = vmatprep.subr.mxu0 0.0
    %7803 = vmatpush1.msra.mxu0 %v7679
    %7804 = vmatprep.subr.mxu0 0.0
    %7805 = vmatpush1.msra.mxu0 %v7680
    %7806 = vmatprep.subr.mxu0 0.0
    %7807 = vmatpush1.msra.mxu0 %v7681
    %7808 = vmatprep.subr.mxu0 0.0
    %7809 = vmatpush1.msra.mxu0 %v7682
    %7810 = vmatprep.subr.mxu0 0.0
    %7811 = vmatpush1.msra.mxu0 %v7683
    %7812 = vmatprep.subr.mxu0 0.0
    %7813 = vmatpush1.msra.mxu0 %v7684
    %7814 = vmatprep.subr.mxu0 0.0
    %7815 = vmatpush1.msra.mxu0 %v7685
    %7816 = vmatprep.subr.mxu0 0.0
    %7817 = vmatpush1.msra.mxu0 %v7686
    %7818 = vmatprep.subr.mxu0 0.0
    %7819 = vmatpush1.msra.mxu0 %v7687
    %7820 = vmatprep.subr.mxu0 0.0
    %7821 = vmatpush1.msra.mxu0 %v7688
    %7822 = vmatprep.subr.mxu0 0.0
    %7823 = vmatpush1.msra.mxu0 %v7689
    %7824 = vmatprep.subr.mxu0 0.0
    %7825 = vmatpush1.msra.mxu0 %v7690
    %7826 = vmatprep.subr.mxu0 0.0
    %7827 = vmatpush1.msra.mxu0 %v7691
    %7828 = vmatprep.subr.mxu0 0.0
    %7829 = vmatpush1.msra.mxu0 %v7692
    %7830 = vmatprep.subr.mxu0 0.0
    %7831 = vmatpush1.msra.mxu0 %v7693
    %7832 = vmatprep.subr.mxu0 0.0
    %7833 = vmatpush1.msra.mxu0 %v7694
    %7834 = vmatprep.subr.mxu0 0.0
    %7835 = vmatpush1.msra.mxu0 %v7695
    %7836 = vmatprep.subr.mxu0 0.0
    %7837 = vmatpush1.msra.mxu0 %v7696
    %7838 = vmatprep.mubr.f32.mxu0 %v7632
    %7839 = vmatmul.mubr.f32.gmra.mrb[0].mxu0 %v7629
    %v7840 = vpop.f32.mrb[0].mxu0
    %v7841 = vadd.f32 %v7771, %v7840
    %v7842 = vpop.f32.mrb[0].mxu0
    %7843 = vdwg.mxu0
    %v7844 = vmax.f32 %v7841, 0.0
    %v7845 = vld [vmem:[%s7] sm:$0xff]
    %v7846 = vld [vmem:[%s7 + $0x8] sm:$0xff]
    %v7847 = vld [vmem:[%s7 + $0x10] sm:$0xff]
    %v7848 = vld [vmem:[%s7 + $0x18] sm:$0xff]
    %v7849 = vld [vmem:[%s8] sm:$0x1]
    %v7851 = vlaneseq
    %v7852 = vshrl.u32 %v7851, 7
    %v7853 = vsub.s32 0, %v7852
    %v7854 = vrot.slane %v7849, %v7853
    %v7857 = vsel %vm6776, %v7844, 0
    %7859 = vmatprep.subr.mxu0 0.0
    %7860 = vmatpush1.msra.mxu0 %v7845
    %7861 = vmatprep.subr.mxu0 0.0
    %7862 = vmatpush1.msra.mxu0 %v7846
    %7863 = vmatprep.subr.mxu0 0.0
    %7864 = vmatpush1.msra.mxu0 %v7847
    %7865 = vmatprep.subr.mxu0 0.0
    %7866 = vmatpush1.msra.mxu0 %v7848
    %7867 = vmatprep.subr.mxu0 0.0
    %7868 = vmatpush1.msra.mxu0 0.0
    %7869 = vmatprep.subr.mxu0 0.0
    %7870 = vmatpush1.msra.mxu0 0.0
    %7871 = vmatprep.subr.mxu0 0.0
    %7872 = vmatpush1.msra.mxu0 0.0
    %7873 = vmatprep.subr.mxu0 0.0
    %7874 = vmatpush1.msra.mxu0 0.0
    %7875 = vmatprep.subr.mxu0 0.0
    %7876 = vmatpush1.msra.mxu0 0.0
    %7877 = vmatprep.subr.mxu0 0.0
    %7878 = vmatpush1.msra.mxu0 0.0
    %7879 = vmatprep.subr.mxu0 0.0
    %7880 = vmatpush1.msra.mxu0 0.0
    %7881 = vmatprep.subr.mxu0 0.0
    %7882 = vmatpush1.msra.mxu0 0.0
    %7883 = vmatprep.subr.mxu0 0.0
    %7884 = vmatpush1.msra.mxu0 0.0
    %7885 = vmatprep.subr.mxu0 0.0
    %7886 = vmatpush1.msra.mxu0 0.0
    %7887 = vmatprep.subr.mxu0 0.0
    %7888 = vmatpush1.msra.mxu0 0.0
    %7889 = vmatprep.subr.mxu0 0.0
    %7890 = vmatpush1.msra.mxu0 0.0
    %7891 = vmatprep.subr.mxu0 0.0
    %7892 = vmatpush1.msra.mxu0 0.0
    %7893 = vmatprep.subr.mxu0 0.0
    %7894 = vmatpush1.msra.mxu0 0.0
    %7895 = vmatprep.subr.mxu0 0.0
    %7896 = vmatpush1.msra.mxu0 0.0
    %7897 = vmatprep.subr.mxu0 0.0
    %7898 = vmatpush1.msra.mxu0 0.0
    %7899 = vmatprep.subr.mxu0 0.0
    %7900 = vmatpush1.msra.mxu0 0.0
    %7901 = vmatprep.subr.mxu0 0.0
    %7902 = vmatpush1.msra.mxu0 0.0
    %7903 = vmatprep.subr.mxu0 0.0
    %7904 = vmatpush1.msra.mxu0 0.0
    %7905 = vmatprep.subr.mxu0 0.0
    %7906 = vmatpush1.msra.mxu0 0.0
    %7907 = vmatprep.subr.mxu0 0.0
    %7908 = vmatpush1.msra.mxu0 0.0
    %7909 = vmatprep.subr.mxu0 0.0
    %7910 = vmatpush1.msra.mxu0 0.0
    %7911 = vmatprep.subr.mxu0 0.0
    %7912 = vmatpush1.msra.mxu0 0.0
    %7913 = vmatprep.subr.mxu0 0.0
    %7914 = vmatpush1.msra.mxu0 0.0
    %7915 = vmatprep.subr.mxu0 0.0
    %7916 = vmatpush1.msra.mxu0 0.0
    %7917 = vmatprep.subr.mxu0 0.0
    %7918 = vmatpush1.msra.mxu0 0.0
    %7919 = vmatprep.subr.mxu0 0.0
    %7920 = vmatpush1.msra.mxu0 0.0
    %7921 = vmatprep.subr.mxu0 0.0
    %7922 = vmatpush1.msra.mxu0 0.0
    %7923 = vmatprep.mubr.f32.mxu0 0.0
    %7924 = vmatmul.mubr.f32.gmra.mrb[0].mxu0 %v7857
    %v7925 = vpop.f32.mrb[0].mxu0
    %v7926 = vadd.f32 %v7854, %v7925
    %v7927 = vpop.f32.mrb[0].mxu0
    %7928 = vdwg.mxu0
    %vm7929 = vcmask 25600
    %7930 = vst.msk [vmem:[#allocation2] sm:$0x3] %vm7929, %v7926
    // Predicated region
    $region38: #{pacman_net_forward.1} parent=1 // pred_check
      _
    $region39: #{pacman_net_forward.1} parent=1 // pred_check_branch
      %7932 = sbr.rel (0) target = $region41
    $region40: #{pacman_net_forward.1} parent=1 // pred_region
      %s7934 = ssub.s32 32, 32
      %7935 = vsyncadd [#allocation3], %s7934
      %s7937 = sshll.u32 [#allocation2], 4
      %s7938 = int_to_ptr.vmem [resolvable:$true] %s7937
      %7940 = dma.vmem_to_hbm [thread:$0]  %s7938, 32, %s9, [#allocation3]
    $region41: #{pacman_net_forward.1} parent=1 // pred_fallthru
      _
    // Predicated region
    $region42: #{pacman_net_forward.1} parent=1 // pred_check
      _
    $region43: #{pacman_net_forward.1} parent=1 // pred_check_branch
      %7942 = sbr.rel (0) target = $region45
    $region44: #{pacman_net_forward.1} parent=1 // pred_region
      %7943 = dma.done [#allocation3], 32
    $region45: #{pacman_net_forward.1} parent=1 // pred_fallthru
      _
    %7944 = vsyncpa [#allocation3], 1

</llo_original>
